<compile_context>
chip_gen: v7x
topology: tpu7x:2x2x1
jax: 0.10.0
libtpu: 0.0.40
codegen_flags: <defaults>
</compile_context>

<pallas_src>
import jax
import jax.numpy as jnp
from jax.experimental import pallas as pl
from jax.experimental.pallas import tpu as pltpu


def _make_fused_kernel(C_in, C_t, C_skip, C_o, H, W):
    """Fused transpose-conv + crop/concat + conv1 + ReLU + conv2 + ReLU for one
    batch element, everything in phase (space-to-depth by 2) representation."""
    C_cat = C_t + C_skip
    Hp1, Wp1 = H - 1, W - 1      # conv1 per-parity output plane size
    Hp2, Wp2 = H - 2, W - 2      # conv2 per-parity output plane size
    f32 = jnp.float32

    def kernel(x_ref, ys_ref, wt_ref, bt_ref, w1_ref, b1_ref, w2_ref, b2_ref,
               o_ref):
        # ---- Stage 1: ConvTranspose2d(2x2, s=2) == four per-phase 1x1 convs.
        #      P[a][b][d][i, j] == x_up[d, 2i+a, 2j+b]   (bias fused in).
        xs = [x_ref[0, ci].astype(f32) for ci in range(C_in)]     # (H, W) each
        P = [[[jnp.zeros((H, W), f32) + bt_ref[d] for d in range(C_t)]
              for _b in range(2)] for _a in range(2)]
        for ci in range(C_in):                                    # plane outer
            xp = xs[ci]
            for a in range(2):
                for b in range(2):
                    for d in range(C_t):                          # outputs inner
                        w = wt_ref[((a * 2 + b) * C_t + d) * C_in + ci]
                        P[a][b][d] = P[a][b][d] + w * xp

        # ---- Conceptual channel concat in phase space (never materialized).
        z_phase = [[P[a][b] +
                    [ys_ref[0, (a * 2 + b) * C_skip + c].astype(f32)
                     for c in range(C_skip)]
                    for b in range(2)] for a in range(2)]

        # ---- Stage 2: Conv2d(3x3, valid) + ReLU, per output parity (pa, qa).
        h1 = [[None, None], [None, None]]
        for pa in range(2):
            for qa in range(2):
                accs = [jnp.zeros((Hp1, Wp1), f32) + b1_ref[o]
                        for o in range(C_o)]
                for c in range(C_cat):                            # plane outer
                    for kh in range(3):
                        a, dh = (pa + kh) % 2, (pa + kh) // 2
                        for kw in range(3):
                            b, dw = (qa + kw) % 2, (qa + kw) // 2
                            tap = z_phase[a][b][c][dh:dh + Hp1, dw:dw + Wp1]
                            for o in range(C_o):                  # co inner
                                w = w1_ref[((o * C_cat + c) * 3 + kh) * 3 + kw]
                                accs[o] = accs[o] + w * tap
                h1[pa][qa] = [jnp.maximum(acc, 0.0) for acc in accs]

        # ---- Stage 3: Conv2d(3x3, valid) + ReLU, per output parity; store.
        for ra in range(2):
            for sa in range(2):
                accs = [jnp.zeros((Hp2, Wp2), f32) + b2_ref[o2]
                        for o2 in range(C_o)]
                for o in range(C_o):                              # plane outer
                    for kh in range(3):
                        a, dh = (ra + kh) % 2, (ra + kh) // 2
                        for kw in range(3):
                            b, dw = (sa + kw) % 2, (sa + kw) // 2
                            tap = h1[a][b][o][dh:dh + Hp2, dw:dw + Wp2]
                            for o2 in range(C_o):                 # co inner
                                w = w2_ref[((o2 * C_o + o) * 3 + kh) * 3 + kw]
                                accs[o2] = accs[o2] + w * tap
                for o2 in range(C_o):
                    o_ref[0, (ra * 2 + sa) * C_o + o2] = \
                        jnp.maximum(accs[o2], 0.0).astype(o_ref.dtype)

    return kernel


def expansive_block_forward(x, y, wt, bt, w1, b1, w2, b2):
    """Forward of ExpansiveBlock.
       x:  (N, C_in, H, W)      low-res features
       y:  (N, C_skip, Hy, Wy)  skip connection (center-cropped to 2H x 2W)
       wt: (C_in, C_t, 2, 2), bt: (C_t,)         -- ConvTranspose2d(k=2, s=2)
       w1: (C_o, C_t + C_skip, 3, 3), b1: (C_o,) -- conv1
       w2: (C_o, C_o, 3, 3),          b2: (C_o,) -- conv2
    """
    N, C_in, H, W = (int(s) for s in x.shape)
    C_t = int(wt.shape[1])
    C_skip = int(y.shape[1])
    C_o = int(w1.shape[0])
    H2, W2 = 2 * H, 2 * W
    Hy, Wy = int(y.shape[2]), int(y.shape[3])
    hs, ws = (Hy - H2) // 2, (Wy - W2) // 2      # static center-crop offsets
    Hp2, Wp2 = H - 2, W - 2                       # per-parity output size
    ho, wo = 2 * Hp2, 2 * Wp2                     # final output spatial size
    f32 = jnp.float32

    # --- tiny input-side prep (XLA): crop + space-to-depth of the skip tensor
    #     so the kernel reads its phase planes directly.
    y_c = y[:, :, hs:hs + H2, ws:ws + W2]
    ys = y_c.reshape(N, C_skip, H, 2, W, 2)
    ys = jnp.transpose(ys, (0, 3, 5, 1, 2, 4)).reshape(N, 4 * C_skip, H, W)

    # --- parameters flattened to SMEM-friendly 1-D f32.
    wt_s = jnp.transpose(wt, (2, 3, 1, 0)).reshape(-1).astype(f32)  # [a,b,d,ci]
    bt_s = bt.reshape(-1).astype(f32)
    w1_s = w1.reshape(-1).astype(f32)
    b1_s = b1.reshape(-1).astype(f32)
    w2_s = w2.reshape(-1).astype(f32)
    b2_s = b2.reshape(-1).astype(f32)

    kernel = _make_fused_kernel(C_in, C_t, C_skip, C_o, H, W)

    smem = lambda: pl.BlockSpec(memory_space=pltpu.MemorySpace.SMEM)
    out_phase = pl.pallas_call(
        kernel,
        out_shape=jax.ShapeDtypeStruct((N, 4 * C_o, Hp2, Wp2), x.dtype),
        grid_spec=pltpu.PrefetchScalarGridSpec(
            num_scalar_prefetch=0,
            grid=(N,),
            in_specs=[
                pl.BlockSpec((1, C_in, H, W), lambda n: (n, 0, 0, 0)),
                pl.BlockSpec((1, 4 * C_skip, H, W), lambda n: (n, 0, 0, 0)),
                smem(), smem(), smem(), smem(), smem(), smem(),
            ],
            out_specs=pl.BlockSpec((1, 4 * C_o, Hp2, Wp2),
                                   lambda n: (n, 0, 0, 0)),
        ),
        compiler_params=pltpu.CompilerParams(
            dimension_semantics=("parallel",),
        ),
    )(x, ys, wt_s, bt_s, w1_s, b1_s, w2_s, b2_s)

    # --- tiny output-side depth-to-space (XLA) of the final tensor only.
    out = out_phase.reshape(N, 2, 2, C_o, Hp2, Wp2)
    out = jnp.transpose(out, (0, 3, 4, 1, 5, 2)).reshape(N, C_o, ho, wo)
    return out


def _reference_forward(x, y, wt, bt, w1, b1, w2, b2):
    """Pure-JAX reference of the PyTorch module semantics."""
    N, C_in, H, W = x.shape
    C_t = wt.shape[1]
    t = jnp.einsum("ncij,cdab->ndiajb", x, wt)
    x_up = t.reshape(N, C_t, 2 * H, 2 * W) + bt[None, :, None, None]
    Hy, Wy = y.shape[2], y.shape[3]
    hs, ws = (Hy - 2 * H) // 2, (Wy - 2 * W) // 2
    y_c = y[:, :, hs:hs + 2 * H, ws:ws + 2 * W]
    z = jnp.concatenate([x_up, y_c], axis=1)
    dn = ("NCHW", "OIHW", "NCHW")
    h = jax.lax.conv_general_dilated(z, w1, (1, 1), "VALID", dimension_numbers=dn)
    h = jnp.maximum(h + b1[None, :, None, None], 0.0)
    o = jax.lax.conv_general_dilated(h, w2, (1, 1), "VALID", dimension_numbers=dn)
    o = jnp.maximum(o + b2[None, :, None, None], 0.0)
    return o


if __name__ == "__main__":
    # ExpansiveBlock(in_channels=4, out_channels=2) at small shapes.
    in_ch, out_ch = 4, 2
    N, H, W = 2, 8, 8                 # low-res input, upsampled to 16x16
    C_skip = in_ch - out_ch           # skip channels so the concat has in_ch ch
    Hy, Wy = 20, 20                   # skip tensor, center-cropped to 16x16

    key = jax.random.PRNGKey(0)
    k = jax.random.split(key, 8)
    x = jax.random.normal(k[0], (N, in_ch, H, W), jnp.float32)
    y = jax.random.normal(k[1], (N, C_skip, Hy, Wy), jnp.float32)
    wt = jax.random.normal(k[2], (in_ch, out_ch, 2, 2), jnp.float32) * 0.2
    bt = jax.random.normal(k[3], (out_ch,), jnp.float32) * 0.1
    w1 = jax.random.normal(k[4], (out_ch, in_ch, 3, 3), jnp.float32) * 0.2
    b1 = jax.random.normal(k[5], (out_ch,), jnp.float32) * 0.1
    w2 = jax.random.normal(k[6], (out_ch, out_ch, 3, 3), jnp.float32) * 0.2
    b2 = jax.random.normal(k[7], (out_ch,), jnp.float32) * 0.1

    out = expansive_block_forward(x, y, wt, bt, w1, b1, w2, b2)
    out = jax.block_until_ready(out)

    ref = _reference_forward(x, y, wt, bt, w1, b1, w2, b2)
    assert out.shape == (N, out_ch, 2 * H - 4, 2 * W - 4), out.shape
    assert jnp.allclose(out, ref, atol=1e-4, rtol=1e-4), \
        float(jnp.max(jnp.abs(out - ref)))
    print("KERNEL_OK")
</pallas_src>

<mosaic_0001>
module attributes {stable_mosaic.version = 11 : i64} {
  func.func @kernel(%arg0: i32, %arg1: memref<1x4x8x8xf32, #tpu.memory_space<vmem>>, %arg2: memref<1x8x8x8xf32, #tpu.memory_space<vmem>>, %arg3: memref<32xf32, #tpu.memory_space<smem>>, %arg4: memref<2xf32, #tpu.memory_space<smem>>, %arg5: memref<72xf32, #tpu.memory_space<smem>>, %arg6: memref<2xf32, #tpu.memory_space<smem>>, %arg7: memref<36xf32, #tpu.memory_space<smem>>, %arg8: memref<2xf32, #tpu.memory_space<smem>>, %arg9: memref<1x8x6x6xf32, #tpu.memory_space<vmem>>) attributes {dimension_semantics = [#tpu.dimension_semantics<parallel>], iteration_bounds = array<i64: 2>, scalar_prefetch = 0 : i64, scratch_operands = 0 : i64, tpu.core_type = #tpu.core_type<tc>, window_params = [{transform_indices = @transform_0, window_bounds = array<i64: 1, 4, 8, 8>}, {transform_indices = @transform_1, window_bounds = array<i64: 1, 8, 8, 8>}, {transform_indices = @transform_2, window_bounds = array<i64: 32>}, {transform_indices = @transform_3, window_bounds = array<i64: 2>}, {transform_indices = @transform_4, window_bounds = array<i64: 72>}, {transform_indices = @transform_5, window_bounds = array<i64: 2>}, {transform_indices = @transform_6, window_bounds = array<i64: 36>}, {transform_indices = @transform_7, window_bounds = array<i64: 2>}, {transform_indices = @transform_8, window_bounds = array<i64: 1, 8, 6, 6>}]} {
    %c0 = arith.constant 0 : index
    %c0_0 = arith.constant 0 : index
    %c0_1 = arith.constant 0 : index
    %c0_2 = arith.constant 0 : index
    %0 = vector.load %arg1[%c0, %c0_0, %c0_1, %c0_2] : memref<1x4x8x8xf32, #tpu.memory_space<vmem>>, vector<1x1x8x8xf32>
    %1 = vector.shape_cast %0 : vector<1x1x8x8xf32> to vector<8x8xf32>
    %c0_3 = arith.constant 0 : index
    %c1 = arith.constant 1 : index
    %c0_4 = arith.constant 0 : index
    %c0_5 = arith.constant 0 : index
    %2 = vector.load %arg1[%c0_3, %c1, %c0_4, %c0_5] : memref<1x4x8x8xf32, #tpu.memory_space<vmem>>, vector<1x1x8x8xf32>
    %3 = vector.shape_cast %2 : vector<1x1x8x8xf32> to vector<8x8xf32>
    %c0_6 = arith.constant 0 : index
    %c2 = arith.constant 2 : index
    %c0_7 = arith.constant 0 : index
    %c0_8 = arith.constant 0 : index
    %4 = vector.load %arg1[%c0_6, %c2, %c0_7, %c0_8] : memref<1x4x8x8xf32, #tpu.memory_space<vmem>>, vector<1x1x8x8xf32>
    %5 = vector.shape_cast %4 : vector<1x1x8x8xf32> to vector<8x8xf32>
    %c0_9 = arith.constant 0 : index
    %c3 = arith.constant 3 : index
    %c0_10 = arith.constant 0 : index
    %c0_11 = arith.constant 0 : index
    %6 = vector.load %arg1[%c0_9, %c3, %c0_10, %c0_11] : memref<1x4x8x8xf32, #tpu.memory_space<vmem>>, vector<1x1x8x8xf32>
    %7 = vector.shape_cast %6 : vector<1x1x8x8xf32> to vector<8x8xf32>
    %cst = arith.constant 0.000000e+00 : f32
    %8 = vector.broadcast %cst : f32 to vector<8x8xf32>
    %c0_12 = arith.constant 0 : index
    %9 = memref.load %arg4[%c0_12] : memref<2xf32, #tpu.memory_space<smem>>
    %10 = vector.broadcast %9 : f32 to vector<8x8xf32>
    %11 = arith.addf %8, %10 : vector<8x8xf32>
    %cst_13 = arith.constant 0.000000e+00 : f32
    %12 = vector.broadcast %cst_13 : f32 to vector<8x8xf32>
    %c1_14 = arith.constant 1 : index
    %13 = memref.load %arg4[%c1_14] : memref<2xf32, #tpu.memory_space<smem>>
    %14 = vector.broadcast %13 : f32 to vector<8x8xf32>
    %15 = arith.addf %12, %14 : vector<8x8xf32>
    %cst_15 = arith.constant 0.000000e+00 : f32
    %16 = vector.broadcast %cst_15 : f32 to vector<8x8xf32>
    %c0_16 = arith.constant 0 : index
    %17 = memref.load %arg4[%c0_16] : memref<2xf32, #tpu.memory_space<smem>>
    %18 = vector.broadcast %17 : f32 to vector<8x8xf32>
    %19 = arith.addf %16, %18 : vector<8x8xf32>
    %cst_17 = arith.constant 0.000000e+00 : f32
    %20 = vector.broadcast %cst_17 : f32 to vector<8x8xf32>
    %c1_18 = arith.constant 1 : index
    %21 = memref.load %arg4[%c1_18] : memref<2xf32, #tpu.memory_space<smem>>
    %22 = vector.broadcast %21 : f32 to vector<8x8xf32>
    %23 = arith.addf %20, %22 : vector<8x8xf32>
    %cst_19 = arith.constant 0.000000e+00 : f32
    %24 = vector.broadcast %cst_19 : f32 to vector<8x8xf32>
    %c0_20 = arith.constant 0 : index
    %25 = memref.load %arg4[%c0_20] : memref<2xf32, #tpu.memory_space<smem>>
    %26 = vector.broadcast %25 : f32 to vector<8x8xf32>
    %27 = arith.addf %24, %26 : vector<8x8xf32>
    %cst_21 = arith.constant 0.000000e+00 : f32
    %28 = vector.broadcast %cst_21 : f32 to vector<8x8xf32>
    %c1_22 = arith.constant 1 : index
    %29 = memref.load %arg4[%c1_22] : memref<2xf32, #tpu.memory_space<smem>>
    %30 = vector.broadcast %29 : f32 to vector<8x8xf32>
    %31 = arith.addf %28, %30 : vector<8x8xf32>
    %cst_23 = arith.constant 0.000000e+00 : f32
    %32 = vector.broadcast %cst_23 : f32 to vector<8x8xf32>
    %c0_24 = arith.constant 0 : index
    %33 = memref.load %arg4[%c0_24] : memref<2xf32, #tpu.memory_space<smem>>
    %34 = vector.broadcast %33 : f32 to vector<8x8xf32>
    %35 = arith.addf %32, %34 : vector<8x8xf32>
    %cst_25 = arith.constant 0.000000e+00 : f32
    %36 = vector.broadcast %cst_25 : f32 to vector<8x8xf32>
    %c1_26 = arith.constant 1 : index
    %37 = memref.load %arg4[%c1_26] : memref<2xf32, #tpu.memory_space<smem>>
    %38 = vector.broadcast %37 : f32 to vector<8x8xf32>
    %39 = arith.addf %36, %38 : vector<8x8xf32>
    %c0_27 = arith.constant 0 : index
    %40 = memref.load %arg3[%c0_27] : memref<32xf32, #tpu.memory_space<smem>>
    %41 = vector.broadcast %40 : f32 to vector<8x8xf32>
    %42 = arith.mulf %41, %1 : vector<8x8xf32>
    %43 = arith.addf %11, %42 : vector<8x8xf32>
    %c4 = arith.constant 4 : index
    %44 = memref.load %arg3[%c4] : memref<32xf32, #tpu.memory_space<smem>>
    %45 = vector.broadcast %44 : f32 to vector<8x8xf32>
    %46 = arith.mulf %45, %1 : vector<8x8xf32>
    %47 = arith.addf %15, %46 : vector<8x8xf32>
    %c8 = arith.constant 8 : index
    %48 = memref.load %arg3[%c8] : memref<32xf32, #tpu.memory_space<smem>>
    %49 = vector.broadcast %48 : f32 to vector<8x8xf32>
    %50 = arith.mulf %49, %1 : vector<8x8xf32>
    %51 = arith.addf %19, %50 : vector<8x8xf32>
    %c12 = arith.constant 12 : index
    %52 = memref.load %arg3[%c12] : memref<32xf32, #tpu.memory_space<smem>>
    %53 = vector.broadcast %52 : f32 to vector<8x8xf32>
    %54 = arith.mulf %53, %1 : vector<8x8xf32>
    %55 = arith.addf %23, %54 : vector<8x8xf32>
    %c16 = arith.constant 16 : index
    %56 = memref.load %arg3[%c16] : memref<32xf32, #tpu.memory_space<smem>>
    %57 = vector.broadcast %56 : f32 to vector<8x8xf32>
    %58 = arith.mulf %57, %1 : vector<8x8xf32>
    %59 = arith.addf %27, %58 : vector<8x8xf32>
    %c20 = arith.constant 20 : index
    %60 = memref.load %arg3[%c20] : memref<32xf32, #tpu.memory_space<smem>>
    %61 = vector.broadcast %60 : f32 to vector<8x8xf32>
    %62 = arith.mulf %61, %1 : vector<8x8xf32>
    %63 = arith.addf %31, %62 : vector<8x8xf32>
    %c24 = arith.constant 24 : index
    %64 = memref.load %arg3[%c24] : memref<32xf32, #tpu.memory_space<smem>>
    %65 = vector.broadcast %64 : f32 to vector<8x8xf32>
    %66 = arith.mulf %65, %1 : vector<8x8xf32>
    %67 = arith.addf %35, %66 : vector<8x8xf32>
    %c28 = arith.constant 28 : index
    %68 = memref.load %arg3[%c28] : memref<32xf32, #tpu.memory_space<smem>>
    %69 = vector.broadcast %68 : f32 to vector<8x8xf32>
    %70 = arith.mulf %69, %1 : vector<8x8xf32>
    %71 = arith.addf %39, %70 : vector<8x8xf32>
    %c1_28 = arith.constant 1 : index
    %72 = memref.load %arg3[%c1_28] : memref<32xf32, #tpu.memory_space<smem>>
    %73 = vector.broadcast %72 : f32 to vector<8x8xf32>
    %74 = arith.mulf %73, %3 : vector<8x8xf32>
    %75 = arith.addf %43, %74 : vector<8x8xf32>
    %c5 = arith.constant 5 : index
    %76 = memref.load %arg3[%c5] : memref<32xf32, #tpu.memory_space<smem>>
    %77 = vector.broadcast %76 : f32 to vector<8x8xf32>
    %78 = arith.mulf %77, %3 : vector<8x8xf32>
    %79 = arith.addf %47, %78 : vector<8x8xf32>
    %c9 = arith.constant 9 : index
    %80 = memref.load %arg3[%c9] : memref<32xf32, #tpu.memory_space<smem>>
    %81 = vector.broadcast %80 : f32 to vector<8x8xf32>
    %82 = arith.mulf %81, %3 : vector<8x8xf32>
    %83 = arith.addf %51, %82 : vector<8x8xf32>
    %c13 = arith.constant 13 : index
    %84 = memref.load %arg3[%c13] : memref<32xf32, #tpu.memory_space<smem>>
    %85 = vector.broadcast %84 : f32 to vector<8x8xf32>
    %86 = arith.mulf %85, %3 : vector<8x8xf32>
    %87 = arith.addf %55, %86 : vector<8x8xf32>
    %c17 = arith.constant 17 : index
    %88 = memref.load %arg3[%c17] : memref<32xf32, #tpu.memory_space<smem>>
    %89 = vector.broadcast %88 : f32 to vector<8x8xf32>
    %90 = arith.mulf %89, %3 : vector<8x8xf32>
    %91 = arith.addf %59, %90 : vector<8x8xf32>
    %c21 = arith.constant 21 : index
    %92 = memref.load %arg3[%c21] : memref<32xf32, #tpu.memory_space<smem>>
    %93 = vector.broadcast %92 : f32 to vector<8x8xf32>
    %94 = arith.mulf %93, %3 : vector<8x8xf32>
    %95 = arith.addf %63, %94 : vector<8x8xf32>
    %c25 = arith.constant 25 : index
    %96 = memref.load %arg3[%c25] : memref<32xf32, #tpu.memory_space<smem>>
    %97 = vector.broadcast %96 : f32 to vector<8x8xf32>
    %98 = arith.mulf %97, %3 : vector<8x8xf32>
    %99 = arith.addf %67, %98 : vector<8x8xf32>
    %c29 = arith.constant 29 : index
    %100 = memref.load %arg3[%c29] : memref<32xf32, #tpu.memory_space<smem>>
    %101 = vector.broadcast %100 : f32 to vector<8x8xf32>
    %102 = arith.mulf %101, %3 : vector<8x8xf32>
    %103 = arith.addf %71, %102 : vector<8x8xf32>
    %c2_29 = arith.constant 2 : index
    %104 = memref.load %arg3[%c2_29] : memref<32xf32, #tpu.memory_space<smem>>
    %105 = vector.broadcast %104 : f32 to vector<8x8xf32>
    %106 = arith.mulf %105, %5 : vector<8x8xf32>
    %107 = arith.addf %75, %106 : vector<8x8xf32>
    %c6 = arith.constant 6 : index
    %108 = memref.load %arg3[%c6] : memref<32xf32, #tpu.memory_space<smem>>
    %109 = vector.broadcast %108 : f32 to vector<8x8xf32>
    %110 = arith.mulf %109, %5 : vector<8x8xf32>
    %111 = arith.addf %79, %110 : vector<8x8xf32>
    %c10 = arith.constant 10 : index
    %112 = memref.load %arg3[%c10] : memref<32xf32, #tpu.memory_space<smem>>
    %113 = vector.broadcast %112 : f32 to vector<8x8xf32>
    %114 = arith.mulf %113, %5 : vector<8x8xf32>
    %115 = arith.addf %83, %114 : vector<8x8xf32>
    %c14 = arith.constant 14 : index
    %116 = memref.load %arg3[%c14] : memref<32xf32, #tpu.memory_space<smem>>
    %117 = vector.broadcast %116 : f32 to vector<8x8xf32>
    %118 = arith.mulf %117, %5 : vector<8x8xf32>
    %119 = arith.addf %87, %118 : vector<8x8xf32>
    %c18 = arith.constant 18 : index
    %120 = memref.load %arg3[%c18] : memref<32xf32, #tpu.memory_space<smem>>
    %121 = vector.broadcast %120 : f32 to vector<8x8xf32>
    %122 = arith.mulf %121, %5 : vector<8x8xf32>
    %123 = arith.addf %91, %122 : vector<8x8xf32>
    %c22 = arith.constant 22 : index
    %124 = memref.load %arg3[%c22] : memref<32xf32, #tpu.memory_space<smem>>
    %125 = vector.broadcast %124 : f32 to vector<8x8xf32>
    %126 = arith.mulf %125, %5 : vector<8x8xf32>
    %127 = arith.addf %95, %126 : vector<8x8xf32>
    %c26 = arith.constant 26 : index
    %128 = memref.load %arg3[%c26] : memref<32xf32, #tpu.memory_space<smem>>
    %129 = vector.broadcast %128 : f32 to vector<8x8xf32>
    %130 = arith.mulf %129, %5 : vector<8x8xf32>
    %131 = arith.addf %99, %130 : vector<8x8xf32>
    %c30 = arith.constant 30 : index
    %132 = memref.load %arg3[%c30] : memref<32xf32, #tpu.memory_space<smem>>
    %133 = vector.broadcast %132 : f32 to vector<8x8xf32>
    %134 = arith.mulf %133, %5 : vector<8x8xf32>
    %135 = arith.addf %103, %134 : vector<8x8xf32>
    %c3_30 = arith.constant 3 : index
    %136 = memref.load %arg3[%c3_30] : memref<32xf32, #tpu.memory_space<smem>>
    %137 = vector.broadcast %136 : f32 to vector<8x8xf32>
    %138 = arith.mulf %137, %7 : vector<8x8xf32>
    %139 = arith.addf %107, %138 : vector<8x8xf32>
    %c7 = arith.constant 7 : index
    %140 = memref.load %arg3[%c7] : memref<32xf32, #tpu.memory_space<smem>>
    %141 = vector.broadcast %140 : f32 to vector<8x8xf32>
    %142 = arith.mulf %141, %7 : vector<8x8xf32>
    %143 = arith.addf %111, %142 : vector<8x8xf32>
    %c11 = arith.constant 11 : index
    %144 = memref.load %arg3[%c11] : memref<32xf32, #tpu.memory_space<smem>>
    %145 = vector.broadcast %144 : f32 to vector<8x8xf32>
    %146 = arith.mulf %145, %7 : vector<8x8xf32>
    %147 = arith.addf %115, %146 : vector<8x8xf32>
    %c15 = arith.constant 15 : index
    %148 = memref.load %arg3[%c15] : memref<32xf32, #tpu.memory_space<smem>>
    %149 = vector.broadcast %148 : f32 to vector<8x8xf32>
    %150 = arith.mulf %149, %7 : vector<8x8xf32>
    %151 = arith.addf %119, %150 : vector<8x8xf32>
    %c19 = arith.constant 19 : index
    %152 = memref.load %arg3[%c19] : memref<32xf32, #tpu.memory_space<smem>>
    %153 = vector.broadcast %152 : f32 to vector<8x8xf32>
    %154 = arith.mulf %153, %7 : vector<8x8xf32>
    %155 = arith.addf %123, %154 : vector<8x8xf32>
    %c23 = arith.constant 23 : index
    %156 = memref.load %arg3[%c23] : memref<32xf32, #tpu.memory_space<smem>>
    %157 = vector.broadcast %156 : f32 to vector<8x8xf32>
    %158 = arith.mulf %157, %7 : vector<8x8xf32>
    %159 = arith.addf %127, %158 : vector<8x8xf32>
    %c27 = arith.constant 27 : index
    %160 = memref.load %arg3[%c27] : memref<32xf32, #tpu.memory_space<smem>>
    %161 = vector.broadcast %160 : f32 to vector<8x8xf32>
    %162 = arith.mulf %161, %7 : vector<8x8xf32>
    %163 = arith.addf %131, %162 : vector<8x8xf32>
    %c31 = arith.constant 31 : index
    %164 = memref.load %arg3[%c31] : memref<32xf32, #tpu.memory_space<smem>>
    %165 = vector.broadcast %164 : f32 to vector<8x8xf32>
    %166 = arith.mulf %165, %7 : vector<8x8xf32>
    %167 = arith.addf %135, %166 : vector<8x8xf32>
    %c0_31 = arith.constant 0 : index
    %c0_32 = arith.constant 0 : index
    %c0_33 = arith.constant 0 : index
    %c0_34 = arith.constant 0 : index
    %168 = vector.load %arg2[%c0_31, %c0_32, %c0_33, %c0_34] : memref<1x8x8x8xf32, #tpu.memory_space<vmem>>, vector<1x1x8x8xf32>
    %169 = vector.shape_cast %168 : vector<1x1x8x8xf32> to vector<8x8xf32>
    %c0_35 = arith.constant 0 : index
    %c1_36 = arith.constant 1 : index
    %c0_37 = arith.constant 0 : index
    %c0_38 = arith.constant 0 : index
    %170 = vector.load %arg2[%c0_35, %c1_36, %c0_37, %c0_38] : memref<1x8x8x8xf32, #tpu.memory_space<vmem>>, vector<1x1x8x8xf32>
    %171 = vector.shape_cast %170 : vector<1x1x8x8xf32> to vector<8x8xf32>
    %c0_39 = arith.constant 0 : index
    %c2_40 = arith.constant 2 : index
    %c0_41 = arith.constant 0 : index
    %c0_42 = arith.constant 0 : index
    %172 = vector.load %arg2[%c0_39, %c2_40, %c0_41, %c0_42] : memref<1x8x8x8xf32, #tpu.memory_space<vmem>>, vector<1x1x8x8xf32>
    %173 = vector.shape_cast %172 : vector<1x1x8x8xf32> to vector<8x8xf32>
    %c0_43 = arith.constant 0 : index
    %c3_44 = arith.constant 3 : index
    %c0_45 = arith.constant 0 : index
    %c0_46 = arith.constant 0 : index
    %174 = vector.load %arg2[%c0_43, %c3_44, %c0_45, %c0_46] : memref<1x8x8x8xf32, #tpu.memory_space<vmem>>, vector<1x1x8x8xf32>
    %175 = vector.shape_cast %174 : vector<1x1x8x8xf32> to vector<8x8xf32>
    %c0_47 = arith.constant 0 : index
    %c4_48 = arith.constant 4 : index
    %c0_49 = arith.constant 0 : index
    %c0_50 = arith.constant 0 : index
    %176 = vector.load %arg2[%c0_47, %c4_48, %c0_49, %c0_50] : memref<1x8x8x8xf32, #tpu.memory_space<vmem>>, vector<1x1x8x8xf32>
    %177 = vector.shape_cast %176 : vector<1x1x8x8xf32> to vector<8x8xf32>
    %c0_51 = arith.constant 0 : index
    %c5_52 = arith.constant 5 : index
    %c0_53 = arith.constant 0 : index
    %c0_54 = arith.constant 0 : index
    %178 = vector.load %arg2[%c0_51, %c5_52, %c0_53, %c0_54] : memref<1x8x8x8xf32, #tpu.memory_space<vmem>>, vector<1x1x8x8xf32>
    %179 = vector.shape_cast %178 : vector<1x1x8x8xf32> to vector<8x8xf32>
    %c0_55 = arith.constant 0 : index
    %c6_56 = arith.constant 6 : index
    %c0_57 = arith.constant 0 : index
    %c0_58 = arith.constant 0 : index
    %180 = vector.load %arg2[%c0_55, %c6_56, %c0_57, %c0_58] : memref<1x8x8x8xf32, #tpu.memory_space<vmem>>, vector<1x1x8x8xf32>
    %181 = vector.shape_cast %180 : vector<1x1x8x8xf32> to vector<8x8xf32>
    %c0_59 = arith.constant 0 : index
    %c7_60 = arith.constant 7 : index
    %c0_61 = arith.constant 0 : index
    %c0_62 = arith.constant 0 : index
    %182 = vector.load %arg2[%c0_59, %c7_60, %c0_61, %c0_62] : memref<1x8x8x8xf32, #tpu.memory_space<vmem>>, vector<1x1x8x8xf32>
    %183 = vector.shape_cast %182 : vector<1x1x8x8xf32> to vector<8x8xf32>
    %cst_63 = arith.constant 0.000000e+00 : f32
    %184 = vector.broadcast %cst_63 : f32 to vector<7x7xf32>
    %c0_64 = arith.constant 0 : index
    %185 = memref.load %arg6[%c0_64] : memref<2xf32, #tpu.memory_space<smem>>
    %186 = vector.broadcast %185 : f32 to vector<7x7xf32>
    %187 = arith.addf %184, %186 : vector<7x7xf32>
    %cst_65 = arith.constant 0.000000e+00 : f32
    %188 = vector.broadcast %cst_65 : f32 to vector<7x7xf32>
    %c1_66 = arith.constant 1 : index
    %189 = memref.load %arg6[%c1_66] : memref<2xf32, #tpu.memory_space<smem>>
    %190 = vector.broadcast %189 : f32 to vector<7x7xf32>
    %191 = arith.addf %188, %190 : vector<7x7xf32>
    %192 = vector.extract_strided_slice %139 {offsets = [0, 0], sizes = [7, 7], strides = [1, 1]} : vector<8x8xf32> to vector<7x7xf32>
    %c0_67 = arith.constant 0 : index
    %193 = memref.load %arg5[%c0_67] : memref<72xf32, #tpu.memory_space<smem>>
    %194 = vector.broadcast %193 : f32 to vector<7x7xf32>
    %195 = arith.mulf %194, %192 : vector<7x7xf32>
    %196 = arith.addf %187, %195 : vector<7x7xf32>
    %c36 = arith.constant 36 : index
    %197 = memref.load %arg5[%c36] : memref<72xf32, #tpu.memory_space<smem>>
    %198 = vector.broadcast %197 : f32 to vector<7x7xf32>
    %199 = arith.mulf %198, %192 : vector<7x7xf32>
    %200 = arith.addf %191, %199 : vector<7x7xf32>
    %201 = vector.extract_strided_slice %147 {offsets = [0, 0], sizes = [7, 7], strides = [1, 1]} : vector<8x8xf32> to vector<7x7xf32>
    %c1_68 = arith.constant 1 : index
    %202 = memref.load %arg5[%c1_68] : memref<72xf32, #tpu.memory_space<smem>>
    %203 = vector.broadcast %202 : f32 to vector<7x7xf32>
    %204 = arith.mulf %203, %201 : vector<7x7xf32>
    %205 = arith.addf %196, %204 : vector<7x7xf32>
    %c37 = arith.constant 37 : index
    %206 = memref.load %arg5[%c37] : memref<72xf32, #tpu.memory_space<smem>>
    %207 = vector.broadcast %206 : f32 to vector<7x7xf32>
    %208 = arith.mulf %207, %201 : vector<7x7xf32>
    %209 = arith.addf %200, %208 : vector<7x7xf32>
    %210 = vector.extract_strided_slice %139 {offsets = [0, 1], sizes = [7, 7], strides = [1, 1]} : vector<8x8xf32> to vector<7x7xf32>
    %c2_69 = arith.constant 2 : index
    %211 = memref.load %arg5[%c2_69] : memref<72xf32, #tpu.memory_space<smem>>
    %212 = vector.broadcast %211 : f32 to vector<7x7xf32>
    %213 = arith.mulf %212, %210 : vector<7x7xf32>
    %214 = arith.addf %205, %213 : vector<7x7xf32>
    %c38 = arith.constant 38 : index
    %215 = memref.load %arg5[%c38] : memref<72xf32, #tpu.memory_space<smem>>
    %216 = vector.broadcast %215 : f32 to vector<7x7xf32>
    %217 = arith.mulf %216, %210 : vector<7x7xf32>
    %218 = arith.addf %209, %217 : vector<7x7xf32>
    %219 = vector.extract_strided_slice %155 {offsets = [0, 0], sizes = [7, 7], strides = [1, 1]} : vector<8x8xf32> to vector<7x7xf32>
    %c3_70 = arith.constant 3 : index
    %220 = memref.load %arg5[%c3_70] : memref<72xf32, #tpu.memory_space<smem>>
    %221 = vector.broadcast %220 : f32 to vector<7x7xf32>
    %222 = arith.mulf %221, %219 : vector<7x7xf32>
    %223 = arith.addf %214, %222 : vector<7x7xf32>
    %c39 = arith.constant 39 : index
    %224 = memref.load %arg5[%c39] : memref<72xf32, #tpu.memory_space<smem>>
    %225 = vector.broadcast %224 : f32 to vector<7x7xf32>
    %226 = arith.mulf %225, %219 : vector<7x7xf32>
    %227 = arith.addf %218, %226 : vector<7x7xf32>
    %228 = vector.extract_strided_slice %163 {offsets = [0, 0], sizes = [7, 7], strides = [1, 1]} : vector<8x8xf32> to vector<7x7xf32>
    %c4_71 = arith.constant 4 : index
    %229 = memref.load %arg5[%c4_71] : memref<72xf32, #tpu.memory_space<smem>>
    %230 = vector.broadcast %229 : f32 to vector<7x7xf32>
    %231 = arith.mulf %230, %228 : vector<7x7xf32>
    %232 = arith.addf %223, %231 : vector<7x7xf32>
    %c40 = arith.constant 40 : index
    %233 = memref.load %arg5[%c40] : memref<72xf32, #tpu.memory_space<smem>>
    %234 = vector.broadcast %233 : f32 to vector<7x7xf32>
    %235 = arith.mulf %234, %228 : vector<7x7xf32>
    %236 = arith.addf %227, %235 : vector<7x7xf32>
    %237 = vector.extract_strided_slice %155 {offsets = [0, 1], sizes = [7, 7], strides = [1, 1]} : vector<8x8xf32> to vector<7x7xf32>
    %c5_72 = arith.constant 5 : index
    %238 = memref.load %arg5[%c5_72] : memref<72xf32, #tpu.memory_space<smem>>
    %239 = vector.broadcast %238 : f32 to vector<7x7xf32>
    %240 = arith.mulf %239, %237 : vector<7x7xf32>
    %241 = arith.addf %232, %240 : vector<7x7xf32>
    %c41 = arith.constant 41 : index
    %242 = memref.load %arg5[%c41] : memref<72xf32, #tpu.memory_space<smem>>
    %243 = vector.broadcast %242 : f32 to vector<7x7xf32>
    %244 = arith.mulf %243, %237 : vector<7x7xf32>
    %245 = arith.addf %236, %244 : vector<7x7xf32>
    %246 = vector.extract_strided_slice %139 {offsets = [1, 0], sizes = [7, 7], strides = [1, 1]} : vector<8x8xf32> to vector<7x7xf32>
    %c6_73 = arith.constant 6 : index
    %247 = memref.load %arg5[%c6_73] : memref<72xf32, #tpu.memory_space<smem>>
    %248 = vector.broadcast %247 : f32 to vector<7x7xf32>
    %249 = arith.mulf %248, %246 : vector<7x7xf32>
    %250 = arith.addf %241, %249 : vector<7x7xf32>
    %c42 = arith.constant 42 : index
    %251 = memref.load %arg5[%c42] : memref<72xf32, #tpu.memory_space<smem>>
    %252 = vector.broadcast %251 : f32 to vector<7x7xf32>
    %253 = arith.mulf %252, %246 : vector<7x7xf32>
    %254 = arith.addf %245, %253 : vector<7x7xf32>
    %255 = vector.extract_strided_slice %147 {offsets = [1, 0], sizes = [7, 7], strides = [1, 1]} : vector<8x8xf32> to vector<7x7xf32>
    %c7_74 = arith.constant 7 : index
    %256 = memref.load %arg5[%c7_74] : memref<72xf32, #tpu.memory_space<smem>>
    %257 = vector.broadcast %256 : f32 to vector<7x7xf32>
    %258 = arith.mulf %257, %255 : vector<7x7xf32>
    %259 = arith.addf %250, %258 : vector<7x7xf32>
    %c43 = arith.constant 43 : index
    %260 = memref.load %arg5[%c43] : memref<72xf32, #tpu.memory_space<smem>>
    %261 = vector.broadcast %260 : f32 to vector<7x7xf32>
    %262 = arith.mulf %261, %255 : vector<7x7xf32>
    %263 = arith.addf %254, %262 : vector<7x7xf32>
    %264 = vector.extract_strided_slice %139 {offsets = [1, 1], sizes = [7, 7], strides = [1, 1]} : vector<8x8xf32> to vector<7x7xf32>
    %c8_75 = arith.constant 8 : index
    %265 = memref.load %arg5[%c8_75] : memref<72xf32, #tpu.memory_space<smem>>
    %266 = vector.broadcast %265 : f32 to vector<7x7xf32>
    %267 = arith.mulf %266, %264 : vector<7x7xf32>
    %268 = arith.addf %259, %267 : vector<7x7xf32>
    %c44 = arith.constant 44 : index
    %269 = memref.load %arg5[%c44] : memref<72xf32, #tpu.memory_space<smem>>
    %270 = vector.broadcast %269 : f32 to vector<7x7xf32>
    %271 = arith.mulf %270, %264 : vector<7x7xf32>
    %272 = arith.addf %263, %271 : vector<7x7xf32>
    %273 = vector.extract_strided_slice %143 {offsets = [0, 0], sizes = [7, 7], strides = [1, 1]} : vector<8x8xf32> to vector<7x7xf32>
    %c9_76 = arith.constant 9 : index
    %274 = memref.load %arg5[%c9_76] : memref<72xf32, #tpu.memory_space<smem>>
    %275 = vector.broadcast %274 : f32 to vector<7x7xf32>
    %276 = arith.mulf %275, %273 : vector<7x7xf32>
    %277 = arith.addf %268, %276 : vector<7x7xf32>
    %c45 = arith.constant 45 : index
    %278 = memref.load %arg5[%c45] : memref<72xf32, #tpu.memory_space<smem>>
    %279 = vector.broadcast %278 : f32 to vector<7x7xf32>
    %280 = arith.mulf %279, %273 : vector<7x7xf32>
    %281 = arith.addf %272, %280 : vector<7x7xf32>
    %282 = vector.extract_strided_slice %151 {offsets = [0, 0], sizes = [7, 7], strides = [1, 1]} : vector<8x8xf32> to vector<7x7xf32>
    %c10_77 = arith.constant 10 : index
    %283 = memref.load %arg5[%c10_77] : memref<72xf32, #tpu.memory_space<smem>>
    %284 = vector.broadcast %283 : f32 to vector<7x7xf32>
    %285 = arith.mulf %284, %282 : vector<7x7xf32>
    %286 = arith.addf %277, %285 : vector<7x7xf32>
    %c46 = arith.constant 46 : index
    %287 = memref.load %arg5[%c46] : memref<72xf32, #tpu.memory_space<smem>>
    %288 = vector.broadcast %287 : f32 to vector<7x7xf32>
    %289 = arith.mulf %288, %282 : vector<7x7xf32>
    %290 = arith.addf %281, %289 : vector<7x7xf32>
    %291 = vector.extract_strided_slice %143 {offsets = [0, 1], sizes = [7, 7], strides = [1, 1]} : vector<8x8xf32> to vector<7x7xf32>
    %c11_78 = arith.constant 11 : index
    %292 = memref.load %arg5[%c11_78] : memref<72xf32, #tpu.memory_space<smem>>
    %293 = vector.broadcast %292 : f32 to vector<7x7xf32>
    %294 = arith.mulf %293, %291 : vector<7x7xf32>
    %295 = arith.addf %286, %294 : vector<7x7xf32>
    %c47 = arith.constant 47 : index
    %296 = memref.load %arg5[%c47] : memref<72xf32, #tpu.memory_space<smem>>
    %297 = vector.broadcast %296 : f32 to vector<7x7xf32>
    %298 = arith.mulf %297, %291 : vector<7x7xf32>
    %299 = arith.addf %290, %298 : vector<7x7xf32>
    %300 = vector.extract_strided_slice %159 {offsets = [0, 0], sizes = [7, 7], strides = [1, 1]} : vector<8x8xf32> to vector<7x7xf32>
    %c12_79 = arith.constant 12 : index
    %301 = memref.load %arg5[%c12_79] : memref<72xf32, #tpu.memory_space<smem>>
    %302 = vector.broadcast %301 : f32 to vector<7x7xf32>
    %303 = arith.mulf %302, %300 : vector<7x7xf32>
    %304 = arith.addf %295, %303 : vector<7x7xf32>
    %c48 = arith.constant 48 : index
    %305 = memref.load %arg5[%c48] : memref<72xf32, #tpu.memory_space<smem>>
    %306 = vector.broadcast %305 : f32 to vector<7x7xf32>
    %307 = arith.mulf %306, %300 : vector<7x7xf32>
    %308 = arith.addf %299, %307 : vector<7x7xf32>
    %309 = vector.extract_strided_slice %167 {offsets = [0, 0], sizes = [7, 7], strides = [1, 1]} : vector<8x8xf32> to vector<7x7xf32>
    %c13_80 = arith.constant 13 : index
    %310 = memref.load %arg5[%c13_80] : memref<72xf32, #tpu.memory_space<smem>>
    %311 = vector.broadcast %310 : f32 to vector<7x7xf32>
    %312 = arith.mulf %311, %309 : vector<7x7xf32>
    %313 = arith.addf %304, %312 : vector<7x7xf32>
    %c49 = arith.constant 49 : index
    %314 = memref.load %arg5[%c49] : memref<72xf32, #tpu.memory_space<smem>>
    %315 = vector.broadcast %314 : f32 to vector<7x7xf32>
    %316 = arith.mulf %315, %309 : vector<7x7xf32>
    %317 = arith.addf %308, %316 : vector<7x7xf32>
    %318 = vector.extract_strided_slice %159 {offsets = [0, 1], sizes = [7, 7], strides = [1, 1]} : vector<8x8xf32> to vector<7x7xf32>
    %c14_81 = arith.constant 14 : index
    %319 = memref.load %arg5[%c14_81] : memref<72xf32, #tpu.memory_space<smem>>
    %320 = vector.broadcast %319 : f32 to vector<7x7xf32>
    %321 = arith.mulf %320, %318 : vector<7x7xf32>
    %322 = arith.addf %313, %321 : vector<7x7xf32>
    %c50 = arith.constant 50 : index
    %323 = memref.load %arg5[%c50] : memref<72xf32, #tpu.memory_space<smem>>
    %324 = vector.broadcast %323 : f32 to vector<7x7xf32>
    %325 = arith.mulf %324, %318 : vector<7x7xf32>
    %326 = arith.addf %317, %325 : vector<7x7xf32>
    %327 = vector.extract_strided_slice %143 {offsets = [1, 0], sizes = [7, 7], strides = [1, 1]} : vector<8x8xf32> to vector<7x7xf32>
    %c15_82 = arith.constant 15 : index
    %328 = memref.load %arg5[%c15_82] : memref<72xf32, #tpu.memory_space<smem>>
    %329 = vector.broadcast %328 : f32 to vector<7x7xf32>
    %330 = arith.mulf %329, %327 : vector<7x7xf32>
    %331 = arith.addf %322, %330 : vector<7x7xf32>
    %c51 = arith.constant 51 : index
    %332 = memref.load %arg5[%c51] : memref<72xf32, #tpu.memory_space<smem>>
    %333 = vector.broadcast %332 : f32 to vector<7x7xf32>
    %334 = arith.mulf %333, %327 : vector<7x7xf32>
    %335 = arith.addf %326, %334 : vector<7x7xf32>
    %336 = vector.extract_strided_slice %151 {offsets = [1, 0], sizes = [7, 7], strides = [1, 1]} : vector<8x8xf32> to vector<7x7xf32>
    %c16_83 = arith.constant 16 : index
    %337 = memref.load %arg5[%c16_83] : memref<72xf32, #tpu.memory_space<smem>>
    %338 = vector.broadcast %337 : f32 to vector<7x7xf32>
    %339 = arith.mulf %338, %336 : vector<7x7xf32>
    %340 = arith.addf %331, %339 : vector<7x7xf32>
    %c52 = arith.constant 52 : index
    %341 = memref.load %arg5[%c52] : memref<72xf32, #tpu.memory_space<smem>>
    %342 = vector.broadcast %341 : f32 to vector<7x7xf32>
    %343 = arith.mulf %342, %336 : vector<7x7xf32>
    %344 = arith.addf %335, %343 : vector<7x7xf32>
    %345 = vector.extract_strided_slice %143 {offsets = [1, 1], sizes = [7, 7], strides = [1, 1]} : vector<8x8xf32> to vector<7x7xf32>
    %c17_84 = arith.constant 17 : index
    %346 = memref.load %arg5[%c17_84] : memref<72xf32, #tpu.memory_space<smem>>
    %347 = vector.broadcast %346 : f32 to vector<7x7xf32>
    %348 = arith.mulf %347, %345 : vector<7x7xf32>
    %349 = arith.addf %340, %348 : vector<7x7xf32>
    %c53 = arith.constant 53 : index
    %350 = memref.load %arg5[%c53] : memref<72xf32, #tpu.memory_space<smem>>
    %351 = vector.broadcast %350 : f32 to vector<7x7xf32>
    %352 = arith.mulf %351, %345 : vector<7x7xf32>
    %353 = arith.addf %344, %352 : vector<7x7xf32>
    %354 = vector.extract_strided_slice %169 {offsets = [0, 0], sizes = [7, 7], strides = [1, 1]} : vector<8x8xf32> to vector<7x7xf32>
    %c18_85 = arith.constant 18 : index
    %355 = memref.load %arg5[%c18_85] : memref<72xf32, #tpu.memory_space<smem>>
    %356 = vector.broadcast %355 : f32 to vector<7x7xf32>
    %357 = arith.mulf %356, %354 : vector<7x7xf32>
    %358 = arith.addf %349, %357 : vector<7x7xf32>
    %c54 = arith.constant 54 : index
    %359 = memref.load %arg5[%c54] : memref<72xf32, #tpu.memory_space<smem>>
    %360 = vector.broadcast %359 : f32 to vector<7x7xf32>
    %361 = arith.mulf %360, %354 : vector<7x7xf32>
    %362 = arith.addf %353, %361 : vector<7x7xf32>
    %363 = vector.extract_strided_slice %173 {offsets = [0, 0], sizes = [7, 7], strides = [1, 1]} : vector<8x8xf32> to vector<7x7xf32>
    %c19_86 = arith.constant 19 : index
    %364 = memref.load %arg5[%c19_86] : memref<72xf32, #tpu.memory_space<smem>>
    %365 = vector.broadcast %364 : f32 to vector<7x7xf32>
    %366 = arith.mulf %365, %363 : vector<7x7xf32>
    %367 = arith.addf %358, %366 : vector<7x7xf32>
    %c55 = arith.constant 55 : index
    %368 = memref.load %arg5[%c55] : memref<72xf32, #tpu.memory_space<smem>>
    %369 = vector.broadcast %368 : f32 to vector<7x7xf32>
    %370 = arith.mulf %369, %363 : vector<7x7xf32>
    %371 = arith.addf %362, %370 : vector<7x7xf32>
    %372 = vector.extract_strided_slice %169 {offsets = [0, 1], sizes = [7, 7], strides = [1, 1]} : vector<8x8xf32> to vector<7x7xf32>
    %c20_87 = arith.constant 20 : index
    %373 = memref.load %arg5[%c20_87] : memref<72xf32, #tpu.memory_space<smem>>
    %374 = vector.broadcast %373 : f32 to vector<7x7xf32>
    %375 = arith.mulf %374, %372 : vector<7x7xf32>
    %376 = arith.addf %367, %375 : vector<7x7xf32>
    %c56 = arith.constant 56 : index
    %377 = memref.load %arg5[%c56] : memref<72xf32, #tpu.memory_space<smem>>
    %378 = vector.broadcast %377 : f32 to vector<7x7xf32>
    %379 = arith.mulf %378, %372 : vector<7x7xf32>
    %380 = arith.addf %371, %379 : vector<7x7xf32>
    %381 = vector.extract_strided_slice %177 {offsets = [0, 0], sizes = [7, 7], strides = [1, 1]} : vector<8x8xf32> to vector<7x7xf32>
    %c21_88 = arith.constant 21 : index
    %382 = memref.load %arg5[%c21_88] : memref<72xf32, #tpu.memory_space<smem>>
    %383 = vector.broadcast %382 : f32 to vector<7x7xf32>
    %384 = arith.mulf %383, %381 : vector<7x7xf32>
    %385 = arith.addf %376, %384 : vector<7x7xf32>
    %c57 = arith.constant 57 : index
    %386 = memref.load %arg5[%c57] : memref<72xf32, #tpu.memory_space<smem>>
    %387 = vector.broadcast %386 : f32 to vector<7x7xf32>
    %388 = arith.mulf %387, %381 : vector<7x7xf32>
    %389 = arith.addf %380, %388 : vector<7x7xf32>
    %390 = vector.extract_strided_slice %181 {offsets = [0, 0], sizes = [7, 7], strides = [1, 1]} : vector<8x8xf32> to vector<7x7xf32>
    %c22_89 = arith.constant 22 : index
    %391 = memref.load %arg5[%c22_89] : memref<72xf32, #tpu.memory_space<smem>>
    %392 = vector.broadcast %391 : f32 to vector<7x7xf32>
    %393 = arith.mulf %392, %390 : vector<7x7xf32>
    %394 = arith.addf %385, %393 : vector<7x7xf32>
    %c58 = arith.constant 58 : index
    %395 = memref.load %arg5[%c58] : memref<72xf32, #tpu.memory_space<smem>>
    %396 = vector.broadcast %395 : f32 to vector<7x7xf32>
    %397 = arith.mulf %396, %390 : vector<7x7xf32>
    %398 = arith.addf %389, %397 : vector<7x7xf32>
    %399 = vector.extract_strided_slice %177 {offsets = [0, 1], sizes = [7, 7], strides = [1, 1]} : vector<8x8xf32> to vector<7x7xf32>
    %c23_90 = arith.constant 23 : index
    %400 = memref.load %arg5[%c23_90] : memref<72xf32, #tpu.memory_space<smem>>
    %401 = vector.broadcast %400 : f32 to vector<7x7xf32>
    %402 = arith.mulf %401, %399 : vector<7x7xf32>
    %403 = arith.addf %394, %402 : vector<7x7xf32>
    %c59 = arith.constant 59 : index
    %404 = memref.load %arg5[%c59] : memref<72xf32, #tpu.memory_space<smem>>
    %405 = vector.broadcast %404 : f32 to vector<7x7xf32>
    %406 = arith.mulf %405, %399 : vector<7x7xf32>
    %407 = arith.addf %398, %406 : vector<7x7xf32>
    %408 = vector.extract_strided_slice %169 {offsets = [1, 0], sizes = [7, 7], strides = [1, 1]} : vector<8x8xf32> to vector<7x7xf32>
    %c24_91 = arith.constant 24 : index
    %409 = memref.load %arg5[%c24_91] : memref<72xf32, #tpu.memory_space<smem>>
    %410 = vector.broadcast %409 : f32 to vector<7x7xf32>
    %411 = arith.mulf %410, %408 : vector<7x7xf32>
    %412 = arith.addf %403, %411 : vector<7x7xf32>
    %c60 = arith.constant 60 : index
    %413 = memref.load %arg5[%c60] : memref<72xf32, #tpu.memory_space<smem>>
    %414 = vector.broadcast %413 : f32 to vector<7x7xf32>
    %415 = arith.mulf %414, %408 : vector<7x7xf32>
    %416 = arith.addf %407, %415 : vector<7x7xf32>
    %417 = vector.extract_strided_slice %173 {offsets = [1, 0], sizes = [7, 7], strides = [1, 1]} : vector<8x8xf32> to vector<7x7xf32>
    %c25_92 = arith.constant 25 : index
    %418 = memref.load %arg5[%c25_92] : memref<72xf32, #tpu.memory_space<smem>>
    %419 = vector.broadcast %418 : f32 to vector<7x7xf32>
    %420 = arith.mulf %419, %417 : vector<7x7xf32>
    %421 = arith.addf %412, %420 : vector<7x7xf32>
    %c61 = arith.constant 61 : index
    %422 = memref.load %arg5[%c61] : memref<72xf32, #tpu.memory_space<smem>>
    %423 = vector.broadcast %422 : f32 to vector<7x7xf32>
    %424 = arith.mulf %423, %417 : vector<7x7xf32>
    %425 = arith.addf %416, %424 : vector<7x7xf32>
    %426 = vector.extract_strided_slice %169 {offsets = [1, 1], sizes = [7, 7], strides = [1, 1]} : vector<8x8xf32> to vector<7x7xf32>
    %c26_93 = arith.constant 26 : index
    %427 = memref.load %arg5[%c26_93] : memref<72xf32, #tpu.memory_space<smem>>
    %428 = vector.broadcast %427 : f32 to vector<7x7xf32>
    %429 = arith.mulf %428, %426 : vector<7x7xf32>
    %430 = arith.addf %421, %429 : vector<7x7xf32>
    %c62 = arith.constant 62 : index
    %431 = memref.load %arg5[%c62] : memref<72xf32, #tpu.memory_space<smem>>
    %432 = vector.broadcast %431 : f32 to vector<7x7xf32>
    %433 = arith.mulf %432, %426 : vector<7x7xf32>
    %434 = arith.addf %425, %433 : vector<7x7xf32>
    %435 = vector.extract_strided_slice %171 {offsets = [0, 0], sizes = [7, 7], strides = [1, 1]} : vector<8x8xf32> to vector<7x7xf32>
    %c27_94 = arith.constant 27 : index
    %436 = memref.load %arg5[%c27_94] : memref<72xf32, #tpu.memory_space<smem>>
    %437 = vector.broadcast %436 : f32 to vector<7x7xf32>
    %438 = arith.mulf %437, %435 : vector<7x7xf32>
    %439 = arith.addf %430, %438 : vector<7x7xf32>
    %c63 = arith.constant 63 : index
    %440 = memref.load %arg5[%c63] : memref<72xf32, #tpu.memory_space<smem>>
    %441 = vector.broadcast %440 : f32 to vector<7x7xf32>
    %442 = arith.mulf %441, %435 : vector<7x7xf32>
    %443 = arith.addf %434, %442 : vector<7x7xf32>
    %444 = vector.extract_strided_slice %175 {offsets = [0, 0], sizes = [7, 7], strides = [1, 1]} : vector<8x8xf32> to vector<7x7xf32>
    %c28_95 = arith.constant 28 : index
    %445 = memref.load %arg5[%c28_95] : memref<72xf32, #tpu.memory_space<smem>>
    %446 = vector.broadcast %445 : f32 to vector<7x7xf32>
    %447 = arith.mulf %446, %444 : vector<7x7xf32>
    %448 = arith.addf %439, %447 : vector<7x7xf32>
    %c64 = arith.constant 64 : index
    %449 = memref.load %arg5[%c64] : memref<72xf32, #tpu.memory_space<smem>>
    %450 = vector.broadcast %449 : f32 to vector<7x7xf32>
    %451 = arith.mulf %450, %444 : vector<7x7xf32>
    %452 = arith.addf %443, %451 : vector<7x7xf32>
    %453 = vector.extract_strided_slice %171 {offsets = [0, 1], sizes = [7, 7], strides = [1, 1]} : vector<8x8xf32> to vector<7x7xf32>
    %c29_96 = arith.constant 29 : index
    %454 = memref.load %arg5[%c29_96] : memref<72xf32, #tpu.memory_space<smem>>
    %455 = vector.broadcast %454 : f32 to vector<7x7xf32>
    %456 = arith.mulf %455, %453 : vector<7x7xf32>
    %457 = arith.addf %448, %456 : vector<7x7xf32>
    %c65 = arith.constant 65 : index
    %458 = memref.load %arg5[%c65] : memref<72xf32, #tpu.memory_space<smem>>
    %459 = vector.broadcast %458 : f32 to vector<7x7xf32>
    %460 = arith.mulf %459, %453 : vector<7x7xf32>
    %461 = arith.addf %452, %460 : vector<7x7xf32>
    %462 = vector.extract_strided_slice %179 {offsets = [0, 0], sizes = [7, 7], strides = [1, 1]} : vector<8x8xf32> to vector<7x7xf32>
    %c30_97 = arith.constant 30 : index
    %463 = memref.load %arg5[%c30_97] : memref<72xf32, #tpu.memory_space<smem>>
    %464 = vector.broadcast %463 : f32 to vector<7x7xf32>
    %465 = arith.mulf %464, %462 : vector<7x7xf32>
    %466 = arith.addf %457, %465 : vector<7x7xf32>
    %c66 = arith.constant 66 : index
    %467 = memref.load %arg5[%c66] : memref<72xf32, #tpu.memory_space<smem>>
    %468 = vector.broadcast %467 : f32 to vector<7x7xf32>
    %469 = arith.mulf %468, %462 : vector<7x7xf32>
    %470 = arith.addf %461, %469 : vector<7x7xf32>
    %471 = vector.extract_strided_slice %183 {offsets = [0, 0], sizes = [7, 7], strides = [1, 1]} : vector<8x8xf32> to vector<7x7xf32>
    %c31_98 = arith.constant 31 : index
    %472 = memref.load %arg5[%c31_98] : memref<72xf32, #tpu.memory_space<smem>>
    %473 = vector.broadcast %472 : f32 to vector<7x7xf32>
    %474 = arith.mulf %473, %471 : vector<7x7xf32>
    %475 = arith.addf %466, %474 : vector<7x7xf32>
    %c67 = arith.constant 67 : index
    %476 = memref.load %arg5[%c67] : memref<72xf32, #tpu.memory_space<smem>>
    %477 = vector.broadcast %476 : f32 to vector<7x7xf32>
    %478 = arith.mulf %477, %471 : vector<7x7xf32>
    %479 = arith.addf %470, %478 : vector<7x7xf32>
    %480 = vector.extract_strided_slice %179 {offsets = [0, 1], sizes = [7, 7], strides = [1, 1]} : vector<8x8xf32> to vector<7x7xf32>
    %c32 = arith.constant 32 : index
    %481 = memref.load %arg5[%c32] : memref<72xf32, #tpu.memory_space<smem>>
    %482 = vector.broadcast %481 : f32 to vector<7x7xf32>
    %483 = arith.mulf %482, %480 : vector<7x7xf32>
    %484 = arith.addf %475, %483 : vector<7x7xf32>
    %c68 = arith.constant 68 : index
    %485 = memref.load %arg5[%c68] : memref<72xf32, #tpu.memory_space<smem>>
    %486 = vector.broadcast %485 : f32 to vector<7x7xf32>
    %487 = arith.mulf %486, %480 : vector<7x7xf32>
    %488 = arith.addf %479, %487 : vector<7x7xf32>
    %489 = vector.extract_strided_slice %171 {offsets = [1, 0], sizes = [7, 7], strides = [1, 1]} : vector<8x8xf32> to vector<7x7xf32>
    %c33 = arith.constant 33 : index
    %490 = memref.load %arg5[%c33] : memref<72xf32, #tpu.memory_space<smem>>
    %491 = vector.broadcast %490 : f32 to vector<7x7xf32>
    %492 = arith.mulf %491, %489 : vector<7x7xf32>
    %493 = arith.addf %484, %492 : vector<7x7xf32>
    %c69 = arith.constant 69 : index
    %494 = memref.load %arg5[%c69] : memref<72xf32, #tpu.memory_space<smem>>
    %495 = vector.broadcast %494 : f32 to vector<7x7xf32>
    %496 = arith.mulf %495, %489 : vector<7x7xf32>
    %497 = arith.addf %488, %496 : vector<7x7xf32>
    %498 = vector.extract_strided_slice %175 {offsets = [1, 0], sizes = [7, 7], strides = [1, 1]} : vector<8x8xf32> to vector<7x7xf32>
    %c34 = arith.constant 34 : index
    %499 = memref.load %arg5[%c34] : memref<72xf32, #tpu.memory_space<smem>>
    %500 = vector.broadcast %499 : f32 to vector<7x7xf32>
    %501 = arith.mulf %500, %498 : vector<7x7xf32>
    %502 = arith.addf %493, %501 : vector<7x7xf32>
    %c70 = arith.constant 70 : index
    %503 = memref.load %arg5[%c70] : memref<72xf32, #tpu.memory_space<smem>>
    %504 = vector.broadcast %503 : f32 to vector<7x7xf32>
    %505 = arith.mulf %504, %498 : vector<7x7xf32>
    %506 = arith.addf %497, %505 : vector<7x7xf32>
    %507 = vector.extract_strided_slice %171 {offsets = [1, 1], sizes = [7, 7], strides = [1, 1]} : vector<8x8xf32> to vector<7x7xf32>
    %c35 = arith.constant 35 : index
    %508 = memref.load %arg5[%c35] : memref<72xf32, #tpu.memory_space<smem>>
    %509 = vector.broadcast %508 : f32 to vector<7x7xf32>
    %510 = arith.mulf %509, %507 : vector<7x7xf32>
    %511 = arith.addf %502, %510 : vector<7x7xf32>
    %c71 = arith.constant 71 : index
    %512 = memref.load %arg5[%c71] : memref<72xf32, #tpu.memory_space<smem>>
    %513 = vector.broadcast %512 : f32 to vector<7x7xf32>
    %514 = arith.mulf %513, %507 : vector<7x7xf32>
    %515 = arith.addf %506, %514 : vector<7x7xf32>
    %cst_99 = arith.constant 0.000000e+00 : f32
    %516 = vector.broadcast %cst_99 : f32 to vector<7x7xf32>
    %517 = arith.maximumf %511, %516 : vector<7x7xf32>
    %cst_100 = arith.constant 0.000000e+00 : f32
    %518 = vector.broadcast %cst_100 : f32 to vector<7x7xf32>
    %519 = arith.maximumf %515, %518 : vector<7x7xf32>
    %cst_101 = arith.constant 0.000000e+00 : f32
    %520 = vector.broadcast %cst_101 : f32 to vector<7x7xf32>
    %c0_102 = arith.constant 0 : index
    %521 = memref.load %arg6[%c0_102] : memref<2xf32, #tpu.memory_space<smem>>
    %522 = vector.broadcast %521 : f32 to vector<7x7xf32>
    %523 = arith.addf %520, %522 : vector<7x7xf32>
    %cst_103 = arith.constant 0.000000e+00 : f32
    %524 = vector.broadcast %cst_103 : f32 to vector<7x7xf32>
    %c1_104 = arith.constant 1 : index
    %525 = memref.load %arg6[%c1_104] : memref<2xf32, #tpu.memory_space<smem>>
    %526 = vector.broadcast %525 : f32 to vector<7x7xf32>
    %527 = arith.addf %524, %526 : vector<7x7xf32>
    %528 = vector.extract_strided_slice %147 {offsets = [0, 0], sizes = [7, 7], strides = [1, 1]} : vector<8x8xf32> to vector<7x7xf32>
    %c0_105 = arith.constant 0 : index
    %529 = memref.load %arg5[%c0_105] : memref<72xf32, #tpu.memory_space<smem>>
    %530 = vector.broadcast %529 : f32 to vector<7x7xf32>
    %531 = arith.mulf %530, %528 : vector<7x7xf32>
    %532 = arith.addf %523, %531 : vector<7x7xf32>
    %c36_106 = arith.constant 36 : index
    %533 = memref.load %arg5[%c36_106] : memref<72xf32, #tpu.memory_space<smem>>
    %534 = vector.broadcast %533 : f32 to vector<7x7xf32>
    %535 = arith.mulf %534, %528 : vector<7x7xf32>
    %536 = arith.addf %527, %535 : vector<7x7xf32>
    %537 = vector.extract_strided_slice %139 {offsets = [0, 1], sizes = [7, 7], strides = [1, 1]} : vector<8x8xf32> to vector<7x7xf32>
    %c1_107 = arith.constant 1 : index
    %538 = memref.load %arg5[%c1_107] : memref<72xf32, #tpu.memory_space<smem>>
    %539 = vector.broadcast %538 : f32 to vector<7x7xf32>
    %540 = arith.mulf %539, %537 : vector<7x7xf32>
    %541 = arith.addf %532, %540 : vector<7x7xf32>
    %c37_108 = arith.constant 37 : index
    %542 = memref.load %arg5[%c37_108] : memref<72xf32, #tpu.memory_space<smem>>
    %543 = vector.broadcast %542 : f32 to vector<7x7xf32>
    %544 = arith.mulf %543, %537 : vector<7x7xf32>
    %545 = arith.addf %536, %544 : vector<7x7xf32>
    %546 = vector.extract_strided_slice %147 {offsets = [0, 1], sizes = [7, 7], strides = [1, 1]} : vector<8x8xf32> to vector<7x7xf32>
    %c2_109 = arith.constant 2 : index
    %547 = memref.load %arg5[%c2_109] : memref<72xf32, #tpu.memory_space<smem>>
    %548 = vector.broadcast %547 : f32 to vector<7x7xf32>
    %549 = arith.mulf %548, %546 : vector<7x7xf32>
    %550 = arith.addf %541, %549 : vector<7x7xf32>
    %c38_110 = arith.constant 38 : index
    %551 = memref.load %arg5[%c38_110] : memref<72xf32, #tpu.memory_space<smem>>
    %552 = vector.broadcast %551 : f32 to vector<7x7xf32>
    %553 = arith.mulf %552, %546 : vector<7x7xf32>
    %554 = arith.addf %545, %553 : vector<7x7xf32>
    %555 = vector.extract_strided_slice %163 {offsets = [0, 0], sizes = [7, 7], strides = [1, 1]} : vector<8x8xf32> to vector<7x7xf32>
    %c3_111 = arith.constant 3 : index
    %556 = memref.load %arg5[%c3_111] : memref<72xf32, #tpu.memory_space<smem>>
    %557 = vector.broadcast %556 : f32 to vector<7x7xf32>
    %558 = arith.mulf %557, %555 : vector<7x7xf32>
    %559 = arith.addf %550, %558 : vector<7x7xf32>
    %c39_112 = arith.constant 39 : index
    %560 = memref.load %arg5[%c39_112] : memref<72xf32, #tpu.memory_space<smem>>
    %561 = vector.broadcast %560 : f32 to vector<7x7xf32>
    %562 = arith.mulf %561, %555 : vector<7x7xf32>
    %563 = arith.addf %554, %562 : vector<7x7xf32>
    %564 = vector.extract_strided_slice %155 {offsets = [0, 1], sizes = [7, 7], strides = [1, 1]} : vector<8x8xf32> to vector<7x7xf32>
    %c4_113 = arith.constant 4 : index
    %565 = memref.load %arg5[%c4_113] : memref<72xf32, #tpu.memory_space<smem>>
    %566 = vector.broadcast %565 : f32 to vector<7x7xf32>
    %567 = arith.mulf %566, %564 : vector<7x7xf32>
    %568 = arith.addf %559, %567 : vector<7x7xf32>
    %c40_114 = arith.constant 40 : index
    %569 = memref.load %arg5[%c40_114] : memref<72xf32, #tpu.memory_space<smem>>
    %570 = vector.broadcast %569 : f32 to vector<7x7xf32>
    %571 = arith.mulf %570, %564 : vector<7x7xf32>
    %572 = arith.addf %563, %571 : vector<7x7xf32>
    %573 = vector.extract_strided_slice %163 {offsets = [0, 1], sizes = [7, 7], strides = [1, 1]} : vector<8x8xf32> to vector<7x7xf32>
    %c5_115 = arith.constant 5 : index
    %574 = memref.load %arg5[%c5_115] : memref<72xf32, #tpu.memory_space<smem>>
    %575 = vector.broadcast %574 : f32 to vector<7x7xf32>
    %576 = arith.mulf %575, %573 : vector<7x7xf32>
    %577 = arith.addf %568, %576 : vector<7x7xf32>
    %c41_116 = arith.constant 41 : index
    %578 = memref.load %arg5[%c41_116] : memref<72xf32, #tpu.memory_space<smem>>
    %579 = vector.broadcast %578 : f32 to vector<7x7xf32>
    %580 = arith.mulf %579, %573 : vector<7x7xf32>
    %581 = arith.addf %572, %580 : vector<7x7xf32>
    %582 = vector.extract_strided_slice %147 {offsets = [1, 0], sizes = [7, 7], strides = [1, 1]} : vector<8x8xf32> to vector<7x7xf32>
    %c6_117 = arith.constant 6 : index
    %583 = memref.load %arg5[%c6_117] : memref<72xf32, #tpu.memory_space<smem>>
    %584 = vector.broadcast %583 : f32 to vector<7x7xf32>
    %585 = arith.mulf %584, %582 : vector<7x7xf32>
    %586 = arith.addf %577, %585 : vector<7x7xf32>
    %c42_118 = arith.constant 42 : index
    %587 = memref.load %arg5[%c42_118] : memref<72xf32, #tpu.memory_space<smem>>
    %588 = vector.broadcast %587 : f32 to vector<7x7xf32>
    %589 = arith.mulf %588, %582 : vector<7x7xf32>
    %590 = arith.addf %581, %589 : vector<7x7xf32>
    %591 = vector.extract_strided_slice %139 {offsets = [1, 1], sizes = [7, 7], strides = [1, 1]} : vector<8x8xf32> to vector<7x7xf32>
    %c7_119 = arith.constant 7 : index
    %592 = memref.load %arg5[%c7_119] : memref<72xf32, #tpu.memory_space<smem>>
    %593 = vector.broadcast %592 : f32 to vector<7x7xf32>
    %594 = arith.mulf %593, %591 : vector<7x7xf32>
    %595 = arith.addf %586, %594 : vector<7x7xf32>
    %c43_120 = arith.constant 43 : index
    %596 = memref.load %arg5[%c43_120] : memref<72xf32, #tpu.memory_space<smem>>
    %597 = vector.broadcast %596 : f32 to vector<7x7xf32>
    %598 = arith.mulf %597, %591 : vector<7x7xf32>
    %599 = arith.addf %590, %598 : vector<7x7xf32>
    %600 = vector.extract_strided_slice %147 {offsets = [1, 1], sizes = [7, 7], strides = [1, 1]} : vector<8x8xf32> to vector<7x7xf32>
    %c8_121 = arith.constant 8 : index
    %601 = memref.load %arg5[%c8_121] : memref<72xf32, #tpu.memory_space<smem>>
    %602 = vector.broadcast %601 : f32 to vector<7x7xf32>
    %603 = arith.mulf %602, %600 : vector<7x7xf32>
    %604 = arith.addf %595, %603 : vector<7x7xf32>
    %c44_122 = arith.constant 44 : index
    %605 = memref.load %arg5[%c44_122] : memref<72xf32, #tpu.memory_space<smem>>
    %606 = vector.broadcast %605 : f32 to vector<7x7xf32>
    %607 = arith.mulf %606, %600 : vector<7x7xf32>
    %608 = arith.addf %599, %607 : vector<7x7xf32>
    %609 = vector.extract_strided_slice %151 {offsets = [0, 0], sizes = [7, 7], strides = [1, 1]} : vector<8x8xf32> to vector<7x7xf32>
    %c9_123 = arith.constant 9 : index
    %610 = memref.load %arg5[%c9_123] : memref<72xf32, #tpu.memory_space<smem>>
    %611 = vector.broadcast %610 : f32 to vector<7x7xf32>
    %612 = arith.mulf %611, %609 : vector<7x7xf32>
    %613 = arith.addf %604, %612 : vector<7x7xf32>
    %c45_124 = arith.constant 45 : index
    %614 = memref.load %arg5[%c45_124] : memref<72xf32, #tpu.memory_space<smem>>
    %615 = vector.broadcast %614 : f32 to vector<7x7xf32>
    %616 = arith.mulf %615, %609 : vector<7x7xf32>
    %617 = arith.addf %608, %616 : vector<7x7xf32>
    %618 = vector.extract_strided_slice %143 {offsets = [0, 1], sizes = [7, 7], strides = [1, 1]} : vector<8x8xf32> to vector<7x7xf32>
    %c10_125 = arith.constant 10 : index
    %619 = memref.load %arg5[%c10_125] : memref<72xf32, #tpu.memory_space<smem>>
    %620 = vector.broadcast %619 : f32 to vector<7x7xf32>
    %621 = arith.mulf %620, %618 : vector<7x7xf32>
    %622 = arith.addf %613, %621 : vector<7x7xf32>
    %c46_126 = arith.constant 46 : index
    %623 = memref.load %arg5[%c46_126] : memref<72xf32, #tpu.memory_space<smem>>
    %624 = vector.broadcast %623 : f32 to vector<7x7xf32>
    %625 = arith.mulf %624, %618 : vector<7x7xf32>
    %626 = arith.addf %617, %625 : vector<7x7xf32>
    %627 = vector.extract_strided_slice %151 {offsets = [0, 1], sizes = [7, 7], strides = [1, 1]} : vector<8x8xf32> to vector<7x7xf32>
    %c11_127 = arith.constant 11 : index
    %628 = memref.load %arg5[%c11_127] : memref<72xf32, #tpu.memory_space<smem>>
    %629 = vector.broadcast %628 : f32 to vector<7x7xf32>
    %630 = arith.mulf %629, %627 : vector<7x7xf32>
    %631 = arith.addf %622, %630 : vector<7x7xf32>
    %c47_128 = arith.constant 47 : index
    %632 = memref.load %arg5[%c47_128] : memref<72xf32, #tpu.memory_space<smem>>
    %633 = vector.broadcast %632 : f32 to vector<7x7xf32>
    %634 = arith.mulf %633, %627 : vector<7x7xf32>
    %635 = arith.addf %626, %634 : vector<7x7xf32>
    %636 = vector.extract_strided_slice %167 {offsets = [0, 0], sizes = [7, 7], strides = [1, 1]} : vector<8x8xf32> to vector<7x7xf32>
    %c12_129 = arith.constant 12 : index
    %637 = memref.load %arg5[%c12_129] : memref<72xf32, #tpu.memory_space<smem>>
    %638 = vector.broadcast %637 : f32 to vector<7x7xf32>
    %639 = arith.mulf %638, %636 : vector<7x7xf32>
    %640 = arith.addf %631, %639 : vector<7x7xf32>
    %c48_130 = arith.constant 48 : index
    %641 = memref.load %arg5[%c48_130] : memref<72xf32, #tpu.memory_space<smem>>
    %642 = vector.broadcast %641 : f32 to vector<7x7xf32>
    %643 = arith.mulf %642, %636 : vector<7x7xf32>
    %644 = arith.addf %635, %643 : vector<7x7xf32>
    %645 = vector.extract_strided_slice %159 {offsets = [0, 1], sizes = [7, 7], strides = [1, 1]} : vector<8x8xf32> to vector<7x7xf32>
    %c13_131 = arith.constant 13 : index
    %646 = memref.load %arg5[%c13_131] : memref<72xf32, #tpu.memory_space<smem>>
    %647 = vector.broadcast %646 : f32 to vector<7x7xf32>
    %648 = arith.mulf %647, %645 : vector<7x7xf32>
    %649 = arith.addf %640, %648 : vector<7x7xf32>
    %c49_132 = arith.constant 49 : index
    %650 = memref.load %arg5[%c49_132] : memref<72xf32, #tpu.memory_space<smem>>
    %651 = vector.broadcast %650 : f32 to vector<7x7xf32>
    %652 = arith.mulf %651, %645 : vector<7x7xf32>
    %653 = arith.addf %644, %652 : vector<7x7xf32>
    %654 = vector.extract_strided_slice %167 {offsets = [0, 1], sizes = [7, 7], strides = [1, 1]} : vector<8x8xf32> to vector<7x7xf32>
    %c14_133 = arith.constant 14 : index
    %655 = memref.load %arg5[%c14_133] : memref<72xf32, #tpu.memory_space<smem>>
    %656 = vector.broadcast %655 : f32 to vector<7x7xf32>
    %657 = arith.mulf %656, %654 : vector<7x7xf32>
    %658 = arith.addf %649, %657 : vector<7x7xf32>
    %c50_134 = arith.constant 50 : index
    %659 = memref.load %arg5[%c50_134] : memref<72xf32, #tpu.memory_space<smem>>
    %660 = vector.broadcast %659 : f32 to vector<7x7xf32>
    %661 = arith.mulf %660, %654 : vector<7x7xf32>
    %662 = arith.addf %653, %661 : vector<7x7xf32>
    %663 = vector.extract_strided_slice %151 {offsets = [1, 0], sizes = [7, 7], strides = [1, 1]} : vector<8x8xf32> to vector<7x7xf32>
    %c15_135 = arith.constant 15 : index
    %664 = memref.load %arg5[%c15_135] : memref<72xf32, #tpu.memory_space<smem>>
    %665 = vector.broadcast %664 : f32 to vector<7x7xf32>
    %666 = arith.mulf %665, %663 : vector<7x7xf32>
    %667 = arith.addf %658, %666 : vector<7x7xf32>
    %c51_136 = arith.constant 51 : index
    %668 = memref.load %arg5[%c51_136] : memref<72xf32, #tpu.memory_space<smem>>
    %669 = vector.broadcast %668 : f32 to vector<7x7xf32>
    %670 = arith.mulf %669, %663 : vector<7x7xf32>
    %671 = arith.addf %662, %670 : vector<7x7xf32>
    %672 = vector.extract_strided_slice %143 {offsets = [1, 1], sizes = [7, 7], strides = [1, 1]} : vector<8x8xf32> to vector<7x7xf32>
    %c16_137 = arith.constant 16 : index
    %673 = memref.load %arg5[%c16_137] : memref<72xf32, #tpu.memory_space<smem>>
    %674 = vector.broadcast %673 : f32 to vector<7x7xf32>
    %675 = arith.mulf %674, %672 : vector<7x7xf32>
    %676 = arith.addf %667, %675 : vector<7x7xf32>
    %c52_138 = arith.constant 52 : index
    %677 = memref.load %arg5[%c52_138] : memref<72xf32, #tpu.memory_space<smem>>
    %678 = vector.broadcast %677 : f32 to vector<7x7xf32>
    %679 = arith.mulf %678, %672 : vector<7x7xf32>
    %680 = arith.addf %671, %679 : vector<7x7xf32>
    %681 = vector.extract_strided_slice %151 {offsets = [1, 1], sizes = [7, 7], strides = [1, 1]} : vector<8x8xf32> to vector<7x7xf32>
    %c17_139 = arith.constant 17 : index
    %682 = memref.load %arg5[%c17_139] : memref<72xf32, #tpu.memory_space<smem>>
    %683 = vector.broadcast %682 : f32 to vector<7x7xf32>
    %684 = arith.mulf %683, %681 : vector<7x7xf32>
    %685 = arith.addf %676, %684 : vector<7x7xf32>
    %c53_140 = arith.constant 53 : index
    %686 = memref.load %arg5[%c53_140] : memref<72xf32, #tpu.memory_space<smem>>
    %687 = vector.broadcast %686 : f32 to vector<7x7xf32>
    %688 = arith.mulf %687, %681 : vector<7x7xf32>
    %689 = arith.addf %680, %688 : vector<7x7xf32>
    %690 = vector.extract_strided_slice %173 {offsets = [0, 0], sizes = [7, 7], strides = [1, 1]} : vector<8x8xf32> to vector<7x7xf32>
    %c18_141 = arith.constant 18 : index
    %691 = memref.load %arg5[%c18_141] : memref<72xf32, #tpu.memory_space<smem>>
    %692 = vector.broadcast %691 : f32 to vector<7x7xf32>
    %693 = arith.mulf %692, %690 : vector<7x7xf32>
    %694 = arith.addf %685, %693 : vector<7x7xf32>
    %c54_142 = arith.constant 54 : index
    %695 = memref.load %arg5[%c54_142] : memref<72xf32, #tpu.memory_space<smem>>
    %696 = vector.broadcast %695 : f32 to vector<7x7xf32>
    %697 = arith.mulf %696, %690 : vector<7x7xf32>
    %698 = arith.addf %689, %697 : vector<7x7xf32>
    %699 = vector.extract_strided_slice %169 {offsets = [0, 1], sizes = [7, 7], strides = [1, 1]} : vector<8x8xf32> to vector<7x7xf32>
    %c19_143 = arith.constant 19 : index
    %700 = memref.load %arg5[%c19_143] : memref<72xf32, #tpu.memory_space<smem>>
    %701 = vector.broadcast %700 : f32 to vector<7x7xf32>
    %702 = arith.mulf %701, %699 : vector<7x7xf32>
    %703 = arith.addf %694, %702 : vector<7x7xf32>
    %c55_144 = arith.constant 55 : index
    %704 = memref.load %arg5[%c55_144] : memref<72xf32, #tpu.memory_space<smem>>
    %705 = vector.broadcast %704 : f32 to vector<7x7xf32>
    %706 = arith.mulf %705, %699 : vector<7x7xf32>
    %707 = arith.addf %698, %706 : vector<7x7xf32>
    %708 = vector.extract_strided_slice %173 {offsets = [0, 1], sizes = [7, 7], strides = [1, 1]} : vector<8x8xf32> to vector<7x7xf32>
    %c20_145 = arith.constant 20 : index
    %709 = memref.load %arg5[%c20_145] : memref<72xf32, #tpu.memory_space<smem>>
    %710 = vector.broadcast %709 : f32 to vector<7x7xf32>
    %711 = arith.mulf %710, %708 : vector<7x7xf32>
    %712 = arith.addf %703, %711 : vector<7x7xf32>
    %c56_146 = arith.constant 56 : index
    %713 = memref.load %arg5[%c56_146] : memref<72xf32, #tpu.memory_space<smem>>
    %714 = vector.broadcast %713 : f32 to vector<7x7xf32>
    %715 = arith.mulf %714, %708 : vector<7x7xf32>
    %716 = arith.addf %707, %715 : vector<7x7xf32>
    %717 = vector.extract_strided_slice %181 {offsets = [0, 0], sizes = [7, 7], strides = [1, 1]} : vector<8x8xf32> to vector<7x7xf32>
    %c21_147 = arith.constant 21 : index
    %718 = memref.load %arg5[%c21_147] : memref<72xf32, #tpu.memory_space<smem>>
    %719 = vector.broadcast %718 : f32 to vector<7x7xf32>
    %720 = arith.mulf %719, %717 : vector<7x7xf32>
    %721 = arith.addf %712, %720 : vector<7x7xf32>
    %c57_148 = arith.constant 57 : index
    %722 = memref.load %arg5[%c57_148] : memref<72xf32, #tpu.memory_space<smem>>
    %723 = vector.broadcast %722 : f32 to vector<7x7xf32>
    %724 = arith.mulf %723, %717 : vector<7x7xf32>
    %725 = arith.addf %716, %724 : vector<7x7xf32>
    %726 = vector.extract_strided_slice %177 {offsets = [0, 1], sizes = [7, 7], strides = [1, 1]} : vector<8x8xf32> to vector<7x7xf32>
    %c22_149 = arith.constant 22 : index
    %727 = memref.load %arg5[%c22_149] : memref<72xf32, #tpu.memory_space<smem>>
    %728 = vector.broadcast %727 : f32 to vector<7x7xf32>
    %729 = arith.mulf %728, %726 : vector<7x7xf32>
    %730 = arith.addf %721, %729 : vector<7x7xf32>
    %c58_150 = arith.constant 58 : index
    %731 = memref.load %arg5[%c58_150] : memref<72xf32, #tpu.memory_space<smem>>
    %732 = vector.broadcast %731 : f32 to vector<7x7xf32>
    %733 = arith.mulf %732, %726 : vector<7x7xf32>
    %734 = arith.addf %725, %733 : vector<7x7xf32>
    %735 = vector.extract_strided_slice %181 {offsets = [0, 1], sizes = [7, 7], strides = [1, 1]} : vector<8x8xf32> to vector<7x7xf32>
    %c23_151 = arith.constant 23 : index
    %736 = memref.load %arg5[%c23_151] : memref<72xf32, #tpu.memory_space<smem>>
    %737 = vector.broadcast %736 : f32 to vector<7x7xf32>
    %738 = arith.mulf %737, %735 : vector<7x7xf32>
    %739 = arith.addf %730, %738 : vector<7x7xf32>
    %c59_152 = arith.constant 59 : index
    %740 = memref.load %arg5[%c59_152] : memref<72xf32, #tpu.memory_space<smem>>
    %741 = vector.broadcast %740 : f32 to vector<7x7xf32>
    %742 = arith.mulf %741, %735 : vector<7x7xf32>
    %743 = arith.addf %734, %742 : vector<7x7xf32>
    %744 = vector.extract_strided_slice %173 {offsets = [1, 0], sizes = [7, 7], strides = [1, 1]} : vector<8x8xf32> to vector<7x7xf32>
    %c24_153 = arith.constant 24 : index
    %745 = memref.load %arg5[%c24_153] : memref<72xf32, #tpu.memory_space<smem>>
    %746 = vector.broadcast %745 : f32 to vector<7x7xf32>
    %747 = arith.mulf %746, %744 : vector<7x7xf32>
    %748 = arith.addf %739, %747 : vector<7x7xf32>
    %c60_154 = arith.constant 60 : index
    %749 = memref.load %arg5[%c60_154] : memref<72xf32, #tpu.memory_space<smem>>
    %750 = vector.broadcast %749 : f32 to vector<7x7xf32>
    %751 = arith.mulf %750, %744 : vector<7x7xf32>
    %752 = arith.addf %743, %751 : vector<7x7xf32>
    %753 = vector.extract_strided_slice %169 {offsets = [1, 1], sizes = [7, 7], strides = [1, 1]} : vector<8x8xf32> to vector<7x7xf32>
    %c25_155 = arith.constant 25 : index
    %754 = memref.load %arg5[%c25_155] : memref<72xf32, #tpu.memory_space<smem>>
    %755 = vector.broadcast %754 : f32 to vector<7x7xf32>
    %756 = arith.mulf %755, %753 : vector<7x7xf32>
    %757 = arith.addf %748, %756 : vector<7x7xf32>
    %c61_156 = arith.constant 61 : index
    %758 = memref.load %arg5[%c61_156] : memref<72xf32, #tpu.memory_space<smem>>
    %759 = vector.broadcast %758 : f32 to vector<7x7xf32>
    %760 = arith.mulf %759, %753 : vector<7x7xf32>
    %761 = arith.addf %752, %760 : vector<7x7xf32>
    %762 = vector.extract_strided_slice %173 {offsets = [1, 1], sizes = [7, 7], strides = [1, 1]} : vector<8x8xf32> to vector<7x7xf32>
    %c26_157 = arith.constant 26 : index
    %763 = memref.load %arg5[%c26_157] : memref<72xf32, #tpu.memory_space<smem>>
    %764 = vector.broadcast %763 : f32 to vector<7x7xf32>
    %765 = arith.mulf %764, %762 : vector<7x7xf32>
    %766 = arith.addf %757, %765 : vector<7x7xf32>
    %c62_158 = arith.constant 62 : index
    %767 = memref.load %arg5[%c62_158] : memref<72xf32, #tpu.memory_space<smem>>
    %768 = vector.broadcast %767 : f32 to vector<7x7xf32>
    %769 = arith.mulf %768, %762 : vector<7x7xf32>
    %770 = arith.addf %761, %769 : vector<7x7xf32>
    %771 = vector.extract_strided_slice %175 {offsets = [0, 0], sizes = [7, 7], strides = [1, 1]} : vector<8x8xf32> to vector<7x7xf32>
    %c27_159 = arith.constant 27 : index
    %772 = memref.load %arg5[%c27_159] : memref<72xf32, #tpu.memory_space<smem>>
    %773 = vector.broadcast %772 : f32 to vector<7x7xf32>
    %774 = arith.mulf %773, %771 : vector<7x7xf32>
    %775 = arith.addf %766, %774 : vector<7x7xf32>
    %c63_160 = arith.constant 63 : index
    %776 = memref.load %arg5[%c63_160] : memref<72xf32, #tpu.memory_space<smem>>
    %777 = vector.broadcast %776 : f32 to vector<7x7xf32>
    %778 = arith.mulf %777, %771 : vector<7x7xf32>
    %779 = arith.addf %770, %778 : vector<7x7xf32>
    %780 = vector.extract_strided_slice %171 {offsets = [0, 1], sizes = [7, 7], strides = [1, 1]} : vector<8x8xf32> to vector<7x7xf32>
    %c28_161 = arith.constant 28 : index
    %781 = memref.load %arg5[%c28_161] : memref<72xf32, #tpu.memory_space<smem>>
    %782 = vector.broadcast %781 : f32 to vector<7x7xf32>
    %783 = arith.mulf %782, %780 : vector<7x7xf32>
    %784 = arith.addf %775, %783 : vector<7x7xf32>
    %c64_162 = arith.constant 64 : index
    %785 = memref.load %arg5[%c64_162] : memref<72xf32, #tpu.memory_space<smem>>
    %786 = vector.broadcast %785 : f32 to vector<7x7xf32>
    %787 = arith.mulf %786, %780 : vector<7x7xf32>
    %788 = arith.addf %779, %787 : vector<7x7xf32>
    %789 = vector.extract_strided_slice %175 {offsets = [0, 1], sizes = [7, 7], strides = [1, 1]} : vector<8x8xf32> to vector<7x7xf32>
    %c29_163 = arith.constant 29 : index
    %790 = memref.load %arg5[%c29_163] : memref<72xf32, #tpu.memory_space<smem>>
    %791 = vector.broadcast %790 : f32 to vector<7x7xf32>
    %792 = arith.mulf %791, %789 : vector<7x7xf32>
    %793 = arith.addf %784, %792 : vector<7x7xf32>
    %c65_164 = arith.constant 65 : index
    %794 = memref.load %arg5[%c65_164] : memref<72xf32, #tpu.memory_space<smem>>
    %795 = vector.broadcast %794 : f32 to vector<7x7xf32>
    %796 = arith.mulf %795, %789 : vector<7x7xf32>
    %797 = arith.addf %788, %796 : vector<7x7xf32>
    %798 = vector.extract_strided_slice %183 {offsets = [0, 0], sizes = [7, 7], strides = [1, 1]} : vector<8x8xf32> to vector<7x7xf32>
    %c30_165 = arith.constant 30 : index
    %799 = memref.load %arg5[%c30_165] : memref<72xf32, #tpu.memory_space<smem>>
    %800 = vector.broadcast %799 : f32 to vector<7x7xf32>
    %801 = arith.mulf %800, %798 : vector<7x7xf32>
    %802 = arith.addf %793, %801 : vector<7x7xf32>
    %c66_166 = arith.constant 66 : index
    %803 = memref.load %arg5[%c66_166] : memref<72xf32, #tpu.memory_space<smem>>
    %804 = vector.broadcast %803 : f32 to vector<7x7xf32>
    %805 = arith.mulf %804, %798 : vector<7x7xf32>
    %806 = arith.addf %797, %805 : vector<7x7xf32>
    %807 = vector.extract_strided_slice %179 {offsets = [0, 1], sizes = [7, 7], strides = [1, 1]} : vector<8x8xf32> to vector<7x7xf32>
    %c31_167 = arith.constant 31 : index
    %808 = memref.load %arg5[%c31_167] : memref<72xf32, #tpu.memory_space<smem>>
    %809 = vector.broadcast %808 : f32 to vector<7x7xf32>
    %810 = arith.mulf %809, %807 : vector<7x7xf32>
    %811 = arith.addf %802, %810 : vector<7x7xf32>
    %c67_168 = arith.constant 67 : index
    %812 = memref.load %arg5[%c67_168] : memref<72xf32, #tpu.memory_space<smem>>
    %813 = vector.broadcast %812 : f32 to vector<7x7xf32>
    %814 = arith.mulf %813, %807 : vector<7x7xf32>
    %815 = arith.addf %806, %814 : vector<7x7xf32>
    %816 = vector.extract_strided_slice %183 {offsets = [0, 1], sizes = [7, 7], strides = [1, 1]} : vector<8x8xf32> to vector<7x7xf32>
    %c32_169 = arith.constant 32 : index
    %817 = memref.load %arg5[%c32_169] : memref<72xf32, #tpu.memory_space<smem>>
    %818 = vector.broadcast %817 : f32 to vector<7x7xf32>
    %819 = arith.mulf %818, %816 : vector<7x7xf32>
    %820 = arith.addf %811, %819 : vector<7x7xf32>
    %c68_170 = arith.constant 68 : index
    %821 = memref.load %arg5[%c68_170] : memref<72xf32, #tpu.memory_space<smem>>
    %822 = vector.broadcast %821 : f32 to vector<7x7xf32>
    %823 = arith.mulf %822, %816 : vector<7x7xf32>
    %824 = arith.addf %815, %823 : vector<7x7xf32>
    %825 = vector.extract_strided_slice %175 {offsets = [1, 0], sizes = [7, 7], strides = [1, 1]} : vector<8x8xf32> to vector<7x7xf32>
    %c33_171 = arith.constant 33 : index
    %826 = memref.load %arg5[%c33_171] : memref<72xf32, #tpu.memory_space<smem>>
    %827 = vector.broadcast %826 : f32 to vector<7x7xf32>
    %828 = arith.mulf %827, %825 : vector<7x7xf32>
    %829 = arith.addf %820, %828 : vector<7x7xf32>
    %c69_172 = arith.constant 69 : index
    %830 = memref.load %arg5[%c69_172] : memref<72xf32, #tpu.memory_space<smem>>
    %831 = vector.broadcast %830 : f32 to vector<7x7xf32>
    %832 = arith.mulf %831, %825 : vector<7x7xf32>
    %833 = arith.addf %824, %832 : vector<7x7xf32>
    %834 = vector.extract_strided_slice %171 {offsets = [1, 1], sizes = [7, 7], strides = [1, 1]} : vector<8x8xf32> to vector<7x7xf32>
    %c34_173 = arith.constant 34 : index
    %835 = memref.load %arg5[%c34_173] : memref<72xf32, #tpu.memory_space<smem>>
    %836 = vector.broadcast %835 : f32 to vector<7x7xf32>
    %837 = arith.mulf %836, %834 : vector<7x7xf32>
    %838 = arith.addf %829, %837 : vector<7x7xf32>
    %c70_174 = arith.constant 70 : index
    %839 = memref.load %arg5[%c70_174] : memref<72xf32, #tpu.memory_space<smem>>
    %840 = vector.broadcast %839 : f32 to vector<7x7xf32>
    %841 = arith.mulf %840, %834 : vector<7x7xf32>
    %842 = arith.addf %833, %841 : vector<7x7xf32>
    %843 = vector.extract_strided_slice %175 {offsets = [1, 1], sizes = [7, 7], strides = [1, 1]} : vector<8x8xf32> to vector<7x7xf32>
    %c35_175 = arith.constant 35 : index
    %844 = memref.load %arg5[%c35_175] : memref<72xf32, #tpu.memory_space<smem>>
    %845 = vector.broadcast %844 : f32 to vector<7x7xf32>
    %846 = arith.mulf %845, %843 : vector<7x7xf32>
    %847 = arith.addf %838, %846 : vector<7x7xf32>
    %c71_176 = arith.constant 71 : index
    %848 = memref.load %arg5[%c71_176] : memref<72xf32, #tpu.memory_space<smem>>
    %849 = vector.broadcast %848 : f32 to vector<7x7xf32>
    %850 = arith.mulf %849, %843 : vector<7x7xf32>
    %851 = arith.addf %842, %850 : vector<7x7xf32>
    %cst_177 = arith.constant 0.000000e+00 : f32
    %852 = vector.broadcast %cst_177 : f32 to vector<7x7xf32>
    %853 = arith.maximumf %847, %852 : vector<7x7xf32>
    %cst_178 = arith.constant 0.000000e+00 : f32
    %854 = vector.broadcast %cst_178 : f32 to vector<7x7xf32>
    %855 = arith.maximumf %851, %854 : vector<7x7xf32>
    %cst_179 = arith.constant 0.000000e+00 : f32
    %856 = vector.broadcast %cst_179 : f32 to vector<7x7xf32>
    %c0_180 = arith.constant 0 : index
    %857 = memref.load %arg6[%c0_180] : memref<2xf32, #tpu.memory_space<smem>>
    %858 = vector.broadcast %857 : f32 to vector<7x7xf32>
    %859 = arith.addf %856, %858 : vector<7x7xf32>
    %cst_181 = arith.constant 0.000000e+00 : f32
    %860 = vector.broadcast %cst_181 : f32 to vector<7x7xf32>
    %c1_182 = arith.constant 1 : index
    %861 = memref.load %arg6[%c1_182] : memref<2xf32, #tpu.memory_space<smem>>
    %862 = vector.broadcast %861 : f32 to vector<7x7xf32>
    %863 = arith.addf %860, %862 : vector<7x7xf32>
    %864 = vector.extract_strided_slice %155 {offsets = [0, 0], sizes = [7, 7], strides = [1, 1]} : vector<8x8xf32> to vector<7x7xf32>
    %c0_183 = arith.constant 0 : index
    %865 = memref.load %arg5[%c0_183] : memref<72xf32, #tpu.memory_space<smem>>
    %866 = vector.broadcast %865 : f32 to vector<7x7xf32>
    %867 = arith.mulf %866, %864 : vector<7x7xf32>
    %868 = arith.addf %859, %867 : vector<7x7xf32>
    %c36_184 = arith.constant 36 : index
    %869 = memref.load %arg5[%c36_184] : memref<72xf32, #tpu.memory_space<smem>>
    %870 = vector.broadcast %869 : f32 to vector<7x7xf32>
    %871 = arith.mulf %870, %864 : vector<7x7xf32>
    %872 = arith.addf %863, %871 : vector<7x7xf32>
    %873 = vector.extract_strided_slice %163 {offsets = [0, 0], sizes = [7, 7], strides = [1, 1]} : vector<8x8xf32> to vector<7x7xf32>
    %c1_185 = arith.constant 1 : index
    %874 = memref.load %arg5[%c1_185] : memref<72xf32, #tpu.memory_space<smem>>
    %875 = vector.broadcast %874 : f32 to vector<7x7xf32>
    %876 = arith.mulf %875, %873 : vector<7x7xf32>
    %877 = arith.addf %868, %876 : vector<7x7xf32>
    %c37_186 = arith.constant 37 : index
    %878 = memref.load %arg5[%c37_186] : memref<72xf32, #tpu.memory_space<smem>>
    %879 = vector.broadcast %878 : f32 to vector<7x7xf32>
    %880 = arith.mulf %879, %873 : vector<7x7xf32>
    %881 = arith.addf %872, %880 : vector<7x7xf32>
    %882 = vector.extract_strided_slice %155 {offsets = [0, 1], sizes = [7, 7], strides = [1, 1]} : vector<8x8xf32> to vector<7x7xf32>
    %c2_187 = arith.constant 2 : index
    %883 = memref.load %arg5[%c2_187] : memref<72xf32, #tpu.memory_space<smem>>
    %884 = vector.broadcast %883 : f32 to vector<7x7xf32>
    %885 = arith.mulf %884, %882 : vector<7x7xf32>
    %886 = arith.addf %877, %885 : vector<7x7xf32>
    %c38_188 = arith.constant 38 : index
    %887 = memref.load %arg5[%c38_188] : memref<72xf32, #tpu.memory_space<smem>>
    %888 = vector.broadcast %887 : f32 to vector<7x7xf32>
    %889 = arith.mulf %888, %882 : vector<7x7xf32>
    %890 = arith.addf %881, %889 : vector<7x7xf32>
    %891 = vector.extract_strided_slice %139 {offsets = [1, 0], sizes = [7, 7], strides = [1, 1]} : vector<8x8xf32> to vector<7x7xf32>
    %c3_189 = arith.constant 3 : index
    %892 = memref.load %arg5[%c3_189] : memref<72xf32, #tpu.memory_space<smem>>
    %893 = vector.broadcast %892 : f32 to vector<7x7xf32>
    %894 = arith.mulf %893, %891 : vector<7x7xf32>
    %895 = arith.addf %886, %894 : vector<7x7xf32>
    %c39_190 = arith.constant 39 : index
    %896 = memref.load %arg5[%c39_190] : memref<72xf32, #tpu.memory_space<smem>>
    %897 = vector.broadcast %896 : f32 to vector<7x7xf32>
    %898 = arith.mulf %897, %891 : vector<7x7xf32>
    %899 = arith.addf %890, %898 : vector<7x7xf32>
    %900 = vector.extract_strided_slice %147 {offsets = [1, 0], sizes = [7, 7], strides = [1, 1]} : vector<8x8xf32> to vector<7x7xf32>
    %c4_191 = arith.constant 4 : index
    %901 = memref.load %arg5[%c4_191] : memref<72xf32, #tpu.memory_space<smem>>
    %902 = vector.broadcast %901 : f32 to vector<7x7xf32>
    %903 = arith.mulf %902, %900 : vector<7x7xf32>
    %904 = arith.addf %895, %903 : vector<7x7xf32>
    %c40_192 = arith.constant 40 : index
    %905 = memref.load %arg5[%c40_192] : memref<72xf32, #tpu.memory_space<smem>>
    %906 = vector.broadcast %905 : f32 to vector<7x7xf32>
    %907 = arith.mulf %906, %900 : vector<7x7xf32>
    %908 = arith.addf %899, %907 : vector<7x7xf32>
    %909 = vector.extract_strided_slice %139 {offsets = [1, 1], sizes = [7, 7], strides = [1, 1]} : vector<8x8xf32> to vector<7x7xf32>
    %c5_193 = arith.constant 5 : index
    %910 = memref.load %arg5[%c5_193] : memref<72xf32, #tpu.memory_space<smem>>
    %911 = vector.broadcast %910 : f32 to vector<7x7xf32>
    %912 = arith.mulf %911, %909 : vector<7x7xf32>
    %913 = arith.addf %904, %912 : vector<7x7xf32>
    %c41_194 = arith.constant 41 : index
    %914 = memref.load %arg5[%c41_194] : memref<72xf32, #tpu.memory_space<smem>>
    %915 = vector.broadcast %914 : f32 to vector<7x7xf32>
    %916 = arith.mulf %915, %909 : vector<7x7xf32>
    %917 = arith.addf %908, %916 : vector<7x7xf32>
    %918 = vector.extract_strided_slice %155 {offsets = [1, 0], sizes = [7, 7], strides = [1, 1]} : vector<8x8xf32> to vector<7x7xf32>
    %c6_195 = arith.constant 6 : index
    %919 = memref.load %arg5[%c6_195] : memref<72xf32, #tpu.memory_space<smem>>
    %920 = vector.broadcast %919 : f32 to vector<7x7xf32>
    %921 = arith.mulf %920, %918 : vector<7x7xf32>
    %922 = arith.addf %913, %921 : vector<7x7xf32>
    %c42_196 = arith.constant 42 : index
    %923 = memref.load %arg5[%c42_196] : memref<72xf32, #tpu.memory_space<smem>>
    %924 = vector.broadcast %923 : f32 to vector<7x7xf32>
    %925 = arith.mulf %924, %918 : vector<7x7xf32>
    %926 = arith.addf %917, %925 : vector<7x7xf32>
    %927 = vector.extract_strided_slice %163 {offsets = [1, 0], sizes = [7, 7], strides = [1, 1]} : vector<8x8xf32> to vector<7x7xf32>
    %c7_197 = arith.constant 7 : index
    %928 = memref.load %arg5[%c7_197] : memref<72xf32, #tpu.memory_space<smem>>
    %929 = vector.broadcast %928 : f32 to vector<7x7xf32>
    %930 = arith.mulf %929, %927 : vector<7x7xf32>
    %931 = arith.addf %922, %930 : vector<7x7xf32>
    %c43_198 = arith.constant 43 : index
    %932 = memref.load %arg5[%c43_198] : memref<72xf32, #tpu.memory_space<smem>>
    %933 = vector.broadcast %932 : f32 to vector<7x7xf32>
    %934 = arith.mulf %933, %927 : vector<7x7xf32>
    %935 = arith.addf %926, %934 : vector<7x7xf32>
    %936 = vector.extract_strided_slice %155 {offsets = [1, 1], sizes = [7, 7], strides = [1, 1]} : vector<8x8xf32> to vector<7x7xf32>
    %c8_199 = arith.constant 8 : index
    %937 = memref.load %arg5[%c8_199] : memref<72xf32, #tpu.memory_space<smem>>
    %938 = vector.broadcast %937 : f32 to vector<7x7xf32>
    %939 = arith.mulf %938, %936 : vector<7x7xf32>
    %940 = arith.addf %931, %939 : vector<7x7xf32>
    %c44_200 = arith.constant 44 : index
    %941 = memref.load %arg5[%c44_200] : memref<72xf32, #tpu.memory_space<smem>>
    %942 = vector.broadcast %941 : f32 to vector<7x7xf32>
    %943 = arith.mulf %942, %936 : vector<7x7xf32>
    %944 = arith.addf %935, %943 : vector<7x7xf32>
    %945 = vector.extract_strided_slice %159 {offsets = [0, 0], sizes = [7, 7], strides = [1, 1]} : vector<8x8xf32> to vector<7x7xf32>
    %c9_201 = arith.constant 9 : index
    %946 = memref.load %arg5[%c9_201] : memref<72xf32, #tpu.memory_space<smem>>
    %947 = vector.broadcast %946 : f32 to vector<7x7xf32>
    %948 = arith.mulf %947, %945 : vector<7x7xf32>
    %949 = arith.addf %940, %948 : vector<7x7xf32>
    %c45_202 = arith.constant 45 : index
    %950 = memref.load %arg5[%c45_202] : memref<72xf32, #tpu.memory_space<smem>>
    %951 = vector.broadcast %950 : f32 to vector<7x7xf32>
    %952 = arith.mulf %951, %945 : vector<7x7xf32>
    %953 = arith.addf %944, %952 : vector<7x7xf32>
    %954 = vector.extract_strided_slice %167 {offsets = [0, 0], sizes = [7, 7], strides = [1, 1]} : vector<8x8xf32> to vector<7x7xf32>
    %c10_203 = arith.constant 10 : index
    %955 = memref.load %arg5[%c10_203] : memref<72xf32, #tpu.memory_space<smem>>
    %956 = vector.broadcast %955 : f32 to vector<7x7xf32>
    %957 = arith.mulf %956, %954 : vector<7x7xf32>
    %958 = arith.addf %949, %957 : vector<7x7xf32>
    %c46_204 = arith.constant 46 : index
    %959 = memref.load %arg5[%c46_204] : memref<72xf32, #tpu.memory_space<smem>>
    %960 = vector.broadcast %959 : f32 to vector<7x7xf32>
    %961 = arith.mulf %960, %954 : vector<7x7xf32>
    %962 = arith.addf %953, %961 : vector<7x7xf32>
    %963 = vector.extract_strided_slice %159 {offsets = [0, 1], sizes = [7, 7], strides = [1, 1]} : vector<8x8xf32> to vector<7x7xf32>
    %c11_205 = arith.constant 11 : index
    %964 = memref.load %arg5[%c11_205] : memref<72xf32, #tpu.memory_space<smem>>
    %965 = vector.broadcast %964 : f32 to vector<7x7xf32>
    %966 = arith.mulf %965, %963 : vector<7x7xf32>
    %967 = arith.addf %958, %966 : vector<7x7xf32>
    %c47_206 = arith.constant 47 : index
    %968 = memref.load %arg5[%c47_206] : memref<72xf32, #tpu.memory_space<smem>>
    %969 = vector.broadcast %968 : f32 to vector<7x7xf32>
    %970 = arith.mulf %969, %963 : vector<7x7xf32>
    %971 = arith.addf %962, %970 : vector<7x7xf32>
    %972 = vector.extract_strided_slice %143 {offsets = [1, 0], sizes = [7, 7], strides = [1, 1]} : vector<8x8xf32> to vector<7x7xf32>
    %c12_207 = arith.constant 12 : index
    %973 = memref.load %arg5[%c12_207] : memref<72xf32, #tpu.memory_space<smem>>
    %974 = vector.broadcast %973 : f32 to vector<7x7xf32>
    %975 = arith.mulf %974, %972 : vector<7x7xf32>
    %976 = arith.addf %967, %975 : vector<7x7xf32>
    %c48_208 = arith.constant 48 : index
    %977 = memref.load %arg5[%c48_208] : memref<72xf32, #tpu.memory_space<smem>>
    %978 = vector.broadcast %977 : f32 to vector<7x7xf32>
    %979 = arith.mulf %978, %972 : vector<7x7xf32>
    %980 = arith.addf %971, %979 : vector<7x7xf32>
    %981 = vector.extract_strided_slice %151 {offsets = [1, 0], sizes = [7, 7], strides = [1, 1]} : vector<8x8xf32> to vector<7x7xf32>
    %c13_209 = arith.constant 13 : index
    %982 = memref.load %arg5[%c13_209] : memref<72xf32, #tpu.memory_space<smem>>
    %983 = vector.broadcast %982 : f32 to vector<7x7xf32>
    %984 = arith.mulf %983, %981 : vector<7x7xf32>
    %985 = arith.addf %976, %984 : vector<7x7xf32>
    %c49_210 = arith.constant 49 : index
    %986 = memref.load %arg5[%c49_210] : memref<72xf32, #tpu.memory_space<smem>>
    %987 = vector.broadcast %986 : f32 to vector<7x7xf32>
    %988 = arith.mulf %987, %981 : vector<7x7xf32>
    %989 = arith.addf %980, %988 : vector<7x7xf32>
    %990 = vector.extract_strided_slice %143 {offsets = [1, 1], sizes = [7, 7], strides = [1, 1]} : vector<8x8xf32> to vector<7x7xf32>
    %c14_211 = arith.constant 14 : index
    %991 = memref.load %arg5[%c14_211] : memref<72xf32, #tpu.memory_space<smem>>
    %992 = vector.broadcast %991 : f32 to vector<7x7xf32>
    %993 = arith.mulf %992, %990 : vector<7x7xf32>
    %994 = arith.addf %985, %993 : vector<7x7xf32>
    %c50_212 = arith.constant 50 : index
    %995 = memref.load %arg5[%c50_212] : memref<72xf32, #tpu.memory_space<smem>>
    %996 = vector.broadcast %995 : f32 to vector<7x7xf32>
    %997 = arith.mulf %996, %990 : vector<7x7xf32>
    %998 = arith.addf %989, %997 : vector<7x7xf32>
    %999 = vector.extract_strided_slice %159 {offsets = [1, 0], sizes = [7, 7], strides = [1, 1]} : vector<8x8xf32> to vector<7x7xf32>
    %c15_213 = arith.constant 15 : index
    %1000 = memref.load %arg5[%c15_213] : memref<72xf32, #tpu.memory_space<smem>>
    %1001 = vector.broadcast %1000 : f32 to vector<7x7xf32>
    %1002 = arith.mulf %1001, %999 : vector<7x7xf32>
    %1003 = arith.addf %994, %1002 : vector<7x7xf32>
    %c51_214 = arith.constant 51 : index
    %1004 = memref.load %arg5[%c51_214] : memref<72xf32, #tpu.memory_space<smem>>
    %1005 = vector.broadcast %1004 : f32 to vector<7x7xf32>
    %1006 = arith.mulf %1005, %999 : vector<7x7xf32>
    %1007 = arith.addf %998, %1006 : vector<7x7xf32>
    %1008 = vector.extract_strided_slice %167 {offsets = [1, 0], sizes = [7, 7], strides = [1, 1]} : vector<8x8xf32> to vector<7x7xf32>
    %c16_215 = arith.constant 16 : index
    %1009 = memref.load %arg5[%c16_215] : memref<72xf32, #tpu.memory_space<smem>>
    %1010 = vector.broadcast %1009 : f32 to vector<7x7xf32>
    %1011 = arith.mulf %1010, %1008 : vector<7x7xf32>
    %1012 = arith.addf %1003, %1011 : vector<7x7xf32>
    %c52_216 = arith.constant 52 : index
    %1013 = memref.load %arg5[%c52_216] : memref<72xf32, #tpu.memory_space<smem>>
    %1014 = vector.broadcast %1013 : f32 to vector<7x7xf32>
    %1015 = arith.mulf %1014, %1008 : vector<7x7xf32>
    %1016 = arith.addf %1007, %1015 : vector<7x7xf32>
    %1017 = vector.extract_strided_slice %159 {offsets = [1, 1], sizes = [7, 7], strides = [1, 1]} : vector<8x8xf32> to vector<7x7xf32>
    %c17_217 = arith.constant 17 : index
    %1018 = memref.load %arg5[%c17_217] : memref<72xf32, #tpu.memory_space<smem>>
    %1019 = vector.broadcast %1018 : f32 to vector<7x7xf32>
    %1020 = arith.mulf %1019, %1017 : vector<7x7xf32>
    %1021 = arith.addf %1012, %1020 : vector<7x7xf32>
    %c53_218 = arith.constant 53 : index
    %1022 = memref.load %arg5[%c53_218] : memref<72xf32, #tpu.memory_space<smem>>
    %1023 = vector.broadcast %1022 : f32 to vector<7x7xf32>
    %1024 = arith.mulf %1023, %1017 : vector<7x7xf32>
    %1025 = arith.addf %1016, %1024 : vector<7x7xf32>
    %1026 = vector.extract_strided_slice %177 {offsets = [0, 0], sizes = [7, 7], strides = [1, 1]} : vector<8x8xf32> to vector<7x7xf32>
    %c18_219 = arith.constant 18 : index
    %1027 = memref.load %arg5[%c18_219] : memref<72xf32, #tpu.memory_space<smem>>
    %1028 = vector.broadcast %1027 : f32 to vector<7x7xf32>
    %1029 = arith.mulf %1028, %1026 : vector<7x7xf32>
    %1030 = arith.addf %1021, %1029 : vector<7x7xf32>
    %c54_220 = arith.constant 54 : index
    %1031 = memref.load %arg5[%c54_220] : memref<72xf32, #tpu.memory_space<smem>>
    %1032 = vector.broadcast %1031 : f32 to vector<7x7xf32>
    %1033 = arith.mulf %1032, %1026 : vector<7x7xf32>
    %1034 = arith.addf %1025, %1033 : vector<7x7xf32>
    %1035 = vector.extract_strided_slice %181 {offsets = [0, 0], sizes = [7, 7], strides = [1, 1]} : vector<8x8xf32> to vector<7x7xf32>
    %c19_221 = arith.constant 19 : index
    %1036 = memref.load %arg5[%c19_221] : memref<72xf32, #tpu.memory_space<smem>>
    %1037 = vector.broadcast %1036 : f32 to vector<7x7xf32>
    %1038 = arith.mulf %1037, %1035 : vector<7x7xf32>
    %1039 = arith.addf %1030, %1038 : vector<7x7xf32>
    %c55_222 = arith.constant 55 : index
    %1040 = memref.load %arg5[%c55_222] : memref<72xf32, #tpu.memory_space<smem>>
    %1041 = vector.broadcast %1040 : f32 to vector<7x7xf32>
    %1042 = arith.mulf %1041, %1035 : vector<7x7xf32>
    %1043 = arith.addf %1034, %1042 : vector<7x7xf32>
    %1044 = vector.extract_strided_slice %177 {offsets = [0, 1], sizes = [7, 7], strides = [1, 1]} : vector<8x8xf32> to vector<7x7xf32>
    %c20_223 = arith.constant 20 : index
    %1045 = memref.load %arg5[%c20_223] : memref<72xf32, #tpu.memory_space<smem>>
    %1046 = vector.broadcast %1045 : f32 to vector<7x7xf32>
    %1047 = arith.mulf %1046, %1044 : vector<7x7xf32>
    %1048 = arith.addf %1039, %1047 : vector<7x7xf32>
    %c56_224 = arith.constant 56 : index
    %1049 = memref.load %arg5[%c56_224] : memref<72xf32, #tpu.memory_space<smem>>
    %1050 = vector.broadcast %1049 : f32 to vector<7x7xf32>
    %1051 = arith.mulf %1050, %1044 : vector<7x7xf32>
    %1052 = arith.addf %1043, %1051 : vector<7x7xf32>
    %1053 = vector.extract_strided_slice %169 {offsets = [1, 0], sizes = [7, 7], strides = [1, 1]} : vector<8x8xf32> to vector<7x7xf32>
    %c21_225 = arith.constant 21 : index
    %1054 = memref.load %arg5[%c21_225] : memref<72xf32, #tpu.memory_space<smem>>
    %1055 = vector.broadcast %1054 : f32 to vector<7x7xf32>
    %1056 = arith.mulf %1055, %1053 : vector<7x7xf32>
    %1057 = arith.addf %1048, %1056 : vector<7x7xf32>
    %c57_226 = arith.constant 57 : index
    %1058 = memref.load %arg5[%c57_226] : memref<72xf32, #tpu.memory_space<smem>>
    %1059 = vector.broadcast %1058 : f32 to vector<7x7xf32>
    %1060 = arith.mulf %1059, %1053 : vector<7x7xf32>
    %1061 = arith.addf %1052, %1060 : vector<7x7xf32>
    %1062 = vector.extract_strided_slice %173 {offsets = [1, 0], sizes = [7, 7], strides = [1, 1]} : vector<8x8xf32> to vector<7x7xf32>
    %c22_227 = arith.constant 22 : index
    %1063 = memref.load %arg5[%c22_227] : memref<72xf32, #tpu.memory_space<smem>>
    %1064 = vector.broadcast %1063 : f32 to vector<7x7xf32>
    %1065 = arith.mulf %1064, %1062 : vector<7x7xf32>
    %1066 = arith.addf %1057, %1065 : vector<7x7xf32>
    %c58_228 = arith.constant 58 : index
    %1067 = memref.load %arg5[%c58_228] : memref<72xf32, #tpu.memory_space<smem>>
    %1068 = vector.broadcast %1067 : f32 to vector<7x7xf32>
    %1069 = arith.mulf %1068, %1062 : vector<7x7xf32>
    %1070 = arith.addf %1061, %1069 : vector<7x7xf32>
    %1071 = vector.extract_strided_slice %169 {offsets = [1, 1], sizes = [7, 7], strides = [1, 1]} : vector<8x8xf32> to vector<7x7xf32>
    %c23_229 = arith.constant 23 : index
    %1072 = memref.load %arg5[%c23_229] : memref<72xf32, #tpu.memory_space<smem>>
    %1073 = vector.broadcast %1072 : f32 to vector<7x7xf32>
    %1074 = arith.mulf %1073, %1071 : vector<7x7xf32>
    %1075 = arith.addf %1066, %1074 : vector<7x7xf32>
    %c59_230 = arith.constant 59 : index
    %1076 = memref.load %arg5[%c59_230] : memref<72xf32, #tpu.memory_space<smem>>
    %1077 = vector.broadcast %1076 : f32 to vector<7x7xf32>
    %1078 = arith.mulf %1077, %1071 : vector<7x7xf32>
    %1079 = arith.addf %1070, %1078 : vector<7x7xf32>
    %1080 = vector.extract_strided_slice %177 {offsets = [1, 0], sizes = [7, 7], strides = [1, 1]} : vector<8x8xf32> to vector<7x7xf32>
    %c24_231 = arith.constant 24 : index
    %1081 = memref.load %arg5[%c24_231] : memref<72xf32, #tpu.memory_space<smem>>
    %1082 = vector.broadcast %1081 : f32 to vector<7x7xf32>
    %1083 = arith.mulf %1082, %1080 : vector<7x7xf32>
    %1084 = arith.addf %1075, %1083 : vector<7x7xf32>
    %c60_232 = arith.constant 60 : index
    %1085 = memref.load %arg5[%c60_232] : memref<72xf32, #tpu.memory_space<smem>>
    %1086 = vector.broadcast %1085 : f32 to vector<7x7xf32>
    %1087 = arith.mulf %1086, %1080 : vector<7x7xf32>
    %1088 = arith.addf %1079, %1087 : vector<7x7xf32>
    %1089 = vector.extract_strided_slice %181 {offsets = [1, 0], sizes = [7, 7], strides = [1, 1]} : vector<8x8xf32> to vector<7x7xf32>
    %c25_233 = arith.constant 25 : index
    %1090 = memref.load %arg5[%c25_233] : memref<72xf32, #tpu.memory_space<smem>>
    %1091 = vector.broadcast %1090 : f32 to vector<7x7xf32>
    %1092 = arith.mulf %1091, %1089 : vector<7x7xf32>
    %1093 = arith.addf %1084, %1092 : vector<7x7xf32>
    %c61_234 = arith.constant 61 : index
    %1094 = memref.load %arg5[%c61_234] : memref<72xf32, #tpu.memory_space<smem>>
    %1095 = vector.broadcast %1094 : f32 to vector<7x7xf32>
    %1096 = arith.mulf %1095, %1089 : vector<7x7xf32>
    %1097 = arith.addf %1088, %1096 : vector<7x7xf32>
    %1098 = vector.extract_strided_slice %177 {offsets = [1, 1], sizes = [7, 7], strides = [1, 1]} : vector<8x8xf32> to vector<7x7xf32>
    %c26_235 = arith.constant 26 : index
    %1099 = memref.load %arg5[%c26_235] : memref<72xf32, #tpu.memory_space<smem>>
    %1100 = vector.broadcast %1099 : f32 to vector<7x7xf32>
    %1101 = arith.mulf %1100, %1098 : vector<7x7xf32>
    %1102 = arith.addf %1093, %1101 : vector<7x7xf32>
    %c62_236 = arith.constant 62 : index
    %1103 = memref.load %arg5[%c62_236] : memref<72xf32, #tpu.memory_space<smem>>
    %1104 = vector.broadcast %1103 : f32 to vector<7x7xf32>
    %1105 = arith.mulf %1104, %1098 : vector<7x7xf32>
    %1106 = arith.addf %1097, %1105 : vector<7x7xf32>
    %1107 = vector.extract_strided_slice %179 {offsets = [0, 0], sizes = [7, 7], strides = [1, 1]} : vector<8x8xf32> to vector<7x7xf32>
    %c27_237 = arith.constant 27 : index
    %1108 = memref.load %arg5[%c27_237] : memref<72xf32, #tpu.memory_space<smem>>
    %1109 = vector.broadcast %1108 : f32 to vector<7x7xf32>
    %1110 = arith.mulf %1109, %1107 : vector<7x7xf32>
    %1111 = arith.addf %1102, %1110 : vector<7x7xf32>
    %c63_238 = arith.constant 63 : index
    %1112 = memref.load %arg5[%c63_238] : memref<72xf32, #tpu.memory_space<smem>>
    %1113 = vector.broadcast %1112 : f32 to vector<7x7xf32>
    %1114 = arith.mulf %1113, %1107 : vector<7x7xf32>
    %1115 = arith.addf %1106, %1114 : vector<7x7xf32>
    %1116 = vector.extract_strided_slice %183 {offsets = [0, 0], sizes = [7, 7], strides = [1, 1]} : vector<8x8xf32> to vector<7x7xf32>
    %c28_239 = arith.constant 28 : index
    %1117 = memref.load %arg5[%c28_239] : memref<72xf32, #tpu.memory_space<smem>>
    %1118 = vector.broadcast %1117 : f32 to vector<7x7xf32>
    %1119 = arith.mulf %1118, %1116 : vector<7x7xf32>
    %1120 = arith.addf %1111, %1119 : vector<7x7xf32>
    %c64_240 = arith.constant 64 : index
    %1121 = memref.load %arg5[%c64_240] : memref<72xf32, #tpu.memory_space<smem>>
    %1122 = vector.broadcast %1121 : f32 to vector<7x7xf32>
    %1123 = arith.mulf %1122, %1116 : vector<7x7xf32>
    %1124 = arith.addf %1115, %1123 : vector<7x7xf32>
    %1125 = vector.extract_strided_slice %179 {offsets = [0, 1], sizes = [7, 7], strides = [1, 1]} : vector<8x8xf32> to vector<7x7xf32>
    %c29_241 = arith.constant 29 : index
    %1126 = memref.load %arg5[%c29_241] : memref<72xf32, #tpu.memory_space<smem>>
    %1127 = vector.broadcast %1126 : f32 to vector<7x7xf32>
    %1128 = arith.mulf %1127, %1125 : vector<7x7xf32>
    %1129 = arith.addf %1120, %1128 : vector<7x7xf32>
    %c65_242 = arith.constant 65 : index
    %1130 = memref.load %arg5[%c65_242] : memref<72xf32, #tpu.memory_space<smem>>
    %1131 = vector.broadcast %1130 : f32 to vector<7x7xf32>
    %1132 = arith.mulf %1131, %1125 : vector<7x7xf32>
    %1133 = arith.addf %1124, %1132 : vector<7x7xf32>
    %1134 = vector.extract_strided_slice %171 {offsets = [1, 0], sizes = [7, 7], strides = [1, 1]} : vector<8x8xf32> to vector<7x7xf32>
    %c30_243 = arith.constant 30 : index
    %1135 = memref.load %arg5[%c30_243] : memref<72xf32, #tpu.memory_space<smem>>
    %1136 = vector.broadcast %1135 : f32 to vector<7x7xf32>
    %1137 = arith.mulf %1136, %1134 : vector<7x7xf32>
    %1138 = arith.addf %1129, %1137 : vector<7x7xf32>
    %c66_244 = arith.constant 66 : index
    %1139 = memref.load %arg5[%c66_244] : memref<72xf32, #tpu.memory_space<smem>>
    %1140 = vector.broadcast %1139 : f32 to vector<7x7xf32>
    %1141 = arith.mulf %1140, %1134 : vector<7x7xf32>
    %1142 = arith.addf %1133, %1141 : vector<7x7xf32>
    %1143 = vector.extract_strided_slice %175 {offsets = [1, 0], sizes = [7, 7], strides = [1, 1]} : vector<8x8xf32> to vector<7x7xf32>
    %c31_245 = arith.constant 31 : index
    %1144 = memref.load %arg5[%c31_245] : memref<72xf32, #tpu.memory_space<smem>>
    %1145 = vector.broadcast %1144 : f32 to vector<7x7xf32>
    %1146 = arith.mulf %1145, %1143 : vector<7x7xf32>
    %1147 = arith.addf %1138, %1146 : vector<7x7xf32>
    %c67_246 = arith.constant 67 : index
    %1148 = memref.load %arg5[%c67_246] : memref<72xf32, #tpu.memory_space<smem>>
    %1149 = vector.broadcast %1148 : f32 to vector<7x7xf32>
    %1150 = arith.mulf %1149, %1143 : vector<7x7xf32>
    %1151 = arith.addf %1142, %1150 : vector<7x7xf32>
    %1152 = vector.extract_strided_slice %171 {offsets = [1, 1], sizes = [7, 7], strides = [1, 1]} : vector<8x8xf32> to vector<7x7xf32>
    %c32_247 = arith.constant 32 : index
    %1153 = memref.load %arg5[%c32_247] : memref<72xf32, #tpu.memory_space<smem>>
    %1154 = vector.broadcast %1153 : f32 to vector<7x7xf32>
    %1155 = arith.mulf %1154, %1152 : vector<7x7xf32>
    %1156 = arith.addf %1147, %1155 : vector<7x7xf32>
    %c68_248 = arith.constant 68 : index
    %1157 = memref.load %arg5[%c68_248] : memref<72xf32, #tpu.memory_space<smem>>
    %1158 = vector.broadcast %1157 : f32 to vector<7x7xf32>
    %1159 = arith.mulf %1158, %1152 : vector<7x7xf32>
    %1160 = arith.addf %1151, %1159 : vector<7x7xf32>
    %1161 = vector.extract_strided_slice %179 {offsets = [1, 0], sizes = [7, 7], strides = [1, 1]} : vector<8x8xf32> to vector<7x7xf32>
    %c33_249 = arith.constant 33 : index
    %1162 = memref.load %arg5[%c33_249] : memref<72xf32, #tpu.memory_space<smem>>
    %1163 = vector.broadcast %1162 : f32 to vector<7x7xf32>
    %1164 = arith.mulf %1163, %1161 : vector<7x7xf32>
    %1165 = arith.addf %1156, %1164 : vector<7x7xf32>
    %c69_250 = arith.constant 69 : index
    %1166 = memref.load %arg5[%c69_250] : memref<72xf32, #tpu.memory_space<smem>>
    %1167 = vector.broadcast %1166 : f32 to vector<7x7xf32>
    %1168 = arith.mulf %1167, %1161 : vector<7x7xf32>
    %1169 = arith.addf %1160, %1168 : vector<7x7xf32>
    %1170 = vector.extract_strided_slice %183 {offsets = [1, 0], sizes = [7, 7], strides = [1, 1]} : vector<8x8xf32> to vector<7x7xf32>
    %c34_251 = arith.constant 34 : index
    %1171 = memref.load %arg5[%c34_251] : memref<72xf32, #tpu.memory_space<smem>>
    %1172 = vector.broadcast %1171 : f32 to vector<7x7xf32>
    %1173 = arith.mulf %1172, %1170 : vector<7x7xf32>
    %1174 = arith.addf %1165, %1173 : vector<7x7xf32>
    %c70_252 = arith.constant 70 : index
    %1175 = memref.load %arg5[%c70_252] : memref<72xf32, #tpu.memory_space<smem>>
    %1176 = vector.broadcast %1175 : f32 to vector<7x7xf32>
    %1177 = arith.mulf %1176, %1170 : vector<7x7xf32>
    %1178 = arith.addf %1169, %1177 : vector<7x7xf32>
    %1179 = vector.extract_strided_slice %179 {offsets = [1, 1], sizes = [7, 7], strides = [1, 1]} : vector<8x8xf32> to vector<7x7xf32>
    %c35_253 = arith.constant 35 : index
    %1180 = memref.load %arg5[%c35_253] : memref<72xf32, #tpu.memory_space<smem>>
    %1181 = vector.broadcast %1180 : f32 to vector<7x7xf32>
    %1182 = arith.mulf %1181, %1179 : vector<7x7xf32>
    %1183 = arith.addf %1174, %1182 : vector<7x7xf32>
    %c71_254 = arith.constant 71 : index
    %1184 = memref.load %arg5[%c71_254] : memref<72xf32, #tpu.memory_space<smem>>
    %1185 = vector.broadcast %1184 : f32 to vector<7x7xf32>
    %1186 = arith.mulf %1185, %1179 : vector<7x7xf32>
    %1187 = arith.addf %1178, %1186 : vector<7x7xf32>
    %cst_255 = arith.constant 0.000000e+00 : f32
    %1188 = vector.broadcast %cst_255 : f32 to vector<7x7xf32>
    %1189 = arith.maximumf %1183, %1188 : vector<7x7xf32>
    %cst_256 = arith.constant 0.000000e+00 : f32
    %1190 = vector.broadcast %cst_256 : f32 to vector<7x7xf32>
    %1191 = arith.maximumf %1187, %1190 : vector<7x7xf32>
    %cst_257 = arith.constant 0.000000e+00 : f32
    %1192 = vector.broadcast %cst_257 : f32 to vector<7x7xf32>
    %c0_258 = arith.constant 0 : index
    %1193 = memref.load %arg6[%c0_258] : memref<2xf32, #tpu.memory_space<smem>>
    %1194 = vector.broadcast %1193 : f32 to vector<7x7xf32>
    %1195 = arith.addf %1192, %1194 : vector<7x7xf32>
    %cst_259 = arith.constant 0.000000e+00 : f32
    %1196 = vector.broadcast %cst_259 : f32 to vector<7x7xf32>
    %c1_260 = arith.constant 1 : index
    %1197 = memref.load %arg6[%c1_260] : memref<2xf32, #tpu.memory_space<smem>>
    %1198 = vector.broadcast %1197 : f32 to vector<7x7xf32>
    %1199 = arith.addf %1196, %1198 : vector<7x7xf32>
    %1200 = vector.extract_strided_slice %163 {offsets = [0, 0], sizes = [7, 7], strides = [1, 1]} : vector<8x8xf32> to vector<7x7xf32>
    %c0_261 = arith.constant 0 : index
    %1201 = memref.load %arg5[%c0_261] : memref<72xf32, #tpu.memory_space<smem>>
    %1202 = vector.broadcast %1201 : f32 to vector<7x7xf32>
    %1203 = arith.mulf %1202, %1200 : vector<7x7xf32>
    %1204 = arith.addf %1195, %1203 : vector<7x7xf32>
    %c36_262 = arith.constant 36 : index
    %1205 = memref.load %arg5[%c36_262] : memref<72xf32, #tpu.memory_space<smem>>
    %1206 = vector.broadcast %1205 : f32 to vector<7x7xf32>
    %1207 = arith.mulf %1206, %1200 : vector<7x7xf32>
    %1208 = arith.addf %1199, %1207 : vector<7x7xf32>
    %1209 = vector.extract_strided_slice %155 {offsets = [0, 1], sizes = [7, 7], strides = [1, 1]} : vector<8x8xf32> to vector<7x7xf32>
    %c1_263 = arith.constant 1 : index
    %1210 = memref.load %arg5[%c1_263] : memref<72xf32, #tpu.memory_space<smem>>
    %1211 = vector.broadcast %1210 : f32 to vector<7x7xf32>
    %1212 = arith.mulf %1211, %1209 : vector<7x7xf32>
    %1213 = arith.addf %1204, %1212 : vector<7x7xf32>
    %c37_264 = arith.constant 37 : index
    %1214 = memref.load %arg5[%c37_264] : memref<72xf32, #tpu.memory_space<smem>>
    %1215 = vector.broadcast %1214 : f32 to vector<7x7xf32>
    %1216 = arith.mulf %1215, %1209 : vector<7x7xf32>
    %1217 = arith.addf %1208, %1216 : vector<7x7xf32>
    %1218 = vector.extract_strided_slice %163 {offsets = [0, 1], sizes = [7, 7], strides = [1, 1]} : vector<8x8xf32> to vector<7x7xf32>
    %c2_265 = arith.constant 2 : index
    %1219 = memref.load %arg5[%c2_265] : memref<72xf32, #tpu.memory_space<smem>>
    %1220 = vector.broadcast %1219 : f32 to vector<7x7xf32>
    %1221 = arith.mulf %1220, %1218 : vector<7x7xf32>
    %1222 = arith.addf %1213, %1221 : vector<7x7xf32>
    %c38_266 = arith.constant 38 : index
    %1223 = memref.load %arg5[%c38_266] : memref<72xf32, #tpu.memory_space<smem>>
    %1224 = vector.broadcast %1223 : f32 to vector<7x7xf32>
    %1225 = arith.mulf %1224, %1218 : vector<7x7xf32>
    %1226 = arith.addf %1217, %1225 : vector<7x7xf32>
    %1227 = vector.extract_strided_slice %147 {offsets = [1, 0], sizes = [7, 7], strides = [1, 1]} : vector<8x8xf32> to vector<7x7xf32>
    %c3_267 = arith.constant 3 : index
    %1228 = memref.load %arg5[%c3_267] : memref<72xf32, #tpu.memory_space<smem>>
    %1229 = vector.broadcast %1228 : f32 to vector<7x7xf32>
    %1230 = arith.mulf %1229, %1227 : vector<7x7xf32>
    %1231 = arith.addf %1222, %1230 : vector<7x7xf32>
    %c39_268 = arith.constant 39 : index
    %1232 = memref.load %arg5[%c39_268] : memref<72xf32, #tpu.memory_space<smem>>
    %1233 = vector.broadcast %1232 : f32 to vector<7x7xf32>
    %1234 = arith.mulf %1233, %1227 : vector<7x7xf32>
    %1235 = arith.addf %1226, %1234 : vector<7x7xf32>
    %1236 = vector.extract_strided_slice %139 {offsets = [1, 1], sizes = [7, 7], strides = [1, 1]} : vector<8x8xf32> to vector<7x7xf32>
    %c4_269 = arith.constant 4 : index
    %1237 = memref.load %arg5[%c4_269] : memref<72xf32, #tpu.memory_space<smem>>
    %1238 = vector.broadcast %1237 : f32 to vector<7x7xf32>
    %1239 = arith.mulf %1238, %1236 : vector<7x7xf32>
    %1240 = arith.addf %1231, %1239 : vector<7x7xf32>
    %c40_270 = arith.constant 40 : index
    %1241 = memref.load %arg5[%c40_270] : memref<72xf32, #tpu.memory_space<smem>>
    %1242 = vector.broadcast %1241 : f32 to vector<7x7xf32>
    %1243 = arith.mulf %1242, %1236 : vector<7x7xf32>
    %1244 = arith.addf %1235, %1243 : vector<7x7xf32>
    %1245 = vector.extract_strided_slice %147 {offsets = [1, 1], sizes = [7, 7], strides = [1, 1]} : vector<8x8xf32> to vector<7x7xf32>
    %c5_271 = arith.constant 5 : index
    %1246 = memref.load %arg5[%c5_271] : memref<72xf32, #tpu.memory_space<smem>>
    %1247 = vector.broadcast %1246 : f32 to vector<7x7xf32>
    %1248 = arith.mulf %1247, %1245 : vector<7x7xf32>
    %1249 = arith.addf %1240, %1248 : vector<7x7xf32>
    %c41_272 = arith.constant 41 : index
    %1250 = memref.load %arg5[%c41_272] : memref<72xf32, #tpu.memory_space<smem>>
    %1251 = vector.broadcast %1250 : f32 to vector<7x7xf32>
    %1252 = arith.mulf %1251, %1245 : vector<7x7xf32>
    %1253 = arith.addf %1244, %1252 : vector<7x7xf32>
    %1254 = vector.extract_strided_slice %163 {offsets = [1, 0], sizes = [7, 7], strides = [1, 1]} : vector<8x8xf32> to vector<7x7xf32>
    %c6_273 = arith.constant 6 : index
    %1255 = memref.load %arg5[%c6_273] : memref<72xf32, #tpu.memory_space<smem>>
    %1256 = vector.broadcast %1255 : f32 to vector<7x7xf32>
    %1257 = arith.mulf %1256, %1254 : vector<7x7xf32>
    %1258 = arith.addf %1249, %1257 : vector<7x7xf32>
    %c42_274 = arith.constant 42 : index
    %1259 = memref.load %arg5[%c42_274] : memref<72xf32, #tpu.memory_space<smem>>
    %1260 = vector.broadcast %1259 : f32 to vector<7x7xf32>
    %1261 = arith.mulf %1260, %1254 : vector<7x7xf32>
    %1262 = arith.addf %1253, %1261 : vector<7x7xf32>
    %1263 = vector.extract_strided_slice %155 {offsets = [1, 1], sizes = [7, 7], strides = [1, 1]} : vector<8x8xf32> to vector<7x7xf32>
    %c7_275 = arith.constant 7 : index
    %1264 = memref.load %arg5[%c7_275] : memref<72xf32, #tpu.memory_space<smem>>
    %1265 = vector.broadcast %1264 : f32 to vector<7x7xf32>
    %1266 = arith.mulf %1265, %1263 : vector<7x7xf32>
    %1267 = arith.addf %1258, %1266 : vector<7x7xf32>
    %c43_276 = arith.constant 43 : index
    %1268 = memref.load %arg5[%c43_276] : memref<72xf32, #tpu.memory_space<smem>>
    %1269 = vector.broadcast %1268 : f32 to vector<7x7xf32>
    %1270 = arith.mulf %1269, %1263 : vector<7x7xf32>
    %1271 = arith.addf %1262, %1270 : vector<7x7xf32>
    %1272 = vector.extract_strided_slice %163 {offsets = [1, 1], sizes = [7, 7], strides = [1, 1]} : vector<8x8xf32> to vector<7x7xf32>
    %c8_277 = arith.constant 8 : index
    %1273 = memref.load %arg5[%c8_277] : memref<72xf32, #tpu.memory_space<smem>>
    %1274 = vector.broadcast %1273 : f32 to vector<7x7xf32>
    %1275 = arith.mulf %1274, %1272 : vector<7x7xf32>
    %1276 = arith.addf %1267, %1275 : vector<7x7xf32>
    %c44_278 = arith.constant 44 : index
    %1277 = memref.load %arg5[%c44_278] : memref<72xf32, #tpu.memory_space<smem>>
    %1278 = vector.broadcast %1277 : f32 to vector<7x7xf32>
    %1279 = arith.mulf %1278, %1272 : vector<7x7xf32>
    %1280 = arith.addf %1271, %1279 : vector<7x7xf32>
    %1281 = vector.extract_strided_slice %167 {offsets = [0, 0], sizes = [7, 7], strides = [1, 1]} : vector<8x8xf32> to vector<7x7xf32>
    %c9_279 = arith.constant 9 : index
    %1282 = memref.load %arg5[%c9_279] : memref<72xf32, #tpu.memory_space<smem>>
    %1283 = vector.broadcast %1282 : f32 to vector<7x7xf32>
    %1284 = arith.mulf %1283, %1281 : vector<7x7xf32>
    %1285 = arith.addf %1276, %1284 : vector<7x7xf32>
    %c45_280 = arith.constant 45 : index
    %1286 = memref.load %arg5[%c45_280] : memref<72xf32, #tpu.memory_space<smem>>
    %1287 = vector.broadcast %1286 : f32 to vector<7x7xf32>
    %1288 = arith.mulf %1287, %1281 : vector<7x7xf32>
    %1289 = arith.addf %1280, %1288 : vector<7x7xf32>
    %1290 = vector.extract_strided_slice %159 {offsets = [0, 1], sizes = [7, 7], strides = [1, 1]} : vector<8x8xf32> to vector<7x7xf32>
    %c10_281 = arith.constant 10 : index
    %1291 = memref.load %arg5[%c10_281] : memref<72xf32, #tpu.memory_space<smem>>
    %1292 = vector.broadcast %1291 : f32 to vector<7x7xf32>
    %1293 = arith.mulf %1292, %1290 : vector<7x7xf32>
    %1294 = arith.addf %1285, %1293 : vector<7x7xf32>
    %c46_282 = arith.constant 46 : index
    %1295 = memref.load %arg5[%c46_282] : memref<72xf32, #tpu.memory_space<smem>>
    %1296 = vector.broadcast %1295 : f32 to vector<7x7xf32>
    %1297 = arith.mulf %1296, %1290 : vector<7x7xf32>
    %1298 = arith.addf %1289, %1297 : vector<7x7xf32>
    %1299 = vector.extract_strided_slice %167 {offsets = [0, 1], sizes = [7, 7], strides = [1, 1]} : vector<8x8xf32> to vector<7x7xf32>
    %c11_283 = arith.constant 11 : index
    %1300 = memref.load %arg5[%c11_283] : memref<72xf32, #tpu.memory_space<smem>>
    %1301 = vector.broadcast %1300 : f32 to vector<7x7xf32>
    %1302 = arith.mulf %1301, %1299 : vector<7x7xf32>
    %1303 = arith.addf %1294, %1302 : vector<7x7xf32>
    %c47_284 = arith.constant 47 : index
    %1304 = memref.load %arg5[%c47_284] : memref<72xf32, #tpu.memory_space<smem>>
    %1305 = vector.broadcast %1304 : f32 to vector<7x7xf32>
    %1306 = arith.mulf %1305, %1299 : vector<7x7xf32>
    %1307 = arith.addf %1298, %1306 : vector<7x7xf32>
    %1308 = vector.extract_strided_slice %151 {offsets = [1, 0], sizes = [7, 7], strides = [1, 1]} : vector<8x8xf32> to vector<7x7xf32>
    %c12_285 = arith.constant 12 : index
    %1309 = memref.load %arg5[%c12_285] : memref<72xf32, #tpu.memory_space<smem>>
    %1310 = vector.broadcast %1309 : f32 to vector<7x7xf32>
    %1311 = arith.mulf %1310, %1308 : vector<7x7xf32>
    %1312 = arith.addf %1303, %1311 : vector<7x7xf32>
    %c48_286 = arith.constant 48 : index
    %1313 = memref.load %arg5[%c48_286] : memref<72xf32, #tpu.memory_space<smem>>
    %1314 = vector.broadcast %1313 : f32 to vector<7x7xf32>
    %1315 = arith.mulf %1314, %1308 : vector<7x7xf32>
    %1316 = arith.addf %1307, %1315 : vector<7x7xf32>
    %1317 = vector.extract_strided_slice %143 {offsets = [1, 1], sizes = [7, 7], strides = [1, 1]} : vector<8x8xf32> to vector<7x7xf32>
    %c13_287 = arith.constant 13 : index
    %1318 = memref.load %arg5[%c13_287] : memref<72xf32, #tpu.memory_space<smem>>
    %1319 = vector.broadcast %1318 : f32 to vector<7x7xf32>
    %1320 = arith.mulf %1319, %1317 : vector<7x7xf32>
    %1321 = arith.addf %1312, %1320 : vector<7x7xf32>
    %c49_288 = arith.constant 49 : index
    %1322 = memref.load %arg5[%c49_288] : memref<72xf32, #tpu.memory_space<smem>>
    %1323 = vector.broadcast %1322 : f32 to vector<7x7xf32>
    %1324 = arith.mulf %1323, %1317 : vector<7x7xf32>
    %1325 = arith.addf %1316, %1324 : vector<7x7xf32>
    %1326 = vector.extract_strided_slice %151 {offsets = [1, 1], sizes = [7, 7], strides = [1, 1]} : vector<8x8xf32> to vector<7x7xf32>
    %c14_289 = arith.constant 14 : index
    %1327 = memref.load %arg5[%c14_289] : memref<72xf32, #tpu.memory_space<smem>>
    %1328 = vector.broadcast %1327 : f32 to vector<7x7xf32>
    %1329 = arith.mulf %1328, %1326 : vector<7x7xf32>
    %1330 = arith.addf %1321, %1329 : vector<7x7xf32>
    %c50_290 = arith.constant 50 : index
    %1331 = memref.load %arg5[%c50_290] : memref<72xf32, #tpu.memory_space<smem>>
    %1332 = vector.broadcast %1331 : f32 to vector<7x7xf32>
    %1333 = arith.mulf %1332, %1326 : vector<7x7xf32>
    %1334 = arith.addf %1325, %1333 : vector<7x7xf32>
    %1335 = vector.extract_strided_slice %167 {offsets = [1, 0], sizes = [7, 7], strides = [1, 1]} : vector<8x8xf32> to vector<7x7xf32>
    %c15_291 = arith.constant 15 : index
    %1336 = memref.load %arg5[%c15_291] : memref<72xf32, #tpu.memory_space<smem>>
    %1337 = vector.broadcast %1336 : f32 to vector<7x7xf32>
    %1338 = arith.mulf %1337, %1335 : vector<7x7xf32>
    %1339 = arith.addf %1330, %1338 : vector<7x7xf32>
    %c51_292 = arith.constant 51 : index
    %1340 = memref.load %arg5[%c51_292] : memref<72xf32, #tpu.memory_space<smem>>
    %1341 = vector.broadcast %1340 : f32 to vector<7x7xf32>
    %1342 = arith.mulf %1341, %1335 : vector<7x7xf32>
    %1343 = arith.addf %1334, %1342 : vector<7x7xf32>
    %1344 = vector.extract_strided_slice %159 {offsets = [1, 1], sizes = [7, 7], strides = [1, 1]} : vector<8x8xf32> to vector<7x7xf32>
    %c16_293 = arith.constant 16 : index
    %1345 = memref.load %arg5[%c16_293] : memref<72xf32, #tpu.memory_space<smem>>
    %1346 = vector.broadcast %1345 : f32 to vector<7x7xf32>
    %1347 = arith.mulf %1346, %1344 : vector<7x7xf32>
    %1348 = arith.addf %1339, %1347 : vector<7x7xf32>
    %c52_294 = arith.constant 52 : index
    %1349 = memref.load %arg5[%c52_294] : memref<72xf32, #tpu.memory_space<smem>>
    %1350 = vector.broadcast %1349 : f32 to vector<7x7xf32>
    %1351 = arith.mulf %1350, %1344 : vector<7x7xf32>
    %1352 = arith.addf %1343, %1351 : vector<7x7xf32>
    %1353 = vector.extract_strided_slice %167 {offsets = [1, 1], sizes = [7, 7], strides = [1, 1]} : vector<8x8xf32> to vector<7x7xf32>
    %c17_295 = arith.constant 17 : index
    %1354 = memref.load %arg5[%c17_295] : memref<72xf32, #tpu.memory_space<smem>>
    %1355 = vector.broadcast %1354 : f32 to vector<7x7xf32>
    %1356 = arith.mulf %1355, %1353 : vector<7x7xf32>
    %1357 = arith.addf %1348, %1356 : vector<7x7xf32>
    %c53_296 = arith.constant 53 : index
    %1358 = memref.load %arg5[%c53_296] : memref<72xf32, #tpu.memory_space<smem>>
    %1359 = vector.broadcast %1358 : f32 to vector<7x7xf32>
    %1360 = arith.mulf %1359, %1353 : vector<7x7xf32>
    %1361 = arith.addf %1352, %1360 : vector<7x7xf32>
    %1362 = vector.extract_strided_slice %181 {offsets = [0, 0], sizes = [7, 7], strides = [1, 1]} : vector<8x8xf32> to vector<7x7xf32>
    %c18_297 = arith.constant 18 : index
    %1363 = memref.load %arg5[%c18_297] : memref<72xf32, #tpu.memory_space<smem>>
    %1364 = vector.broadcast %1363 : f32 to vector<7x7xf32>
    %1365 = arith.mulf %1364, %1362 : vector<7x7xf32>
    %1366 = arith.addf %1357, %1365 : vector<7x7xf32>
    %c54_298 = arith.constant 54 : index
    %1367 = memref.load %arg5[%c54_298] : memref<72xf32, #tpu.memory_space<smem>>
    %1368 = vector.broadcast %1367 : f32 to vector<7x7xf32>
    %1369 = arith.mulf %1368, %1362 : vector<7x7xf32>
    %1370 = arith.addf %1361, %1369 : vector<7x7xf32>
    %1371 = vector.extract_strided_slice %177 {offsets = [0, 1], sizes = [7, 7], strides = [1, 1]} : vector<8x8xf32> to vector<7x7xf32>
    %c19_299 = arith.constant 19 : index
    %1372 = memref.load %arg5[%c19_299] : memref<72xf32, #tpu.memory_space<smem>>
    %1373 = vector.broadcast %1372 : f32 to vector<7x7xf32>
    %1374 = arith.mulf %1373, %1371 : vector<7x7xf32>
    %1375 = arith.addf %1366, %1374 : vector<7x7xf32>
    %c55_300 = arith.constant 55 : index
    %1376 = memref.load %arg5[%c55_300] : memref<72xf32, #tpu.memory_space<smem>>
    %1377 = vector.broadcast %1376 : f32 to vector<7x7xf32>
    %1378 = arith.mulf %1377, %1371 : vector<7x7xf32>
    %1379 = arith.addf %1370, %1378 : vector<7x7xf32>
    %1380 = vector.extract_strided_slice %181 {offsets = [0, 1], sizes = [7, 7], strides = [1, 1]} : vector<8x8xf32> to vector<7x7xf32>
    %c20_301 = arith.constant 20 : index
    %1381 = memref.load %arg5[%c20_301] : memref<72xf32, #tpu.memory_space<smem>>
    %1382 = vector.broadcast %1381 : f32 to vector<7x7xf32>
    %1383 = arith.mulf %1382, %1380 : vector<7x7xf32>
    %1384 = arith.addf %1375, %1383 : vector<7x7xf32>
    %c56_302 = arith.constant 56 : index
    %1385 = memref.load %arg5[%c56_302] : memref<72xf32, #tpu.memory_space<smem>>
    %1386 = vector.broadcast %1385 : f32 to vector<7x7xf32>
    %1387 = arith.mulf %1386, %1380 : vector<7x7xf32>
    %1388 = arith.addf %1379, %1387 : vector<7x7xf32>
    %1389 = vector.extract_strided_slice %173 {offsets = [1, 0], sizes = [7, 7], strides = [1, 1]} : vector<8x8xf32> to vector<7x7xf32>
    %c21_303 = arith.constant 21 : index
    %1390 = memref.load %arg5[%c21_303] : memref<72xf32, #tpu.memory_space<smem>>
    %1391 = vector.broadcast %1390 : f32 to vector<7x7xf32>
    %1392 = arith.mulf %1391, %1389 : vector<7x7xf32>
    %1393 = arith.addf %1384, %1392 : vector<7x7xf32>
    %c57_304 = arith.constant 57 : index
    %1394 = memref.load %arg5[%c57_304] : memref<72xf32, #tpu.memory_space<smem>>
    %1395 = vector.broadcast %1394 : f32 to vector<7x7xf32>
    %1396 = arith.mulf %1395, %1389 : vector<7x7xf32>
    %1397 = arith.addf %1388, %1396 : vector<7x7xf32>
    %1398 = vector.extract_strided_slice %169 {offsets = [1, 1], sizes = [7, 7], strides = [1, 1]} : vector<8x8xf32> to vector<7x7xf32>
    %c22_305 = arith.constant 22 : index
    %1399 = memref.load %arg5[%c22_305] : memref<72xf32, #tpu.memory_space<smem>>
    %1400 = vector.broadcast %1399 : f32 to vector<7x7xf32>
    %1401 = arith.mulf %1400, %1398 : vector<7x7xf32>
    %1402 = arith.addf %1393, %1401 : vector<7x7xf32>
    %c58_306 = arith.constant 58 : index
    %1403 = memref.load %arg5[%c58_306] : memref<72xf32, #tpu.memory_space<smem>>
    %1404 = vector.broadcast %1403 : f32 to vector<7x7xf32>
    %1405 = arith.mulf %1404, %1398 : vector<7x7xf32>
    %1406 = arith.addf %1397, %1405 : vector<7x7xf32>
    %1407 = vector.extract_strided_slice %173 {offsets = [1, 1], sizes = [7, 7], strides = [1, 1]} : vector<8x8xf32> to vector<7x7xf32>
    %c23_307 = arith.constant 23 : index
    %1408 = memref.load %arg5[%c23_307] : memref<72xf32, #tpu.memory_space<smem>>
    %1409 = vector.broadcast %1408 : f32 to vector<7x7xf32>
    %1410 = arith.mulf %1409, %1407 : vector<7x7xf32>
    %1411 = arith.addf %1402, %1410 : vector<7x7xf32>
    %c59_308 = arith.constant 59 : index
    %1412 = memref.load %arg5[%c59_308] : memref<72xf32, #tpu.memory_space<smem>>
    %1413 = vector.broadcast %1412 : f32 to vector<7x7xf32>
    %1414 = arith.mulf %1413, %1407 : vector<7x7xf32>
    %1415 = arith.addf %1406, %1414 : vector<7x7xf32>
    %1416 = vector.extract_strided_slice %181 {offsets = [1, 0], sizes = [7, 7], strides = [1, 1]} : vector<8x8xf32> to vector<7x7xf32>
    %c24_309 = arith.constant 24 : index
    %1417 = memref.load %arg5[%c24_309] : memref<72xf32, #tpu.memory_space<smem>>
    %1418 = vector.broadcast %1417 : f32 to vector<7x7xf32>
    %1419 = arith.mulf %1418, %1416 : vector<7x7xf32>
    %1420 = arith.addf %1411, %1419 : vector<7x7xf32>
    %c60_310 = arith.constant 60 : index
    %1421 = memref.load %arg5[%c60_310] : memref<72xf32, #tpu.memory_space<smem>>
    %1422 = vector.broadcast %1421 : f32 to vector<7x7xf32>
    %1423 = arith.mulf %1422, %1416 : vector<7x7xf32>
    %1424 = arith.addf %1415, %1423 : vector<7x7xf32>
    %1425 = vector.extract_strided_slice %177 {offsets = [1, 1], sizes = [7, 7], strides = [1, 1]} : vector<8x8xf32> to vector<7x7xf32>
    %c25_311 = arith.constant 25 : index
    %1426 = memref.load %arg5[%c25_311] : memref<72xf32, #tpu.memory_space<smem>>
    %1427 = vector.broadcast %1426 : f32 to vector<7x7xf32>
    %1428 = arith.mulf %1427, %1425 : vector<7x7xf32>
    %1429 = arith.addf %1420, %1428 : vector<7x7xf32>
    %c61_312 = arith.constant 61 : index
    %1430 = memref.load %arg5[%c61_312] : memref<72xf32, #tpu.memory_space<smem>>
    %1431 = vector.broadcast %1430 : f32 to vector<7x7xf32>
    %1432 = arith.mulf %1431, %1425 : vector<7x7xf32>
    %1433 = arith.addf %1424, %1432 : vector<7x7xf32>
    %1434 = vector.extract_strided_slice %181 {offsets = [1, 1], sizes = [7, 7], strides = [1, 1]} : vector<8x8xf32> to vector<7x7xf32>
    %c26_313 = arith.constant 26 : index
    %1435 = memref.load %arg5[%c26_313] : memref<72xf32, #tpu.memory_space<smem>>
    %1436 = vector.broadcast %1435 : f32 to vector<7x7xf32>
    %1437 = arith.mulf %1436, %1434 : vector<7x7xf32>
    %1438 = arith.addf %1429, %1437 : vector<7x7xf32>
    %c62_314 = arith.constant 62 : index
    %1439 = memref.load %arg5[%c62_314] : memref<72xf32, #tpu.memory_space<smem>>
    %1440 = vector.broadcast %1439 : f32 to vector<7x7xf32>
    %1441 = arith.mulf %1440, %1434 : vector<7x7xf32>
    %1442 = arith.addf %1433, %1441 : vector<7x7xf32>
    %1443 = vector.extract_strided_slice %183 {offsets = [0, 0], sizes = [7, 7], strides = [1, 1]} : vector<8x8xf32> to vector<7x7xf32>
    %c27_315 = arith.constant 27 : index
    %1444 = memref.load %arg5[%c27_315] : memref<72xf32, #tpu.memory_space<smem>>
    %1445 = vector.broadcast %1444 : f32 to vector<7x7xf32>
    %1446 = arith.mulf %1445, %1443 : vector<7x7xf32>
    %1447 = arith.addf %1438, %1446 : vector<7x7xf32>
    %c63_316 = arith.constant 63 : index
    %1448 = memref.load %arg5[%c63_316] : memref<72xf32, #tpu.memory_space<smem>>
    %1449 = vector.broadcast %1448 : f32 to vector<7x7xf32>
    %1450 = arith.mulf %1449, %1443 : vector<7x7xf32>
    %1451 = arith.addf %1442, %1450 : vector<7x7xf32>
    %1452 = vector.extract_strided_slice %179 {offsets = [0, 1], sizes = [7, 7], strides = [1, 1]} : vector<8x8xf32> to vector<7x7xf32>
    %c28_317 = arith.constant 28 : index
    %1453 = memref.load %arg5[%c28_317] : memref<72xf32, #tpu.memory_space<smem>>
    %1454 = vector.broadcast %1453 : f32 to vector<7x7xf32>
    %1455 = arith.mulf %1454, %1452 : vector<7x7xf32>
    %1456 = arith.addf %1447, %1455 : vector<7x7xf32>
    %c64_318 = arith.constant 64 : index
    %1457 = memref.load %arg5[%c64_318] : memref<72xf32, #tpu.memory_space<smem>>
    %1458 = vector.broadcast %1457 : f32 to vector<7x7xf32>
    %1459 = arith.mulf %1458, %1452 : vector<7x7xf32>
    %1460 = arith.addf %1451, %1459 : vector<7x7xf32>
    %1461 = vector.extract_strided_slice %183 {offsets = [0, 1], sizes = [7, 7], strides = [1, 1]} : vector<8x8xf32> to vector<7x7xf32>
    %c29_319 = arith.constant 29 : index
    %1462 = memref.load %arg5[%c29_319] : memref<72xf32, #tpu.memory_space<smem>>
    %1463 = vector.broadcast %1462 : f32 to vector<7x7xf32>
    %1464 = arith.mulf %1463, %1461 : vector<7x7xf32>
    %1465 = arith.addf %1456, %1464 : vector<7x7xf32>
    %c65_320 = arith.constant 65 : index
    %1466 = memref.load %arg5[%c65_320] : memref<72xf32, #tpu.memory_space<smem>>
    %1467 = vector.broadcast %1466 : f32 to vector<7x7xf32>
    %1468 = arith.mulf %1467, %1461 : vector<7x7xf32>
    %1469 = arith.addf %1460, %1468 : vector<7x7xf32>
    %1470 = vector.extract_strided_slice %175 {offsets = [1, 0], sizes = [7, 7], strides = [1, 1]} : vector<8x8xf32> to vector<7x7xf32>
    %c30_321 = arith.constant 30 : index
    %1471 = memref.load %arg5[%c30_321] : memref<72xf32, #tpu.memory_space<smem>>
    %1472 = vector.broadcast %1471 : f32 to vector<7x7xf32>
    %1473 = arith.mulf %1472, %1470 : vector<7x7xf32>
    %1474 = arith.addf %1465, %1473 : vector<7x7xf32>
    %c66_322 = arith.constant 66 : index
    %1475 = memref.load %arg5[%c66_322] : memref<72xf32, #tpu.memory_space<smem>>
    %1476 = vector.broadcast %1475 : f32 to vector<7x7xf32>
    %1477 = arith.mulf %1476, %1470 : vector<7x7xf32>
    %1478 = arith.addf %1469, %1477 : vector<7x7xf32>
    %1479 = vector.extract_strided_slice %171 {offsets = [1, 1], sizes = [7, 7], strides = [1, 1]} : vector<8x8xf32> to vector<7x7xf32>
    %c31_323 = arith.constant 31 : index
    %1480 = memref.load %arg5[%c31_323] : memref<72xf32, #tpu.memory_space<smem>>
    %1481 = vector.broadcast %1480 : f32 to vector<7x7xf32>
    %1482 = arith.mulf %1481, %1479 : vector<7x7xf32>
    %1483 = arith.addf %1474, %1482 : vector<7x7xf32>
    %c67_324 = arith.constant 67 : index
    %1484 = memref.load %arg5[%c67_324] : memref<72xf32, #tpu.memory_space<smem>>
    %1485 = vector.broadcast %1484 : f32 to vector<7x7xf32>
    %1486 = arith.mulf %1485, %1479 : vector<7x7xf32>
    %1487 = arith.addf %1478, %1486 : vector<7x7xf32>
    %1488 = vector.extract_strided_slice %175 {offsets = [1, 1], sizes = [7, 7], strides = [1, 1]} : vector<8x8xf32> to vector<7x7xf32>
    %c32_325 = arith.constant 32 : index
    %1489 = memref.load %arg5[%c32_325] : memref<72xf32, #tpu.memory_space<smem>>
    %1490 = vector.broadcast %1489 : f32 to vector<7x7xf32>
    %1491 = arith.mulf %1490, %1488 : vector<7x7xf32>
    %1492 = arith.addf %1483, %1491 : vector<7x7xf32>
    %c68_326 = arith.constant 68 : index
    %1493 = memref.load %arg5[%c68_326] : memref<72xf32, #tpu.memory_space<smem>>
    %1494 = vector.broadcast %1493 : f32 to vector<7x7xf32>
    %1495 = arith.mulf %1494, %1488 : vector<7x7xf32>
    %1496 = arith.addf %1487, %1495 : vector<7x7xf32>
    %1497 = vector.extract_strided_slice %183 {offsets = [1, 0], sizes = [7, 7], strides = [1, 1]} : vector<8x8xf32> to vector<7x7xf32>
    %c33_327 = arith.constant 33 : index
    %1498 = memref.load %arg5[%c33_327] : memref<72xf32, #tpu.memory_space<smem>>
    %1499 = vector.broadcast %1498 : f32 to vector<7x7xf32>
    %1500 = arith.mulf %1499, %1497 : vector<7x7xf32>
    %1501 = arith.addf %1492, %1500 : vector<7x7xf32>
    %c69_328 = arith.constant 69 : index
    %1502 = memref.load %arg5[%c69_328] : memref<72xf32, #tpu.memory_space<smem>>
    %1503 = vector.broadcast %1502 : f32 to vector<7x7xf32>
    %1504 = arith.mulf %1503, %1497 : vector<7x7xf32>
    %1505 = arith.addf %1496, %1504 : vector<7x7xf32>
    %1506 = vector.extract_strided_slice %179 {offsets = [1, 1], sizes = [7, 7], strides = [1, 1]} : vector<8x8xf32> to vector<7x7xf32>
    %c34_329 = arith.constant 34 : index
    %1507 = memref.load %arg5[%c34_329] : memref<72xf32, #tpu.memory_space<smem>>
    %1508 = vector.broadcast %1507 : f32 to vector<7x7xf32>
    %1509 = arith.mulf %1508, %1506 : vector<7x7xf32>
    %1510 = arith.addf %1501, %1509 : vector<7x7xf32>
    %c70_330 = arith.constant 70 : index
    %1511 = memref.load %arg5[%c70_330] : memref<72xf32, #tpu.memory_space<smem>>
    %1512 = vector.broadcast %1511 : f32 to vector<7x7xf32>
    %1513 = arith.mulf %1512, %1506 : vector<7x7xf32>
    %1514 = arith.addf %1505, %1513 : vector<7x7xf32>
    %1515 = vector.extract_strided_slice %183 {offsets = [1, 1], sizes = [7, 7], strides = [1, 1]} : vector<8x8xf32> to vector<7x7xf32>
    %c35_331 = arith.constant 35 : index
    %1516 = memref.load %arg5[%c35_331] : memref<72xf32, #tpu.memory_space<smem>>
    %1517 = vector.broadcast %1516 : f32 to vector<7x7xf32>
    %1518 = arith.mulf %1517, %1515 : vector<7x7xf32>
    %1519 = arith.addf %1510, %1518 : vector<7x7xf32>
    %c71_332 = arith.constant 71 : index
    %1520 = memref.load %arg5[%c71_332] : memref<72xf32, #tpu.memory_space<smem>>
    %1521 = vector.broadcast %1520 : f32 to vector<7x7xf32>
    %1522 = arith.mulf %1521, %1515 : vector<7x7xf32>
    %1523 = arith.addf %1514, %1522 : vector<7x7xf32>
    %cst_333 = arith.constant 0.000000e+00 : f32
    %1524 = vector.broadcast %cst_333 : f32 to vector<7x7xf32>
    %1525 = arith.maximumf %1519, %1524 : vector<7x7xf32>
    %cst_334 = arith.constant 0.000000e+00 : f32
    %1526 = vector.broadcast %cst_334 : f32 to vector<7x7xf32>
    %1527 = arith.maximumf %1523, %1526 : vector<7x7xf32>
    %cst_335 = arith.constant 0.000000e+00 : f32
    %1528 = vector.broadcast %cst_335 : f32 to vector<6x6xf32>
    %c0_336 = arith.constant 0 : index
    %1529 = memref.load %arg8[%c0_336] : memref<2xf32, #tpu.memory_space<smem>>
    %1530 = vector.broadcast %1529 : f32 to vector<6x6xf32>
    %1531 = arith.addf %1528, %1530 : vector<6x6xf32>
    %cst_337 = arith.constant 0.000000e+00 : f32
    %1532 = vector.broadcast %cst_337 : f32 to vector<6x6xf32>
    %c1_338 = arith.constant 1 : index
    %1533 = memref.load %arg8[%c1_338] : memref<2xf32, #tpu.memory_space<smem>>
    %1534 = vector.broadcast %1533 : f32 to vector<6x6xf32>
    %1535 = arith.addf %1532, %1534 : vector<6x6xf32>
    %1536 = vector.extract_strided_slice %517 {offsets = [0, 0], sizes = [6, 6], strides = [1, 1]} : vector<7x7xf32> to vector<6x6xf32>
    %c0_339 = arith.constant 0 : index
    %1537 = memref.load %arg7[%c0_339] : memref<36xf32, #tpu.memory_space<smem>>
    %1538 = vector.broadcast %1537 : f32 to vector<6x6xf32>
    %1539 = arith.mulf %1538, %1536 : vector<6x6xf32>
    %1540 = arith.addf %1531, %1539 : vector<6x6xf32>
    %c18_340 = arith.constant 18 : index
    %1541 = memref.load %arg7[%c18_340] : memref<36xf32, #tpu.memory_space<smem>>
    %1542 = vector.broadcast %1541 : f32 to vector<6x6xf32>
    %1543 = arith.mulf %1542, %1536 : vector<6x6xf32>
    %1544 = arith.addf %1535, %1543 : vector<6x6xf32>
    %1545 = vector.extract_strided_slice %853 {offsets = [0, 0], sizes = [6, 6], strides = [1, 1]} : vector<7x7xf32> to vector<6x6xf32>
    %c1_341 = arith.constant 1 : index
    %1546 = memref.load %arg7[%c1_341] : memref<36xf32, #tpu.memory_space<smem>>
    %1547 = vector.broadcast %1546 : f32 to vector<6x6xf32>
    %1548 = arith.mulf %1547, %1545 : vector<6x6xf32>
    %1549 = arith.addf %1540, %1548 : vector<6x6xf32>
    %c19_342 = arith.constant 19 : index
    %1550 = memref.load %arg7[%c19_342] : memref<36xf32, #tpu.memory_space<smem>>
    %1551 = vector.broadcast %1550 : f32 to vector<6x6xf32>
    %1552 = arith.mulf %1551, %1545 : vector<6x6xf32>
    %1553 = arith.addf %1544, %1552 : vector<6x6xf32>
    %1554 = vector.extract_strided_slice %517 {offsets = [0, 1], sizes = [6, 6], strides = [1, 1]} : vector<7x7xf32> to vector<6x6xf32>
    %c2_343 = arith.constant 2 : index
    %1555 = memref.load %arg7[%c2_343] : memref<36xf32, #tpu.memory_space<smem>>
    %1556 = vector.broadcast %1555 : f32 to vector<6x6xf32>
    %1557 = arith.mulf %1556, %1554 : vector<6x6xf32>
    %1558 = arith.addf %1549, %1557 : vector<6x6xf32>
    %c20_344 = arith.constant 20 : index
    %1559 = memref.load %arg7[%c20_344] : memref<36xf32, #tpu.memory_space<smem>>
    %1560 = vector.broadcast %1559 : f32 to vector<6x6xf32>
    %1561 = arith.mulf %1560, %1554 : vector<6x6xf32>
    %1562 = arith.addf %1553, %1561 : vector<6x6xf32>
    %1563 = vector.extract_strided_slice %1189 {offsets = [0, 0], sizes = [6, 6], strides = [1, 1]} : vector<7x7xf32> to vector<6x6xf32>
    %c3_345 = arith.constant 3 : index
    %1564 = memref.load %arg7[%c3_345] : memref<36xf32, #tpu.memory_space<smem>>
    %1565 = vector.broadcast %1564 : f32 to vector<6x6xf32>
    %1566 = arith.mulf %1565, %1563 : vector<6x6xf32>
    %1567 = arith.addf %1558, %1566 : vector<6x6xf32>
    %c21_346 = arith.constant 21 : index
    %1568 = memref.load %arg7[%c21_346] : memref<36xf32, #tpu.memory_space<smem>>
    %1569 = vector.broadcast %1568 : f32 to vector<6x6xf32>
    %1570 = arith.mulf %1569, %1563 : vector<6x6xf32>
    %1571 = arith.addf %1562, %1570 : vector<6x6xf32>
    %1572 = vector.extract_strided_slice %1525 {offsets = [0, 0], sizes = [6, 6], strides = [1, 1]} : vector<7x7xf32> to vector<6x6xf32>
    %c4_347 = arith.constant 4 : index
    %1573 = memref.load %arg7[%c4_347] : memref<36xf32, #tpu.memory_space<smem>>
    %1574 = vector.broadcast %1573 : f32 to vector<6x6xf32>
    %1575 = arith.mulf %1574, %1572 : vector<6x6xf32>
    %1576 = arith.addf %1567, %1575 : vector<6x6xf32>
    %c22_348 = arith.constant 22 : index
    %1577 = memref.load %arg7[%c22_348] : memref<36xf32, #tpu.memory_space<smem>>
    %1578 = vector.broadcast %1577 : f32 to vector<6x6xf32>
    %1579 = arith.mulf %1578, %1572 : vector<6x6xf32>
    %1580 = arith.addf %1571, %1579 : vector<6x6xf32>
    %1581 = vector.extract_strided_slice %1189 {offsets = [0, 1], sizes = [6, 6], strides = [1, 1]} : vector<7x7xf32> to vector<6x6xf32>
    %c5_349 = arith.constant 5 : index
    %1582 = memref.load %arg7[%c5_349] : memref<36xf32, #tpu.memory_space<smem>>
    %1583 = vector.broadcast %1582 : f32 to vector<6x6xf32>
    %1584 = arith.mulf %1583, %1581 : vector<6x6xf32>
    %1585 = arith.addf %1576, %1584 : vector<6x6xf32>
    %c23_350 = arith.constant 23 : index
    %1586 = memref.load %arg7[%c23_350] : memref<36xf32, #tpu.memory_space<smem>>
    %1587 = vector.broadcast %1586 : f32 to vector<6x6xf32>
    %1588 = arith.mulf %1587, %1581 : vector<6x6xf32>
    %1589 = arith.addf %1580, %1588 : vector<6x6xf32>
    %1590 = vector.extract_strided_slice %517 {offsets = [1, 0], sizes = [6, 6], strides = [1, 1]} : vector<7x7xf32> to vector<6x6xf32>
    %c6_351 = arith.constant 6 : index
    %1591 = memref.load %arg7[%c6_351] : memref<36xf32, #tpu.memory_space<smem>>
    %1592 = vector.broadcast %1591 : f32 to vector<6x6xf32>
    %1593 = arith.mulf %1592, %1590 : vector<6x6xf32>
    %1594 = arith.addf %1585, %1593 : vector<6x6xf32>
    %c24_352 = arith.constant 24 : index
    %1595 = memref.load %arg7[%c24_352] : memref<36xf32, #tpu.memory_space<smem>>
    %1596 = vector.broadcast %1595 : f32 to vector<6x6xf32>
    %1597 = arith.mulf %1596, %1590 : vector<6x6xf32>
    %1598 = arith.addf %1589, %1597 : vector<6x6xf32>
    %1599 = vector.extract_strided_slice %853 {offsets = [1, 0], sizes = [6, 6], strides = [1, 1]} : vector<7x7xf32> to vector<6x6xf32>
    %c7_353 = arith.constant 7 : index
    %1600 = memref.load %arg7[%c7_353] : memref<36xf32, #tpu.memory_space<smem>>
    %1601 = vector.broadcast %1600 : f32 to vector<6x6xf32>
    %1602 = arith.mulf %1601, %1599 : vector<6x6xf32>
    %1603 = arith.addf %1594, %1602 : vector<6x6xf32>
    %c25_354 = arith.constant 25 : index
    %1604 = memref.load %arg7[%c25_354] : memref<36xf32, #tpu.memory_space<smem>>
    %1605 = vector.broadcast %1604 : f32 to vector<6x6xf32>
    %1606 = arith.mulf %1605, %1599 : vector<6x6xf32>
    %1607 = arith.addf %1598, %1606 : vector<6x6xf32>
    %1608 = vector.extract_strided_slice %517 {offsets = [1, 1], sizes = [6, 6], strides = [1, 1]} : vector<7x7xf32> to vector<6x6xf32>
    %c8_355 = arith.constant 8 : index
    %1609 = memref.load %arg7[%c8_355] : memref<36xf32, #tpu.memory_space<smem>>
    %1610 = vector.broadcast %1609 : f32 to vector<6x6xf32>
    %1611 = arith.mulf %1610, %1608 : vector<6x6xf32>
    %1612 = arith.addf %1603, %1611 : vector<6x6xf32>
    %c26_356 = arith.constant 26 : index
    %1613 = memref.load %arg7[%c26_356] : memref<36xf32, #tpu.memory_space<smem>>
    %1614 = vector.broadcast %1613 : f32 to vector<6x6xf32>
    %1615 = arith.mulf %1614, %1608 : vector<6x6xf32>
    %1616 = arith.addf %1607, %1615 : vector<6x6xf32>
    %1617 = vector.extract_strided_slice %519 {offsets = [0, 0], sizes = [6, 6], strides = [1, 1]} : vector<7x7xf32> to vector<6x6xf32>
    %c9_357 = arith.constant 9 : index
    %1618 = memref.load %arg7[%c9_357] : memref<36xf32, #tpu.memory_space<smem>>
    %1619 = vector.broadcast %1618 : f32 to vector<6x6xf32>
    %1620 = arith.mulf %1619, %1617 : vector<6x6xf32>
    %1621 = arith.addf %1612, %1620 : vector<6x6xf32>
    %c27_358 = arith.constant 27 : index
    %1622 = memref.load %arg7[%c27_358] : memref<36xf32, #tpu.memory_space<smem>>
    %1623 = vector.broadcast %1622 : f32 to vector<6x6xf32>
    %1624 = arith.mulf %1623, %1617 : vector<6x6xf32>
    %1625 = arith.addf %1616, %1624 : vector<6x6xf32>
    %1626 = vector.extract_strided_slice %855 {offsets = [0, 0], sizes = [6, 6], strides = [1, 1]} : vector<7x7xf32> to vector<6x6xf32>
    %c10_359 = arith.constant 10 : index
    %1627 = memref.load %arg7[%c10_359] : memref<36xf32, #tpu.memory_space<smem>>
    %1628 = vector.broadcast %1627 : f32 to vector<6x6xf32>
    %1629 = arith.mulf %1628, %1626 : vector<6x6xf32>
    %1630 = arith.addf %1621, %1629 : vector<6x6xf32>
    %c28_360 = arith.constant 28 : index
    %1631 = memref.load %arg7[%c28_360] : memref<36xf32, #tpu.memory_space<smem>>
    %1632 = vector.broadcast %1631 : f32 to vector<6x6xf32>
    %1633 = arith.mulf %1632, %1626 : vector<6x6xf32>
    %1634 = arith.addf %1625, %1633 : vector<6x6xf32>
    %1635 = vector.extract_strided_slice %519 {offsets = [0, 1], sizes = [6, 6], strides = [1, 1]} : vector<7x7xf32> to vector<6x6xf32>
    %c11_361 = arith.constant 11 : index
    %1636 = memref.load %arg7[%c11_361] : memref<36xf32, #tpu.memory_space<smem>>
    %1637 = vector.broadcast %1636 : f32 to vector<6x6xf32>
    %1638 = arith.mulf %1637, %1635 : vector<6x6xf32>
    %1639 = arith.addf %1630, %1638 : vector<6x6xf32>
    %c29_362 = arith.constant 29 : index
    %1640 = memref.load %arg7[%c29_362] : memref<36xf32, #tpu.memory_space<smem>>
    %1641 = vector.broadcast %1640 : f32 to vector<6x6xf32>
    %1642 = arith.mulf %1641, %1635 : vector<6x6xf32>
    %1643 = arith.addf %1634, %1642 : vector<6x6xf32>
    %1644 = vector.extract_strided_slice %1191 {offsets = [0, 0], sizes = [6, 6], strides = [1, 1]} : vector<7x7xf32> to vector<6x6xf32>
    %c12_363 = arith.constant 12 : index
    %1645 = memref.load %arg7[%c12_363] : memref<36xf32, #tpu.memory_space<smem>>
    %1646 = vector.broadcast %1645 : f32 to vector<6x6xf32>
    %1647 = arith.mulf %1646, %1644 : vector<6x6xf32>
    %1648 = arith.addf %1639, %1647 : vector<6x6xf32>
    %c30_364 = arith.constant 30 : index
    %1649 = memref.load %arg7[%c30_364] : memref<36xf32, #tpu.memory_space<smem>>
    %1650 = vector.broadcast %1649 : f32 to vector<6x6xf32>
    %1651 = arith.mulf %1650, %1644 : vector<6x6xf32>
    %1652 = arith.addf %1643, %1651 : vector<6x6xf32>
    %1653 = vector.extract_strided_slice %1527 {offsets = [0, 0], sizes = [6, 6], strides = [1, 1]} : vector<7x7xf32> to vector<6x6xf32>
    %c13_365 = arith.constant 13 : index
    %1654 = memref.load %arg7[%c13_365] : memref<36xf32, #tpu.memory_space<smem>>
    %1655 = vector.broadcast %1654 : f32 to vector<6x6xf32>
    %1656 = arith.mulf %1655, %1653 : vector<6x6xf32>
    %1657 = arith.addf %1648, %1656 : vector<6x6xf32>
    %c31_366 = arith.constant 31 : index
    %1658 = memref.load %arg7[%c31_366] : memref<36xf32, #tpu.memory_space<smem>>
    %1659 = vector.broadcast %1658 : f32 to vector<6x6xf32>
    %1660 = arith.mulf %1659, %1653 : vector<6x6xf32>
    %1661 = arith.addf %1652, %1660 : vector<6x6xf32>
    %1662 = vector.extract_strided_slice %1191 {offsets = [0, 1], sizes = [6, 6], strides = [1, 1]} : vector<7x7xf32> to vector<6x6xf32>
    %c14_367 = arith.constant 14 : index
    %1663 = memref.load %arg7[%c14_367] : memref<36xf32, #tpu.memory_space<smem>>
    %1664 = vector.broadcast %1663 : f32 to vector<6x6xf32>
    %1665 = arith.mulf %1664, %1662 : vector<6x6xf32>
    %1666 = arith.addf %1657, %1665 : vector<6x6xf32>
    %c32_368 = arith.constant 32 : index
    %1667 = memref.load %arg7[%c32_368] : memref<36xf32, #tpu.memory_space<smem>>
    %1668 = vector.broadcast %1667 : f32 to vector<6x6xf32>
    %1669 = arith.mulf %1668, %1662 : vector<6x6xf32>
    %1670 = arith.addf %1661, %1669 : vector<6x6xf32>
    %1671 = vector.extract_strided_slice %519 {offsets = [1, 0], sizes = [6, 6], strides = [1, 1]} : vector<7x7xf32> to vector<6x6xf32>
    %c15_369 = arith.constant 15 : index
    %1672 = memref.load %arg7[%c15_369] : memref<36xf32, #tpu.memory_space<smem>>
    %1673 = vector.broadcast %1672 : f32 to vector<6x6xf32>
    %1674 = arith.mulf %1673, %1671 : vector<6x6xf32>
    %1675 = arith.addf %1666, %1674 : vector<6x6xf32>
    %c33_370 = arith.constant 33 : index
    %1676 = memref.load %arg7[%c33_370] : memref<36xf32, #tpu.memory_space<smem>>
    %1677 = vector.broadcast %1676 : f32 to vector<6x6xf32>
    %1678 = arith.mulf %1677, %1671 : vector<6x6xf32>
    %1679 = arith.addf %1670, %1678 : vector<6x6xf32>
    %1680 = vector.extract_strided_slice %855 {offsets = [1, 0], sizes = [6, 6], strides = [1, 1]} : vector<7x7xf32> to vector<6x6xf32>
    %c16_371 = arith.constant 16 : index
    %1681 = memref.load %arg7[%c16_371] : memref<36xf32, #tpu.memory_space<smem>>
    %1682 = vector.broadcast %1681 : f32 to vector<6x6xf32>
    %1683 = arith.mulf %1682, %1680 : vector<6x6xf32>
    %1684 = arith.addf %1675, %1683 : vector<6x6xf32>
    %c34_372 = arith.constant 34 : index
    %1685 = memref.load %arg7[%c34_372] : memref<36xf32, #tpu.memory_space<smem>>
    %1686 = vector.broadcast %1685 : f32 to vector<6x6xf32>
    %1687 = arith.mulf %1686, %1680 : vector<6x6xf32>
    %1688 = arith.addf %1679, %1687 : vector<6x6xf32>
    %1689 = vector.extract_strided_slice %519 {offsets = [1, 1], sizes = [6, 6], strides = [1, 1]} : vector<7x7xf32> to vector<6x6xf32>
    %c17_373 = arith.constant 17 : index
    %1690 = memref.load %arg7[%c17_373] : memref<36xf32, #tpu.memory_space<smem>>
    %1691 = vector.broadcast %1690 : f32 to vector<6x6xf32>
    %1692 = arith.mulf %1691, %1689 : vector<6x6xf32>
    %1693 = arith.addf %1684, %1692 : vector<6x6xf32>
    %c35_374 = arith.constant 35 : index
    %1694 = memref.load %arg7[%c35_374] : memref<36xf32, #tpu.memory_space<smem>>
    %1695 = vector.broadcast %1694 : f32 to vector<6x6xf32>
    %1696 = arith.mulf %1695, %1689 : vector<6x6xf32>
    %1697 = arith.addf %1688, %1696 : vector<6x6xf32>
    %cst_375 = arith.constant 0.000000e+00 : f32
    %1698 = vector.broadcast %cst_375 : f32 to vector<6x6xf32>
    %1699 = arith.maximumf %1693, %1698 : vector<6x6xf32>
    %c0_376 = arith.constant 0 : index
    %c0_377 = arith.constant 0 : index
    %c0_378 = arith.constant 0 : index
    %c0_379 = arith.constant 0 : index
    %1700 = vector.load %arg9[%c0_376, %c0_377, %c0_378, %c0_379] : memref<1x8x6x6xf32, #tpu.memory_space<vmem>>, vector<1x1x6x6xf32>
    %1701 = vector.shape_cast %1700 : vector<1x1x6x6xf32> to vector<6x6xf32>
    %1702 = vector.shape_cast %1699 : vector<6x6xf32> to vector<1x1x6x6xf32>
    tpu.vector_store %arg9[%c0_376, %c0_377, %c0_378, %c0_379], %1702 {strides = array<i32>} : memref<1x8x6x6xf32, #tpu.memory_space<vmem>>, vector<1x1x6x6xf32>,
    %cst_380 = arith.constant 0.000000e+00 : f32
    %1703 = vector.broadcast %cst_380 : f32 to vector<6x6xf32>
    %1704 = arith.maximumf %1697, %1703 : vector<6x6xf32>
    %c0_381 = arith.constant 0 : index
    %c1_382 = arith.constant 1 : index
    %c0_383 = arith.constant 0 : index
    %c0_384 = arith.constant 0 : index
    %1705 = vector.load %arg9[%c0_381, %c1_382, %c0_383, %c0_384] : memref<1x8x6x6xf32, #tpu.memory_space<vmem>>, vector<1x1x6x6xf32>
    %1706 = vector.shape_cast %1705 : vector<1x1x6x6xf32> to vector<6x6xf32>
    %1707 = vector.shape_cast %1704 : vector<6x6xf32> to vector<1x1x6x6xf32>
    tpu.vector_store %arg9[%c0_381, %c1_382, %c0_383, %c0_384], %1707 {strides = array<i32>} : memref<1x8x6x6xf32, #tpu.memory_space<vmem>>, vector<1x1x6x6xf32>,
    %cst_385 = arith.constant 0.000000e+00 : f32
    %1708 = vector.broadcast %cst_385 : f32 to vector<6x6xf32>
    %c0_386 = arith.constant 0 : index
    %1709 = memref.load %arg8[%c0_386] : memref<2xf32, #tpu.memory_space<smem>>
    %1710 = vector.broadcast %1709 : f32 to vector<6x6xf32>
    %1711 = arith.addf %1708, %1710 : vector<6x6xf32>
    %cst_387 = arith.constant 0.000000e+00 : f32
    %1712 = vector.broadcast %cst_387 : f32 to vector<6x6xf32>
    %c1_388 = arith.constant 1 : index
    %1713 = memref.load %arg8[%c1_388] : memref<2xf32, #tpu.memory_space<smem>>
    %1714 = vector.broadcast %1713 : f32 to vector<6x6xf32>
    %1715 = arith.addf %1712, %1714 : vector<6x6xf32>
    %1716 = vector.extract_strided_slice %853 {offsets = [0, 0], sizes = [6, 6], strides = [1, 1]} : vector<7x7xf32> to vector<6x6xf32>
    %c0_389 = arith.constant 0 : index
    %1717 = memref.load %arg7[%c0_389] : memref<36xf32, #tpu.memory_space<smem>>
    %1718 = vector.broadcast %1717 : f32 to vector<6x6xf32>
    %1719 = arith.mulf %1718, %1716 : vector<6x6xf32>
    %1720 = arith.addf %1711, %1719 : vector<6x6xf32>
    %c18_390 = arith.constant 18 : index
    %1721 = memref.load %arg7[%c18_390] : memref<36xf32, #tpu.memory_space<smem>>
    %1722 = vector.broadcast %1721 : f32 to vector<6x6xf32>
    %1723 = arith.mulf %1722, %1716 : vector<6x6xf32>
    %1724 = arith.addf %1715, %1723 : vector<6x6xf32>
    %1725 = vector.extract_strided_slice %517 {offsets = [0, 1], sizes = [6, 6], strides = [1, 1]} : vector<7x7xf32> to vector<6x6xf32>
    %c1_391 = arith.constant 1 : index
    %1726 = memref.load %arg7[%c1_391] : memref<36xf32, #tpu.memory_space<smem>>
    %1727 = vector.broadcast %1726 : f32 to vector<6x6xf32>
    %1728 = arith.mulf %1727, %1725 : vector<6x6xf32>
    %1729 = arith.addf %1720, %1728 : vector<6x6xf32>
    %c19_392 = arith.constant 19 : index
    %1730 = memref.load %arg7[%c19_392] : memref<36xf32, #tpu.memory_space<smem>>
    %1731 = vector.broadcast %1730 : f32 to vector<6x6xf32>
    %1732 = arith.mulf %1731, %1725 : vector<6x6xf32>
    %1733 = arith.addf %1724, %1732 : vector<6x6xf32>
    %1734 = vector.extract_strided_slice %853 {offsets = [0, 1], sizes = [6, 6], strides = [1, 1]} : vector<7x7xf32> to vector<6x6xf32>
    %c2_393 = arith.constant 2 : index
    %1735 = memref.load %arg7[%c2_393] : memref<36xf32, #tpu.memory_space<smem>>
    %1736 = vector.broadcast %1735 : f32 to vector<6x6xf32>
    %1737 = arith.mulf %1736, %1734 : vector<6x6xf32>
    %1738 = arith.addf %1729, %1737 : vector<6x6xf32>
    %c20_394 = arith.constant 20 : index
    %1739 = memref.load %arg7[%c20_394] : memref<36xf32, #tpu.memory_space<smem>>
    %1740 = vector.broadcast %1739 : f32 to vector<6x6xf32>
    %1741 = arith.mulf %1740, %1734 : vector<6x6xf32>
    %1742 = arith.addf %1733, %1741 : vector<6x6xf32>
    %1743 = vector.extract_strided_slice %1525 {offsets = [0, 0], sizes = [6, 6], strides = [1, 1]} : vector<7x7xf32> to vector<6x6xf32>
    %c3_395 = arith.constant 3 : index
    %1744 = memref.load %arg7[%c3_395] : memref<36xf32, #tpu.memory_space<smem>>
    %1745 = vector.broadcast %1744 : f32 to vector<6x6xf32>
    %1746 = arith.mulf %1745, %1743 : vector<6x6xf32>
    %1747 = arith.addf %1738, %1746 : vector<6x6xf32>
    %c21_396 = arith.constant 21 : index
    %1748 = memref.load %arg7[%c21_396] : memref<36xf32, #tpu.memory_space<smem>>
    %1749 = vector.broadcast %1748 : f32 to vector<6x6xf32>
    %1750 = arith.mulf %1749, %1743 : vector<6x6xf32>
    %1751 = arith.addf %1742, %1750 : vector<6x6xf32>
    %1752 = vector.extract_strided_slice %1189 {offsets = [0, 1], sizes = [6, 6], strides = [1, 1]} : vector<7x7xf32> to vector<6x6xf32>
    %c4_397 = arith.constant 4 : index
    %1753 = memref.load %arg7[%c4_397] : memref<36xf32, #tpu.memory_space<smem>>
    %1754 = vector.broadcast %1753 : f32 to vector<6x6xf32>
    %1755 = arith.mulf %1754, %1752 : vector<6x6xf32>
    %1756 = arith.addf %1747, %1755 : vector<6x6xf32>
    %c22_398 = arith.constant 22 : index
    %1757 = memref.load %arg7[%c22_398] : memref<36xf32, #tpu.memory_space<smem>>
    %1758 = vector.broadcast %1757 : f32 to vector<6x6xf32>
    %1759 = arith.mulf %1758, %1752 : vector<6x6xf32>
    %1760 = arith.addf %1751, %1759 : vector<6x6xf32>
    %1761 = vector.extract_strided_slice %1525 {offsets = [0, 1], sizes = [6, 6], strides = [1, 1]} : vector<7x7xf32> to vector<6x6xf32>
    %c5_399 = arith.constant 5 : index
    %1762 = memref.load %arg7[%c5_399] : memref<36xf32, #tpu.memory_space<smem>>
    %1763 = vector.broadcast %1762 : f32 to vector<6x6xf32>
    %1764 = arith.mulf %1763, %1761 : vector<6x6xf32>
    %1765 = arith.addf %1756, %1764 : vector<6x6xf32>
    %c23_400 = arith.constant 23 : index
    %1766 = memref.load %arg7[%c23_400] : memref<36xf32, #tpu.memory_space<smem>>
    %1767 = vector.broadcast %1766 : f32 to vector<6x6xf32>
    %1768 = arith.mulf %1767, %1761 : vector<6x6xf32>
    %1769 = arith.addf %1760, %1768 : vector<6x6xf32>
    %1770 = vector.extract_strided_slice %853 {offsets = [1, 0], sizes = [6, 6], strides = [1, 1]} : vector<7x7xf32> to vector<6x6xf32>
    %c6_401 = arith.constant 6 : index
    %1771 = memref.load %arg7[%c6_401] : memref<36xf32, #tpu.memory_space<smem>>
    %1772 = vector.broadcast %1771 : f32 to vector<6x6xf32>
    %1773 = arith.mulf %1772, %1770 : vector<6x6xf32>
    %1774 = arith.addf %1765, %1773 : vector<6x6xf32>
    %c24_402 = arith.constant 24 : index
    %1775 = memref.load %arg7[%c24_402] : memref<36xf32, #tpu.memory_space<smem>>
    %1776 = vector.broadcast %1775 : f32 to vector<6x6xf32>
    %1777 = arith.mulf %1776, %1770 : vector<6x6xf32>
    %1778 = arith.addf %1769, %1777 : vector<6x6xf32>
    %1779 = vector.extract_strided_slice %517 {offsets = [1, 1], sizes = [6, 6], strides = [1, 1]} : vector<7x7xf32> to vector<6x6xf32>
    %c7_403 = arith.constant 7 : index
    %1780 = memref.load %arg7[%c7_403] : memref<36xf32, #tpu.memory_space<smem>>
    %1781 = vector.broadcast %1780 : f32 to vector<6x6xf32>
    %1782 = arith.mulf %1781, %1779 : vector<6x6xf32>
    %1783 = arith.addf %1774, %1782 : vector<6x6xf32>
    %c25_404 = arith.constant 25 : index
    %1784 = memref.load %arg7[%c25_404] : memref<36xf32, #tpu.memory_space<smem>>
    %1785 = vector.broadcast %1784 : f32 to vector<6x6xf32>
    %1786 = arith.mulf %1785, %1779 : vector<6x6xf32>
    %1787 = arith.addf %1778, %1786 : vector<6x6xf32>
    %1788 = vector.extract_strided_slice %853 {offsets = [1, 1], sizes = [6, 6], strides = [1, 1]} : vector<7x7xf32> to vector<6x6xf32>
    %c8_405 = arith.constant 8 : index
    %1789 = memref.load %arg7[%c8_405] : memref<36xf32, #tpu.memory_space<smem>>
    %1790 = vector.broadcast %1789 : f32 to vector<6x6xf32>
    %1791 = arith.mulf %1790, %1788 : vector<6x6xf32>
    %1792 = arith.addf %1783, %1791 : vector<6x6xf32>
    %c26_406 = arith.constant 26 : index
    %1793 = memref.load %arg7[%c26_406] : memref<36xf32, #tpu.memory_space<smem>>
    %1794 = vector.broadcast %1793 : f32 to vector<6x6xf32>
    %1795 = arith.mulf %1794, %1788 : vector<6x6xf32>
    %1796 = arith.addf %1787, %1795 : vector<6x6xf32>
    %1797 = vector.extract_strided_slice %855 {offsets = [0, 0], sizes = [6, 6], strides = [1, 1]} : vector<7x7xf32> to vector<6x6xf32>
    %c9_407 = arith.constant 9 : index
    %1798 = memref.load %arg7[%c9_407] : memref<36xf32, #tpu.memory_space<smem>>
    %1799 = vector.broadcast %1798 : f32 to vector<6x6xf32>
    %1800 = arith.mulf %1799, %1797 : vector<6x6xf32>
    %1801 = arith.addf %1792, %1800 : vector<6x6xf32>
    %c27_408 = arith.constant 27 : index
    %1802 = memref.load %arg7[%c27_408] : memref<36xf32, #tpu.memory_space<smem>>
    %1803 = vector.broadcast %1802 : f32 to vector<6x6xf32>
    %1804 = arith.mulf %1803, %1797 : vector<6x6xf32>
    %1805 = arith.addf %1796, %1804 : vector<6x6xf32>
    %1806 = vector.extract_strided_slice %519 {offsets = [0, 1], sizes = [6, 6], strides = [1, 1]} : vector<7x7xf32> to vector<6x6xf32>
    %c10_409 = arith.constant 10 : index
    %1807 = memref.load %arg7[%c10_409] : memref<36xf32, #tpu.memory_space<smem>>
    %1808 = vector.broadcast %1807 : f32 to vector<6x6xf32>
    %1809 = arith.mulf %1808, %1806 : vector<6x6xf32>
    %1810 = arith.addf %1801, %1809 : vector<6x6xf32>
    %c28_410 = arith.constant 28 : index
    %1811 = memref.load %arg7[%c28_410] : memref<36xf32, #tpu.memory_space<smem>>
    %1812 = vector.broadcast %1811 : f32 to vector<6x6xf32>
    %1813 = arith.mulf %1812, %1806 : vector<6x6xf32>
    %1814 = arith.addf %1805, %1813 : vector<6x6xf32>
    %1815 = vector.extract_strided_slice %855 {offsets = [0, 1], sizes = [6, 6], strides = [1, 1]} : vector<7x7xf32> to vector<6x6xf32>
    %c11_411 = arith.constant 11 : index
    %1816 = memref.load %arg7[%c11_411] : memref<36xf32, #tpu.memory_space<smem>>
    %1817 = vector.broadcast %1816 : f32 to vector<6x6xf32>
    %1818 = arith.mulf %1817, %1815 : vector<6x6xf32>
    %1819 = arith.addf %1810, %1818 : vector<6x6xf32>
    %c29_412 = arith.constant 29 : index
    %1820 = memref.load %arg7[%c29_412] : memref<36xf32, #tpu.memory_space<smem>>
    %1821 = vector.broadcast %1820 : f32 to vector<6x6xf32>
    %1822 = arith.mulf %1821, %1815 : vector<6x6xf32>
    %1823 = arith.addf %1814, %1822 : vector<6x6xf32>
    %1824 = vector.extract_strided_slice %1527 {offsets = [0, 0], sizes = [6, 6], strides = [1, 1]} : vector<7x7xf32> to vector<6x6xf32>
    %c12_413 = arith.constant 12 : index
    %1825 = memref.load %arg7[%c12_413] : memref<36xf32, #tpu.memory_space<smem>>
    %1826 = vector.broadcast %1825 : f32 to vector<6x6xf32>
    %1827 = arith.mulf %1826, %1824 : vector<6x6xf32>
    %1828 = arith.addf %1819, %1827 : vector<6x6xf32>
    %c30_414 = arith.constant 30 : index
    %1829 = memref.load %arg7[%c30_414] : memref<36xf32, #tpu.memory_space<smem>>
    %1830 = vector.broadcast %1829 : f32 to vector<6x6xf32>
    %1831 = arith.mulf %1830, %1824 : vector<6x6xf32>
    %1832 = arith.addf %1823, %1831 : vector<6x6xf32>
    %1833 = vector.extract_strided_slice %1191 {offsets = [0, 1], sizes = [6, 6], strides = [1, 1]} : vector<7x7xf32> to vector<6x6xf32>
    %c13_415 = arith.constant 13 : index
    %1834 = memref.load %arg7[%c13_415] : memref<36xf32, #tpu.memory_space<smem>>
    %1835 = vector.broadcast %1834 : f32 to vector<6x6xf32>
    %1836 = arith.mulf %1835, %1833 : vector<6x6xf32>
    %1837 = arith.addf %1828, %1836 : vector<6x6xf32>
    %c31_416 = arith.constant 31 : index
    %1838 = memref.load %arg7[%c31_416] : memref<36xf32, #tpu.memory_space<smem>>
    %1839 = vector.broadcast %1838 : f32 to vector<6x6xf32>
    %1840 = arith.mulf %1839, %1833 : vector<6x6xf32>
    %1841 = arith.addf %1832, %1840 : vector<6x6xf32>
    %1842 = vector.extract_strided_slice %1527 {offsets = [0, 1], sizes = [6, 6], strides = [1, 1]} : vector<7x7xf32> to vector<6x6xf32>
    %c14_417 = arith.constant 14 : index
    %1843 = memref.load %arg7[%c14_417] : memref<36xf32, #tpu.memory_space<smem>>
    %1844 = vector.broadcast %1843 : f32 to vector<6x6xf32>
    %1845 = arith.mulf %1844, %1842 : vector<6x6xf32>
    %1846 = arith.addf %1837, %1845 : vector<6x6xf32>
    %c32_418 = arith.constant 32 : index
    %1847 = memref.load %arg7[%c32_418] : memref<36xf32, #tpu.memory_space<smem>>
    %1848 = vector.broadcast %1847 : f32 to vector<6x6xf32>
    %1849 = arith.mulf %1848, %1842 : vector<6x6xf32>
    %1850 = arith.addf %1841, %1849 : vector<6x6xf32>
    %1851 = vector.extract_strided_slice %855 {offsets = [1, 0], sizes = [6, 6], strides = [1, 1]} : vector<7x7xf32> to vector<6x6xf32>
    %c15_419 = arith.constant 15 : index
    %1852 = memref.load %arg7[%c15_419] : memref<36xf32, #tpu.memory_space<smem>>
    %1853 = vector.broadcast %1852 : f32 to vector<6x6xf32>
    %1854 = arith.mulf %1853, %1851 : vector<6x6xf32>
    %1855 = arith.addf %1846, %1854 : vector<6x6xf32>
    %c33_420 = arith.constant 33 : index
    %1856 = memref.load %arg7[%c33_420] : memref<36xf32, #tpu.memory_space<smem>>
    %1857 = vector.broadcast %1856 : f32 to vector<6x6xf32>
    %1858 = arith.mulf %1857, %1851 : vector<6x6xf32>
    %1859 = arith.addf %1850, %1858 : vector<6x6xf32>
    %1860 = vector.extract_strided_slice %519 {offsets = [1, 1], sizes = [6, 6], strides = [1, 1]} : vector<7x7xf32> to vector<6x6xf32>
    %c16_421 = arith.constant 16 : index
    %1861 = memref.load %arg7[%c16_421] : memref<36xf32, #tpu.memory_space<smem>>
    %1862 = vector.broadcast %1861 : f32 to vector<6x6xf32>
    %1863 = arith.mulf %1862, %1860 : vector<6x6xf32>
    %1864 = arith.addf %1855, %1863 : vector<6x6xf32>
    %c34_422 = arith.constant 34 : index
    %1865 = memref.load %arg7[%c34_422] : memref<36xf32, #tpu.memory_space<smem>>
    %1866 = vector.broadcast %1865 : f32 to vector<6x6xf32>
    %1867 = arith.mulf %1866, %1860 : vector<6x6xf32>
    %1868 = arith.addf %1859, %1867 : vector<6x6xf32>
    %1869 = vector.extract_strided_slice %855 {offsets = [1, 1], sizes = [6, 6], strides = [1, 1]} : vector<7x7xf32> to vector<6x6xf32>
    %c17_423 = arith.constant 17 : index
    %1870 = memref.load %arg7[%c17_423] : memref<36xf32, #tpu.memory_space<smem>>
    %1871 = vector.broadcast %1870 : f32 to vector<6x6xf32>
    %1872 = arith.mulf %1871, %1869 : vector<6x6xf32>
    %1873 = arith.addf %1864, %1872 : vector<6x6xf32>
    %c35_424 = arith.constant 35 : index
    %1874 = memref.load %arg7[%c35_424] : memref<36xf32, #tpu.memory_space<smem>>
    %1875 = vector.broadcast %1874 : f32 to vector<6x6xf32>
    %1876 = arith.mulf %1875, %1869 : vector<6x6xf32>
    %1877 = arith.addf %1868, %1876 : vector<6x6xf32>
    %cst_425 = arith.constant 0.000000e+00 : f32
    %1878 = vector.broadcast %cst_425 : f32 to vector<6x6xf32>
    %1879 = arith.maximumf %1873, %1878 : vector<6x6xf32>
    %c0_426 = arith.constant 0 : index
    %c2_427 = arith.constant 2 : index
    %c0_428 = arith.constant 0 : index
    %c0_429 = arith.constant 0 : index
    %1880 = vector.load %arg9[%c0_426, %c2_427, %c0_428, %c0_429] : memref<1x8x6x6xf32, #tpu.memory_space<vmem>>, vector<1x1x6x6xf32>
    %1881 = vector.shape_cast %1880 : vector<1x1x6x6xf32> to vector<6x6xf32>
    %1882 = vector.shape_cast %1879 : vector<6x6xf32> to vector<1x1x6x6xf32>
    tpu.vector_store %arg9[%c0_426, %c2_427, %c0_428, %c0_429], %1882 {strides = array<i32>} : memref<1x8x6x6xf32, #tpu.memory_space<vmem>>, vector<1x1x6x6xf32>,
    %cst_430 = arith.constant 0.000000e+00 : f32
    %1883 = vector.broadcast %cst_430 : f32 to vector<6x6xf32>
    %1884 = arith.maximumf %1877, %1883 : vector<6x6xf32>
    %c0_431 = arith.constant 0 : index
    %c3_432 = arith.constant 3 : index
    %c0_433 = arith.constant 0 : index
    %c0_434 = arith.constant 0 : index
    %1885 = vector.load %arg9[%c0_431, %c3_432, %c0_433, %c0_434] : memref<1x8x6x6xf32, #tpu.memory_space<vmem>>, vector<1x1x6x6xf32>
    %1886 = vector.shape_cast %1885 : vector<1x1x6x6xf32> to vector<6x6xf32>
    %1887 = vector.shape_cast %1884 : vector<6x6xf32> to vector<1x1x6x6xf32>
    tpu.vector_store %arg9[%c0_431, %c3_432, %c0_433, %c0_434], %1887 {strides = array<i32>} : memref<1x8x6x6xf32, #tpu.memory_space<vmem>>, vector<1x1x6x6xf32>,
    %cst_435 = arith.constant 0.000000e+00 : f32
    %1888 = vector.broadcast %cst_435 : f32 to vector<6x6xf32>
    %c0_436 = arith.constant 0 : index
    %1889 = memref.load %arg8[%c0_436] : memref<2xf32, #tpu.memory_space<smem>>
    %1890 = vector.broadcast %1889 : f32 to vector<6x6xf32>
    %1891 = arith.addf %1888, %1890 : vector<6x6xf32>
    %cst_437 = arith.constant 0.000000e+00 : f32
    %1892 = vector.broadcast %cst_437 : f32 to vector<6x6xf32>
    %c1_438 = arith.constant 1 : index
    %1893 = memref.load %arg8[%c1_438] : memref<2xf32, #tpu.memory_space<smem>>
    %1894 = vector.broadcast %1893 : f32 to vector<6x6xf32>
    %1895 = arith.addf %1892, %1894 : vector<6x6xf32>
    %1896 = vector.extract_strided_slice %1189 {offsets = [0, 0], sizes = [6, 6], strides = [1, 1]} : vector<7x7xf32> to vector<6x6xf32>
    %c0_439 = arith.constant 0 : index
    %1897 = memref.load %arg7[%c0_439] : memref<36xf32, #tpu.memory_space<smem>>
    %1898 = vector.broadcast %1897 : f32 to vector<6x6xf32>
    %1899 = arith.mulf %1898, %1896 : vector<6x6xf32>
    %1900 = arith.addf %1891, %1899 : vector<6x6xf32>
    %c18_440 = arith.constant 18 : index
    %1901 = memref.load %arg7[%c18_440] : memref<36xf32, #tpu.memory_space<smem>>
    %1902 = vector.broadcast %1901 : f32 to vector<6x6xf32>
    %1903 = arith.mulf %1902, %1896 : vector<6x6xf32>
    %1904 = arith.addf %1895, %1903 : vector<6x6xf32>
    %1905 = vector.extract_strided_slice %1525 {offsets = [0, 0], sizes = [6, 6], strides = [1, 1]} : vector<7x7xf32> to vector<6x6xf32>
    %c1_441 = arith.constant 1 : index
    %1906 = memref.load %arg7[%c1_441] : memref<36xf32, #tpu.memory_space<smem>>
    %1907 = vector.broadcast %1906 : f32 to vector<6x6xf32>
    %1908 = arith.mulf %1907, %1905 : vector<6x6xf32>
    %1909 = arith.addf %1900, %1908 : vector<6x6xf32>
    %c19_442 = arith.constant 19 : index
    %1910 = memref.load %arg7[%c19_442] : memref<36xf32, #tpu.memory_space<smem>>
    %1911 = vector.broadcast %1910 : f32 to vector<6x6xf32>
    %1912 = arith.mulf %1911, %1905 : vector<6x6xf32>
    %1913 = arith.addf %1904, %1912 : vector<6x6xf32>
    %1914 = vector.extract_strided_slice %1189 {offsets = [0, 1], sizes = [6, 6], strides = [1, 1]} : vector<7x7xf32> to vector<6x6xf32>
    %c2_443 = arith.constant 2 : index
    %1915 = memref.load %arg7[%c2_443] : memref<36xf32, #tpu.memory_space<smem>>
    %1916 = vector.broadcast %1915 : f32 to vector<6x6xf32>
    %1917 = arith.mulf %1916, %1914 : vector<6x6xf32>
    %1918 = arith.addf %1909, %1917 : vector<6x6xf32>
    %c20_444 = arith.constant 20 : index
    %1919 = memref.load %arg7[%c20_444] : memref<36xf32, #tpu.memory_space<smem>>
    %1920 = vector.broadcast %1919 : f32 to vector<6x6xf32>
    %1921 = arith.mulf %1920, %1914 : vector<6x6xf32>
    %1922 = arith.addf %1913, %1921 : vector<6x6xf32>
    %1923 = vector.extract_strided_slice %517 {offsets = [1, 0], sizes = [6, 6], strides = [1, 1]} : vector<7x7xf32> to vector<6x6xf32>
    %c3_445 = arith.constant 3 : index
    %1924 = memref.load %arg7[%c3_445] : memref<36xf32, #tpu.memory_space<smem>>
    %1925 = vector.broadcast %1924 : f32 to vector<6x6xf32>
    %1926 = arith.mulf %1925, %1923 : vector<6x6xf32>
    %1927 = arith.addf %1918, %1926 : vector<6x6xf32>
    %c21_446 = arith.constant 21 : index
    %1928 = memref.load %arg7[%c21_446] : memref<36xf32, #tpu.memory_space<smem>>
    %1929 = vector.broadcast %1928 : f32 to vector<6x6xf32>
    %1930 = arith.mulf %1929, %1923 : vector<6x6xf32>
    %1931 = arith.addf %1922, %1930 : vector<6x6xf32>
    %1932 = vector.extract_strided_slice %853 {offsets = [1, 0], sizes = [6, 6], strides = [1, 1]} : vector<7x7xf32> to vector<6x6xf32>
    %c4_447 = arith.constant 4 : index
    %1933 = memref.load %arg7[%c4_447] : memref<36xf32, #tpu.memory_space<smem>>
    %1934 = vector.broadcast %1933 : f32 to vector<6x6xf32>
    %1935 = arith.mulf %1934, %1932 : vector<6x6xf32>
    %1936 = arith.addf %1927, %1935 : vector<6x6xf32>
    %c22_448 = arith.constant 22 : index
    %1937 = memref.load %arg7[%c22_448] : memref<36xf32, #tpu.memory_space<smem>>
    %1938 = vector.broadcast %1937 : f32 to vector<6x6xf32>
    %1939 = arith.mulf %1938, %1932 : vector<6x6xf32>
    %1940 = arith.addf %1931, %1939 : vector<6x6xf32>
    %1941 = vector.extract_strided_slice %517 {offsets = [1, 1], sizes = [6, 6], strides = [1, 1]} : vector<7x7xf32> to vector<6x6xf32>
    %c5_449 = arith.constant 5 : index
    %1942 = memref.load %arg7[%c5_449] : memref<36xf32, #tpu.memory_space<smem>>
    %1943 = vector.broadcast %1942 : f32 to vector<6x6xf32>
    %1944 = arith.mulf %1943, %1941 : vector<6x6xf32>
    %1945 = arith.addf %1936, %1944 : vector<6x6xf32>
    %c23_450 = arith.constant 23 : index
    %1946 = memref.load %arg7[%c23_450] : memref<36xf32, #tpu.memory_space<smem>>
    %1947 = vector.broadcast %1946 : f32 to vector<6x6xf32>
    %1948 = arith.mulf %1947, %1941 : vector<6x6xf32>
    %1949 = arith.addf %1940, %1948 : vector<6x6xf32>
    %1950 = vector.extract_strided_slice %1189 {offsets = [1, 0], sizes = [6, 6], strides = [1, 1]} : vector<7x7xf32> to vector<6x6xf32>
    %c6_451 = arith.constant 6 : index
    %1951 = memref.load %arg7[%c6_451] : memref<36xf32, #tpu.memory_space<smem>>
    %1952 = vector.broadcast %1951 : f32 to vector<6x6xf32>
    %1953 = arith.mulf %1952, %1950 : vector<6x6xf32>
    %1954 = arith.addf %1945, %1953 : vector<6x6xf32>
    %c24_452 = arith.constant 24 : index
    %1955 = memref.load %arg7[%c24_452] : memref<36xf32, #tpu.memory_space<smem>>
    %1956 = vector.broadcast %1955 : f32 to vector<6x6xf32>
    %1957 = arith.mulf %1956, %1950 : vector<6x6xf32>
    %1958 = arith.addf %1949, %1957 : vector<6x6xf32>
    %1959 = vector.extract_strided_slice %1525 {offsets = [1, 0], sizes = [6, 6], strides = [1, 1]} : vector<7x7xf32> to vector<6x6xf32>
    %c7_453 = arith.constant 7 : index
    %1960 = memref.load %arg7[%c7_453] : memref<36xf32, #tpu.memory_space<smem>>
    %1961 = vector.broadcast %1960 : f32 to vector<6x6xf32>
    %1962 = arith.mulf %1961, %1959 : vector<6x6xf32>
    %1963 = arith.addf %1954, %1962 : vector<6x6xf32>
    %c25_454 = arith.constant 25 : index
    %1964 = memref.load %arg7[%c25_454] : memref<36xf32, #tpu.memory_space<smem>>
    %1965 = vector.broadcast %1964 : f32 to vector<6x6xf32>
    %1966 = arith.mulf %1965, %1959 : vector<6x6xf32>
    %1967 = arith.addf %1958, %1966 : vector<6x6xf32>
    %1968 = vector.extract_strided_slice %1189 {offsets = [1, 1], sizes = [6, 6], strides = [1, 1]} : vector<7x7xf32> to vector<6x6xf32>
    %c8_455 = arith.constant 8 : index
    %1969 = memref.load %arg7[%c8_455] : memref<36xf32, #tpu.memory_space<smem>>
    %1970 = vector.broadcast %1969 : f32 to vector<6x6xf32>
    %1971 = arith.mulf %1970, %1968 : vector<6x6xf32>
    %1972 = arith.addf %1963, %1971 : vector<6x6xf32>
    %c26_456 = arith.constant 26 : index
    %1973 = memref.load %arg7[%c26_456] : memref<36xf32, #tpu.memory_space<smem>>
    %1974 = vector.broadcast %1973 : f32 to vector<6x6xf32>
    %1975 = arith.mulf %1974, %1968 : vector<6x6xf32>
    %1976 = arith.addf %1967, %1975 : vector<6x6xf32>
    %1977 = vector.extract_strided_slice %1191 {offsets = [0, 0], sizes = [6, 6], strides = [1, 1]} : vector<7x7xf32> to vector<6x6xf32>
    %c9_457 = arith.constant 9 : index
    %1978 = memref.load %arg7[%c9_457] : memref<36xf32, #tpu.memory_space<smem>>
    %1979 = vector.broadcast %1978 : f32 to vector<6x6xf32>
    %1980 = arith.mulf %1979, %1977 : vector<6x6xf32>
    %1981 = arith.addf %1972, %1980 : vector<6x6xf32>
    %c27_458 = arith.constant 27 : index
    %1982 = memref.load %arg7[%c27_458] : memref<36xf32, #tpu.memory_space<smem>>
    %1983 = vector.broadcast %1982 : f32 to vector<6x6xf32>
    %1984 = arith.mulf %1983, %1977 : vector<6x6xf32>
    %1985 = arith.addf %1976, %1984 : vector<6x6xf32>
    %1986 = vector.extract_strided_slice %1527 {offsets = [0, 0], sizes = [6, 6], strides = [1, 1]} : vector<7x7xf32> to vector<6x6xf32>
    %c10_459 = arith.constant 10 : index
    %1987 = memref.load %arg7[%c10_459] : memref<36xf32, #tpu.memory_space<smem>>
    %1988 = vector.broadcast %1987 : f32 to vector<6x6xf32>
    %1989 = arith.mulf %1988, %1986 : vector<6x6xf32>
    %1990 = arith.addf %1981, %1989 : vector<6x6xf32>
    %c28_460 = arith.constant 28 : index
    %1991 = memref.load %arg7[%c28_460] : memref<36xf32, #tpu.memory_space<smem>>
    %1992 = vector.broadcast %1991 : f32 to vector<6x6xf32>
    %1993 = arith.mulf %1992, %1986 : vector<6x6xf32>
    %1994 = arith.addf %1985, %1993 : vector<6x6xf32>
    %1995 = vector.extract_strided_slice %1191 {offsets = [0, 1], sizes = [6, 6], strides = [1, 1]} : vector<7x7xf32> to vector<6x6xf32>
    %c11_461 = arith.constant 11 : index
    %1996 = memref.load %arg7[%c11_461] : memref<36xf32, #tpu.memory_space<smem>>
    %1997 = vector.broadcast %1996 : f32 to vector<6x6xf32>
    %1998 = arith.mulf %1997, %1995 : vector<6x6xf32>
    %1999 = arith.addf %1990, %1998 : vector<6x6xf32>
    %c29_462 = arith.constant 29 : index
    %2000 = memref.load %arg7[%c29_462] : memref<36xf32, #tpu.memory_space<smem>>
    %2001 = vector.broadcast %2000 : f32 to vector<6x6xf32>
    %2002 = arith.mulf %2001, %1995 : vector<6x6xf32>
    %2003 = arith.addf %1994, %2002 : vector<6x6xf32>
    %2004 = vector.extract_strided_slice %519 {offsets = [1, 0], sizes = [6, 6], strides = [1, 1]} : vector<7x7xf32> to vector<6x6xf32>
    %c12_463 = arith.constant 12 : index
    %2005 = memref.load %arg7[%c12_463] : memref<36xf32, #tpu.memory_space<smem>>
    %2006 = vector.broadcast %2005 : f32 to vector<6x6xf32>
    %2007 = arith.mulf %2006, %2004 : vector<6x6xf32>
    %2008 = arith.addf %1999, %2007 : vector<6x6xf32>
    %c30_464 = arith.constant 30 : index
    %2009 = memref.load %arg7[%c30_464] : memref<36xf32, #tpu.memory_space<smem>>
    %2010 = vector.broadcast %2009 : f32 to vector<6x6xf32>
    %2011 = arith.mulf %2010, %2004 : vector<6x6xf32>
    %2012 = arith.addf %2003, %2011 : vector<6x6xf32>
    %2013 = vector.extract_strided_slice %855 {offsets = [1, 0], sizes = [6, 6], strides = [1, 1]} : vector<7x7xf32> to vector<6x6xf32>
    %c13_465 = arith.constant 13 : index
    %2014 = memref.load %arg7[%c13_465] : memref<36xf32, #tpu.memory_space<smem>>
    %2015 = vector.broadcast %2014 : f32 to vector<6x6xf32>
    %2016 = arith.mulf %2015, %2013 : vector<6x6xf32>
    %2017 = arith.addf %2008, %2016 : vector<6x6xf32>
    %c31_466 = arith.constant 31 : index
    %2018 = memref.load %arg7[%c31_466] : memref<36xf32, #tpu.memory_space<smem>>
    %2019 = vector.broadcast %2018 : f32 to vector<6x6xf32>
    %2020 = arith.mulf %2019, %2013 : vector<6x6xf32>
    %2021 = arith.addf %2012, %2020 : vector<6x6xf32>
    %2022 = vector.extract_strided_slice %519 {offsets = [1, 1], sizes = [6, 6], strides = [1, 1]} : vector<7x7xf32> to vector<6x6xf32>
    %c14_467 = arith.constant 14 : index
    %2023 = memref.load %arg7[%c14_467] : memref<36xf32, #tpu.memory_space<smem>>
    %2024 = vector.broadcast %2023 : f32 to vector<6x6xf32>
    %2025 = arith.mulf %2024, %2022 : vector<6x6xf32>
    %2026 = arith.addf %2017, %2025 : vector<6x6xf32>
    %c32_468 = arith.constant 32 : index
    %2027 = memref.load %arg7[%c32_468] : memref<36xf32, #tpu.memory_space<smem>>
    %2028 = vector.broadcast %2027 : f32 to vector<6x6xf32>
    %2029 = arith.mulf %2028, %2022 : vector<6x6xf32>
    %2030 = arith.addf %2021, %2029 : vector<6x6xf32>
    %2031 = vector.extract_strided_slice %1191 {offsets = [1, 0], sizes = [6, 6], strides = [1, 1]} : vector<7x7xf32> to vector<6x6xf32>
    %c15_469 = arith.constant 15 : index
    %2032 = memref.load %arg7[%c15_469] : memref<36xf32, #tpu.memory_space<smem>>
    %2033 = vector.broadcast %2032 : f32 to vector<6x6xf32>
    %2034 = arith.mulf %2033, %2031 : vector<6x6xf32>
    %2035 = arith.addf %2026, %2034 : vector<6x6xf32>
    %c33_470 = arith.constant 33 : index
    %2036 = memref.load %arg7[%c33_470] : memref<36xf32, #tpu.memory_space<smem>>
    %2037 = vector.broadcast %2036 : f32 to vector<6x6xf32>
    %2038 = arith.mulf %2037, %2031 : vector<6x6xf32>
    %2039 = arith.addf %2030, %2038 : vector<6x6xf32>
    %2040 = vector.extract_strided_slice %1527 {offsets = [1, 0], sizes = [6, 6], strides = [1, 1]} : vector<7x7xf32> to vector<6x6xf32>
    %c16_471 = arith.constant 16 : index
    %2041 = memref.load %arg7[%c16_471] : memref<36xf32, #tpu.memory_space<smem>>
    %2042 = vector.broadcast %2041 : f32 to vector<6x6xf32>
    %2043 = arith.mulf %2042, %2040 : vector<6x6xf32>
    %2044 = arith.addf %2035, %2043 : vector<6x6xf32>
    %c34_472 = arith.constant 34 : index
    %2045 = memref.load %arg7[%c34_472] : memref<36xf32, #tpu.memory_space<smem>>
    %2046 = vector.broadcast %2045 : f32 to vector<6x6xf32>
    %2047 = arith.mulf %2046, %2040 : vector<6x6xf32>
    %2048 = arith.addf %2039, %2047 : vector<6x6xf32>
    %2049 = vector.extract_strided_slice %1191 {offsets = [1, 1], sizes = [6, 6], strides = [1, 1]} : vector<7x7xf32> to vector<6x6xf32>
    %c17_473 = arith.constant 17 : index
    %2050 = memref.load %arg7[%c17_473] : memref<36xf32, #tpu.memory_space<smem>>
    %2051 = vector.broadcast %2050 : f32 to vector<6x6xf32>
    %2052 = arith.mulf %2051, %2049 : vector<6x6xf32>
    %2053 = arith.addf %2044, %2052 : vector<6x6xf32>
    %c35_474 = arith.constant 35 : index
    %2054 = memref.load %arg7[%c35_474] : memref<36xf32, #tpu.memory_space<smem>>
    %2055 = vector.broadcast %2054 : f32 to vector<6x6xf32>
    %2056 = arith.mulf %2055, %2049 : vector<6x6xf32>
    %2057 = arith.addf %2048, %2056 : vector<6x6xf32>
    %cst_475 = arith.constant 0.000000e+00 : f32
    %2058 = vector.broadcast %cst_475 : f32 to vector<6x6xf32>
    %2059 = arith.maximumf %2053, %2058 : vector<6x6xf32>
    %c0_476 = arith.constant 0 : index
    %c4_477 = arith.constant 4 : index
    %c0_478 = arith.constant 0 : index
    %c0_479 = arith.constant 0 : index
    %2060 = vector.load %arg9[%c0_476, %c4_477, %c0_478, %c0_479] : memref<1x8x6x6xf32, #tpu.memory_space<vmem>>, vector<1x1x6x6xf32>
    %2061 = vector.shape_cast %2060 : vector<1x1x6x6xf32> to vector<6x6xf32>
    %2062 = vector.shape_cast %2059 : vector<6x6xf32> to vector<1x1x6x6xf32>
    tpu.vector_store %arg9[%c0_476, %c4_477, %c0_478, %c0_479], %2062 {strides = array<i32>} : memref<1x8x6x6xf32, #tpu.memory_space<vmem>>, vector<1x1x6x6xf32>,
    %cst_480 = arith.constant 0.000000e+00 : f32
    %2063 = vector.broadcast %cst_480 : f32 to vector<6x6xf32>
    %2064 = arith.maximumf %2057, %2063 : vector<6x6xf32>
    %c0_481 = arith.constant 0 : index
    %c5_482 = arith.constant 5 : index
    %c0_483 = arith.constant 0 : index
    %c0_484 = arith.constant 0 : index
    %2065 = vector.load %arg9[%c0_481, %c5_482, %c0_483, %c0_484] : memref<1x8x6x6xf32, #tpu.memory_space<vmem>>, vector<1x1x6x6xf32>
    %2066 = vector.shape_cast %2065 : vector<1x1x6x6xf32> to vector<6x6xf32>
    %2067 = vector.shape_cast %2064 : vector<6x6xf32> to vector<1x1x6x6xf32>
    tpu.vector_store %arg9[%c0_481, %c5_482, %c0_483, %c0_484], %2067 {strides = array<i32>} : memref<1x8x6x6xf32, #tpu.memory_space<vmem>>, vector<1x1x6x6xf32>,
    %cst_485 = arith.constant 0.000000e+00 : f32
    %2068 = vector.broadcast %cst_485 : f32 to vector<6x6xf32>
    %c0_486 = arith.constant 0 : index
    %2069 = memref.load %arg8[%c0_486] : memref<2xf32, #tpu.memory_space<smem>>
    %2070 = vector.broadcast %2069 : f32 to vector<6x6xf32>
    %2071 = arith.addf %2068, %2070 : vector<6x6xf32>
    %cst_487 = arith.constant 0.000000e+00 : f32
    %2072 = vector.broadcast %cst_487 : f32 to vector<6x6xf32>
    %c1_488 = arith.constant 1 : index
    %2073 = memref.load %arg8[%c1_488] : memref<2xf32, #tpu.memory_space<smem>>
    %2074 = vector.broadcast %2073 : f32 to vector<6x6xf32>
    %2075 = arith.addf %2072, %2074 : vector<6x6xf32>
    %2076 = vector.extract_strided_slice %1525 {offsets = [0, 0], sizes = [6, 6], strides = [1, 1]} : vector<7x7xf32> to vector<6x6xf32>
    %c0_489 = arith.constant 0 : index
    %2077 = memref.load %arg7[%c0_489] : memref<36xf32, #tpu.memory_space<smem>>
    %2078 = vector.broadcast %2077 : f32 to vector<6x6xf32>
    %2079 = arith.mulf %2078, %2076 : vector<6x6xf32>
    %2080 = arith.addf %2071, %2079 : vector<6x6xf32>
    %c18_490 = arith.constant 18 : index
    %2081 = memref.load %arg7[%c18_490] : memref<36xf32, #tpu.memory_space<smem>>
    %2082 = vector.broadcast %2081 : f32 to vector<6x6xf32>
    %2083 = arith.mulf %2082, %2076 : vector<6x6xf32>
    %2084 = arith.addf %2075, %2083 : vector<6x6xf32>
    %2085 = vector.extract_strided_slice %1189 {offsets = [0, 1], sizes = [6, 6], strides = [1, 1]} : vector<7x7xf32> to vector<6x6xf32>
    %c1_491 = arith.constant 1 : index
    %2086 = memref.load %arg7[%c1_491] : memref<36xf32, #tpu.memory_space<smem>>
    %2087 = vector.broadcast %2086 : f32 to vector<6x6xf32>
    %2088 = arith.mulf %2087, %2085 : vector<6x6xf32>
    %2089 = arith.addf %2080, %2088 : vector<6x6xf32>
    %c19_492 = arith.constant 19 : index
    %2090 = memref.load %arg7[%c19_492] : memref<36xf32, #tpu.memory_space<smem>>
    %2091 = vector.broadcast %2090 : f32 to vector<6x6xf32>
    %2092 = arith.mulf %2091, %2085 : vector<6x6xf32>
    %2093 = arith.addf %2084, %2092 : vector<6x6xf32>
    %2094 = vector.extract_strided_slice %1525 {offsets = [0, 1], sizes = [6, 6], strides = [1, 1]} : vector<7x7xf32> to vector<6x6xf32>
    %c2_493 = arith.constant 2 : index
    %2095 = memref.load %arg7[%c2_493] : memref<36xf32, #tpu.memory_space<smem>>
    %2096 = vector.broadcast %2095 : f32 to vector<6x6xf32>
    %2097 = arith.mulf %2096, %2094 : vector<6x6xf32>
    %2098 = arith.addf %2089, %2097 : vector<6x6xf32>
    %c20_494 = arith.constant 20 : index
    %2099 = memref.load %arg7[%c20_494] : memref<36xf32, #tpu.memory_space<smem>>
    %2100 = vector.broadcast %2099 : f32 to vector<6x6xf32>
    %2101 = arith.mulf %2100, %2094 : vector<6x6xf32>
    %2102 = arith.addf %2093, %2101 : vector<6x6xf32>
    %2103 = vector.extract_strided_slice %853 {offsets = [1, 0], sizes = [6, 6], strides = [1, 1]} : vector<7x7xf32> to vector<6x6xf32>
    %c3_495 = arith.constant 3 : index
    %2104 = memref.load %arg7[%c3_495] : memref<36xf32, #tpu.memory_space<smem>>
    %2105 = vector.broadcast %2104 : f32 to vector<6x6xf32>
    %2106 = arith.mulf %2105, %2103 : vector<6x6xf32>
    %2107 = arith.addf %2098, %2106 : vector<6x6xf32>
    %c21_496 = arith.constant 21 : index
    %2108 = memref.load %arg7[%c21_496] : memref<36xf32, #tpu.memory_space<smem>>
    %2109 = vector.broadcast %2108 : f32 to vector<6x6xf32>
    %2110 = arith.mulf %2109, %2103 : vector<6x6xf32>
    %2111 = arith.addf %2102, %2110 : vector<6x6xf32>
    %2112 = vector.extract_strided_slice %517 {offsets = [1, 1], sizes = [6, 6], strides = [1, 1]} : vector<7x7xf32> to vector<6x6xf32>
    %c4_497 = arith.constant 4 : index
    %2113 = memref.load %arg7[%c4_497] : memref<36xf32, #tpu.memory_space<smem>>
    %2114 = vector.broadcast %2113 : f32 to vector<6x6xf32>
    %2115 = arith.mulf %2114, %2112 : vector<6x6xf32>
    %2116 = arith.addf %2107, %2115 : vector<6x6xf32>
    %c22_498 = arith.constant 22 : index
    %2117 = memref.load %arg7[%c22_498] : memref<36xf32, #tpu.memory_space<smem>>
    %2118 = vector.broadcast %2117 : f32 to vector<6x6xf32>
    %2119 = arith.mulf %2118, %2112 : vector<6x6xf32>
    %2120 = arith.addf %2111, %2119 : vector<6x6xf32>
    %2121 = vector.extract_strided_slice %853 {offsets = [1, 1], sizes = [6, 6], strides = [1, 1]} : vector<7x7xf32> to vector<6x6xf32>
    %c5_499 = arith.constant 5 : index
    %2122 = memref.load %arg7[%c5_499] : memref<36xf32, #tpu.memory_space<smem>>
    %2123 = vector.broadcast %2122 : f32 to vector<6x6xf32>
    %2124 = arith.mulf %2123, %2121 : vector<6x6xf32>
    %2125 = arith.addf %2116, %2124 : vector<6x6xf32>
    %c23_500 = arith.constant 23 : index
    %2126 = memref.load %arg7[%c23_500] : memref<36xf32, #tpu.memory_space<smem>>
    %2127 = vector.broadcast %2126 : f32 to vector<6x6xf32>
    %2128 = arith.mulf %2127, %2121 : vector<6x6xf32>
    %2129 = arith.addf %2120, %2128 : vector<6x6xf32>
    %2130 = vector.extract_strided_slice %1525 {offsets = [1, 0], sizes = [6, 6], strides = [1, 1]} : vector<7x7xf32> to vector<6x6xf32>
    %c6_501 = arith.constant 6 : index
    %2131 = memref.load %arg7[%c6_501] : memref<36xf32, #tpu.memory_space<smem>>
    %2132 = vector.broadcast %2131 : f32 to vector<6x6xf32>
    %2133 = arith.mulf %2132, %2130 : vector<6x6xf32>
    %2134 = arith.addf %2125, %2133 : vector<6x6xf32>
    %c24_502 = arith.constant 24 : index
    %2135 = memref.load %arg7[%c24_502] : memref<36xf32, #tpu.memory_space<smem>>
    %2136 = vector.broadcast %2135 : f32 to vector<6x6xf32>
    %2137 = arith.mulf %2136, %2130 : vector<6x6xf32>
    %2138 = arith.addf %2129, %2137 : vector<6x6xf32>
    %2139 = vector.extract_strided_slice %1189 {offsets = [1, 1], sizes = [6, 6], strides = [1, 1]} : vector<7x7xf32> to vector<6x6xf32>
    %c7_503 = arith.constant 7 : index
    %2140 = memref.load %arg7[%c7_503] : memref<36xf32, #tpu.memory_space<smem>>
    %2141 = vector.broadcast %2140 : f32 to vector<6x6xf32>
    %2142 = arith.mulf %2141, %2139 : vector<6x6xf32>
    %2143 = arith.addf %2134, %2142 : vector<6x6xf32>
    %c25_504 = arith.constant 25 : index
    %2144 = memref.load %arg7[%c25_504] : memref<36xf32, #tpu.memory_space<smem>>
    %2145 = vector.broadcast %2144 : f32 to vector<6x6xf32>
    %2146 = arith.mulf %2145, %2139 : vector<6x6xf32>
    %2147 = arith.addf %2138, %2146 : vector<6x6xf32>
    %2148 = vector.extract_strided_slice %1525 {offsets = [1, 1], sizes = [6, 6], strides = [1, 1]} : vector<7x7xf32> to vector<6x6xf32>
    %c8_505 = arith.constant 8 : index
    %2149 = memref.load %arg7[%c8_505] : memref<36xf32, #tpu.memory_space<smem>>
    %2150 = vector.broadcast %2149 : f32 to vector<6x6xf32>
    %2151 = arith.mulf %2150, %2148 : vector<6x6xf32>
    %2152 = arith.addf %2143, %2151 : vector<6x6xf32>
    %c26_506 = arith.constant 26 : index
    %2153 = memref.load %arg7[%c26_506] : memref<36xf32, #tpu.memory_space<smem>>
    %2154 = vector.broadcast %2153 : f32 to vector<6x6xf32>
    %2155 = arith.mulf %2154, %2148 : vector<6x6xf32>
    %2156 = arith.addf %2147, %2155 : vector<6x6xf32>
    %2157 = vector.extract_strided_slice %1527 {offsets = [0, 0], sizes = [6, 6], strides = [1, 1]} : vector<7x7xf32> to vector<6x6xf32>
    %c9_507 = arith.constant 9 : index
    %2158 = memref.load %arg7[%c9_507] : memref<36xf32, #tpu.memory_space<smem>>
    %2159 = vector.broadcast %2158 : f32 to vector<6x6xf32>
    %2160 = arith.mulf %2159, %2157 : vector<6x6xf32>
    %2161 = arith.addf %2152, %2160 : vector<6x6xf32>
    %c27_508 = arith.constant 27 : index
    %2162 = memref.load %arg7[%c27_508] : memref<36xf32, #tpu.memory_space<smem>>
    %2163 = vector.broadcast %2162 : f32 to vector<6x6xf32>
    %2164 = arith.mulf %2163, %2157 : vector<6x6xf32>
    %2165 = arith.addf %2156, %2164 : vector<6x6xf32>
    %2166 = vector.extract_strided_slice %1191 {offsets = [0, 1], sizes = [6, 6], strides = [1, 1]} : vector<7x7xf32> to vector<6x6xf32>
    %c10_509 = arith.constant 10 : index
    %2167 = memref.load %arg7[%c10_509] : memref<36xf32, #tpu.memory_space<smem>>
    %2168 = vector.broadcast %2167 : f32 to vector<6x6xf32>
    %2169 = arith.mulf %2168, %2166 : vector<6x6xf32>
    %2170 = arith.addf %2161, %2169 : vector<6x6xf32>
    %c28_510 = arith.constant 28 : index
    %2171 = memref.load %arg7[%c28_510] : memref<36xf32, #tpu.memory_space<smem>>
    %2172 = vector.broadcast %2171 : f32 to vector<6x6xf32>
    %2173 = arith.mulf %2172, %2166 : vector<6x6xf32>
    %2174 = arith.addf %2165, %2173 : vector<6x6xf32>
    %2175 = vector.extract_strided_slice %1527 {offsets = [0, 1], sizes = [6, 6], strides = [1, 1]} : vector<7x7xf32> to vector<6x6xf32>
    %c11_511 = arith.constant 11 : index
    %2176 = memref.load %arg7[%c11_511] : memref<36xf32, #tpu.memory_space<smem>>
    %2177 = vector.broadcast %2176 : f32 to vector<6x6xf32>
    %2178 = arith.mulf %2177, %2175 : vector<6x6xf32>
    %2179 = arith.addf %2170, %2178 : vector<6x6xf32>
    %c29_512 = arith.constant 29 : index
    %2180 = memref.load %arg7[%c29_512] : memref<36xf32, #tpu.memory_space<smem>>
    %2181 = vector.broadcast %2180 : f32 to vector<6x6xf32>
    %2182 = arith.mulf %2181, %2175 : vector<6x6xf32>
    %2183 = arith.addf %2174, %2182 : vector<6x6xf32>
    %2184 = vector.extract_strided_slice %855 {offsets = [1, 0], sizes = [6, 6], strides = [1, 1]} : vector<7x7xf32> to vector<6x6xf32>
    %c12_513 = arith.constant 12 : index
    %2185 = memref.load %arg7[%c12_513] : memref<36xf32, #tpu.memory_space<smem>>
    %2186 = vector.broadcast %2185 : f32 to vector<6x6xf32>
    %2187 = arith.mulf %2186, %2184 : vector<6x6xf32>
    %2188 = arith.addf %2179, %2187 : vector<6x6xf32>
    %c30_514 = arith.constant 30 : index
    %2189 = memref.load %arg7[%c30_514] : memref<36xf32, #tpu.memory_space<smem>>
    %2190 = vector.broadcast %2189 : f32 to vector<6x6xf32>
    %2191 = arith.mulf %2190, %2184 : vector<6x6xf32>
    %2192 = arith.addf %2183, %2191 : vector<6x6xf32>
    %2193 = vector.extract_strided_slice %519 {offsets = [1, 1], sizes = [6, 6], strides = [1, 1]} : vector<7x7xf32> to vector<6x6xf32>
    %c13_515 = arith.constant 13 : index
    %2194 = memref.load %arg7[%c13_515] : memref<36xf32, #tpu.memory_space<smem>>
    %2195 = vector.broadcast %2194 : f32 to vector<6x6xf32>
    %2196 = arith.mulf %2195, %2193 : vector<6x6xf32>
    %2197 = arith.addf %2188, %2196 : vector<6x6xf32>
    %c31_516 = arith.constant 31 : index
    %2198 = memref.load %arg7[%c31_516] : memref<36xf32, #tpu.memory_space<smem>>
    %2199 = vector.broadcast %2198 : f32 to vector<6x6xf32>
    %2200 = arith.mulf %2199, %2193 : vector<6x6xf32>
    %2201 = arith.addf %2192, %2200 : vector<6x6xf32>
    %2202 = vector.extract_strided_slice %855 {offsets = [1, 1], sizes = [6, 6], strides = [1, 1]} : vector<7x7xf32> to vector<6x6xf32>
    %c14_517 = arith.constant 14 : index
    %2203 = memref.load %arg7[%c14_517] : memref<36xf32, #tpu.memory_space<smem>>
    %2204 = vector.broadcast %2203 : f32 to vector<6x6xf32>
    %2205 = arith.mulf %2204, %2202 : vector<6x6xf32>
    %2206 = arith.addf %2197, %2205 : vector<6x6xf32>
    %c32_518 = arith.constant 32 : index
    %2207 = memref.load %arg7[%c32_518] : memref<36xf32, #tpu.memory_space<smem>>
    %2208 = vector.broadcast %2207 : f32 to vector<6x6xf32>
    %2209 = arith.mulf %2208, %2202 : vector<6x6xf32>
    %2210 = arith.addf %2201, %2209 : vector<6x6xf32>
    %2211 = vector.extract_strided_slice %1527 {offsets = [1, 0], sizes = [6, 6], strides = [1, 1]} : vector<7x7xf32> to vector<6x6xf32>
    %c15_519 = arith.constant 15 : index
    %2212 = memref.load %arg7[%c15_519] : memref<36xf32, #tpu.memory_space<smem>>
    %2213 = vector.broadcast %2212 : f32 to vector<6x6xf32>
    %2214 = arith.mulf %2213, %2211 : vector<6x6xf32>
    %2215 = arith.addf %2206, %2214 : vector<6x6xf32>
    %c33_520 = arith.constant 33 : index
    %2216 = memref.load %arg7[%c33_520] : memref<36xf32, #tpu.memory_space<smem>>
    %2217 = vector.broadcast %2216 : f32 to vector<6x6xf32>
    %2218 = arith.mulf %2217, %2211 : vector<6x6xf32>
    %2219 = arith.addf %2210, %2218 : vector<6x6xf32>
    %2220 = vector.extract_strided_slice %1191 {offsets = [1, 1], sizes = [6, 6], strides = [1, 1]} : vector<7x7xf32> to vector<6x6xf32>
    %c16_521 = arith.constant 16 : index
    %2221 = memref.load %arg7[%c16_521] : memref<36xf32, #tpu.memory_space<smem>>
    %2222 = vector.broadcast %2221 : f32 to vector<6x6xf32>
    %2223 = arith.mulf %2222, %2220 : vector<6x6xf32>
    %2224 = arith.addf %2215, %2223 : vector<6x6xf32>
    %c34_522 = arith.constant 34 : index
    %2225 = memref.load %arg7[%c34_522] : memref<36xf32, #tpu.memory_space<smem>>
    %2226 = vector.broadcast %2225 : f32 to vector<6x6xf32>
    %2227 = arith.mulf %2226, %2220 : vector<6x6xf32>
    %2228 = arith.addf %2219, %2227 : vector<6x6xf32>
    %2229 = vector.extract_strided_slice %1527 {offsets = [1, 1], sizes = [6, 6], strides = [1, 1]} : vector<7x7xf32> to vector<6x6xf32>
    %c17_523 = arith.constant 17 : index
    %2230 = memref.load %arg7[%c17_523] : memref<36xf32, #tpu.memory_space<smem>>
    %2231 = vector.broadcast %2230 : f32 to vector<6x6xf32>
    %2232 = arith.mulf %2231, %2229 : vector<6x6xf32>
    %2233 = arith.addf %2224, %2232 : vector<6x6xf32>
    %c35_524 = arith.constant 35 : index
    %2234 = memref.load %arg7[%c35_524] : memref<36xf32, #tpu.memory_space<smem>>
    %2235 = vector.broadcast %2234 : f32 to vector<6x6xf32>
    %2236 = arith.mulf %2235, %2229 : vector<6x6xf32>
    %2237 = arith.addf %2228, %2236 : vector<6x6xf32>
    %cst_525 = arith.constant 0.000000e+00 : f32
    %2238 = vector.broadcast %cst_525 : f32 to vector<6x6xf32>
    %2239 = arith.maximumf %2233, %2238 : vector<6x6xf32>
    %c0_526 = arith.constant 0 : index
    %c6_527 = arith.constant 6 : index
    %c0_528 = arith.constant 0 : index
    %c0_529 = arith.constant 0 : index
    %2240 = vector.load %arg9[%c0_526, %c6_527, %c0_528, %c0_529] : memref<1x8x6x6xf32, #tpu.memory_space<vmem>>, vector<1x1x6x6xf32>
    %2241 = vector.shape_cast %2240 : vector<1x1x6x6xf32> to vector<6x6xf32>
    %2242 = vector.shape_cast %2239 : vector<6x6xf32> to vector<1x1x6x6xf32>
    tpu.vector_store %arg9[%c0_526, %c6_527, %c0_528, %c0_529], %2242 {strides = array<i32>} : memref<1x8x6x6xf32, #tpu.memory_space<vmem>>, vector<1x1x6x6xf32>,
    %cst_530 = arith.constant 0.000000e+00 : f32
    %2243 = vector.broadcast %cst_530 : f32 to vector<6x6xf32>
    %2244 = arith.maximumf %2237, %2243 : vector<6x6xf32>
    %c0_531 = arith.constant 0 : index
    %c7_532 = arith.constant 7 : index
    %c0_533 = arith.constant 0 : index
    %c0_534 = arith.constant 0 : index
    %2245 = vector.load %arg9[%c0_531, %c7_532, %c0_533, %c0_534] : memref<1x8x6x6xf32, #tpu.memory_space<vmem>>, vector<1x1x6x6xf32>
    %2246 = vector.shape_cast %2245 : vector<1x1x6x6xf32> to vector<6x6xf32>
    %2247 = vector.shape_cast %2244 : vector<6x6xf32> to vector<1x1x6x6xf32>
    tpu.vector_store %arg9[%c0_531, %c7_532, %c0_533, %c0_534], %2247 {strides = array<i32>} : memref<1x8x6x6xf32, #tpu.memory_space<vmem>>, vector<1x1x6x6xf32>,
    return
  }
  func.func @transform_0(%arg0: i32) -> (i32, i32, i32, i32) {
    %c0_i32 = arith.constant 0 : i32
    %c0_i32_0 = arith.constant 0 : i32
    %c0_i32_1 = arith.constant 0 : i32
    %c0_i32_2 = arith.constant 0 : i32
    return %arg0, %c0_i32, %c0_i32_0, %c0_i32_1 : i32, i32, i32, i32
  }
  func.func @transform_1(%arg0: i32) -> (i32, i32, i32, i32) {
    %c0_i32 = arith.constant 0 : i32
    %c0_i32_0 = arith.constant 0 : i32
    %c0_i32_1 = arith.constant 0 : i32
    %c0_i32_2 = arith.constant 0 : i32
    return %arg0, %c0_i32, %c0_i32_0, %c0_i32_1 : i32, i32, i32, i32
  }
  func.func @transform_2(%arg0: i32) -> i32 {
    %c0_i32 = arith.constant 0 : i32
    %c0_i32_0 = arith.constant 0 : i32
    return %c0_i32 : i32
  }
  func.func @transform_3(%arg0: i32) -> i32 {
    %c0_i32 = arith.constant 0 : i32
    %c0_i32_0 = arith.constant 0 : i32
    return %c0_i32 : i32
  }
  func.func @transform_4(%arg0: i32) -> i32 {
    %c0_i32 = arith.constant 0 : i32
    %c0_i32_0 = arith.constant 0 : i32
    return %c0_i32 : i32
  }
  func.func @transform_5(%arg0: i32) -> i32 {
    %c0_i32 = arith.constant 0 : i32
    %c0_i32_0 = arith.constant 0 : i32
    return %c0_i32 : i32
  }
  func.func @transform_6(%arg0: i32) -> i32 {
    %c0_i32 = arith.constant 0 : i32
    %c0_i32_0 = arith.constant 0 : i32
    return %c0_i32 : i32
  }
  func.func @transform_7(%arg0: i32) -> i32 {
    %c0_i32 = arith.constant 0 : i32
    %c0_i32_0 = arith.constant 0 : i32
    return %c0_i32 : i32
  }
  func.func @transform_8(%arg0: i32) -> (i32, i32, i32, i32) {
    %c0_i32 = arith.constant 0 : i32
    %c0_i32_0 = arith.constant 0 : i32
    %c0_i32_1 = arith.constant 0 : i32
    %c0_i32_2 = arith.constant 0 : i32
    return %arg0, %c0_i32, %c0_i32_0, %c0_i32_1 : i32, i32, i32, i32
  }
}

</mosaic_0001>

<llo_original>
// kernel: tpu_custom_call.1
$region0: #{tpu_custom_call.1}
  #allocation0 [shape = 'u32[]', space=smem, size = 0x4, offset = 0x4, fixed_abs, tag = 'smem constant byte address 0x4 - core index']
  #allocation1 [shape = 'u32[144,128]{1,0:T(1,128)}', space=vmem, size = 0x12000, scoped, tag = 'internal scratch']
  %s0 = inlined_call_operand.hbm [shape: f32[2,4,8,8], index: 0, kind: input, shape index: {}]
  %s1 = inlined_call_operand.hbm [shape: f32[2,8,8,8], index: 1, kind: input, shape index: {}]
  %s2 = inlined_call_operand.vmem [shape: f32[32], index: 2, kind: input, shape index: {}]
  %s3 = inlined_call_operand.vmem [shape: f32[2], index: 3, kind: input, shape index: {}]
  %s4 = inlined_call_operand.vmem [shape: f32[72], index: 4, kind: input, shape index: {}]
  %s5 = inlined_call_operand.vmem [shape: f32[2], index: 5, kind: input, shape index: {}]
  %s6 = inlined_call_operand.vmem [shape: f32[36], index: 6, kind: input, shape index: {}]
  %s7 = inlined_call_operand.vmem [shape: f32[2], index: 7, kind: input, shape index: {}]
  %s8 = inlined_call_operand.vmem [shape: f32[2,8,6,6], index: 8, kind: output, shape index: {}]
  %s9 = sld [smem:[#allocation0]]
  $region97: #{tpu_custom_call.1} parent=0
    _
  %s11 = ssub.s32 1, %s9
  %s12 = scalar_select 0, %s11, %s9
  $region1: #{tpu_custom_call.1} parent=0
    #allocation2 [shape = 'u8[32768]{0}', space=vmem, size = 0x8000, scoped, tag = 'input window, operand 0']
    #allocation3 [shape = 's32[2]{0}', space=sflag, size = 0x8, scoped, tag = 'scoped memory for tpu_custom_call.1']
    #allocation4 [shape = 's32[2]{0}', space=sflag, size = 0x8, scoped, tag = 'scoped memory for tpu_custom_call.1']
    #allocation5 [shape = 'u8[65536]{0}', space=vmem, size = 0x10000, scoped, tag = 'input window, operand 1']
    #allocation6 [shape = 's32[2]{0}', space=sflag, size = 0x8, scoped, tag = 'scoped memory for tpu_custom_call.1']
    #allocation7 [shape = 'u8[512]{0}', space=smem, size = 0x200, scoped, tag = 'input window, operand 2, single buffered']
    #allocation8 [shape = 'u8[512]{0}', space=smem, size = 0x200, scoped, tag = 'input window, operand 3, single buffered']
    #allocation9 [shape = 's32[1]{0}', space=sflag, size = 0x4, scoped, tag = 'scoped memory for tpu_custom_call.1']
    #allocation10 [shape = 'u8[512]{0}', space=smem, size = 0x200, scoped, tag = 'input window, operand 4, single buffered']
    #allocation11 [shape = 'u8[512]{0}', space=smem, size = 0x200, scoped, tag = 'input window, operand 5, single buffered']
    #allocation12 [shape = 's32[1]{0}', space=sflag, size = 0x4, scoped, tag = 'scoped memory for tpu_custom_call.1']
    #allocation13 [shape = 'u8[512]{0}', space=smem, size = 0x200, scoped, tag = 'input window, operand 6, single buffered']
    #allocation14 [shape = 'u8[512]{0}', space=smem, size = 0x200, scoped, tag = 'input window, operand 7, single buffered']
    #allocation15 [shape = 's32[1]{0}', space=sflag, size = 0x4, scoped, tag = 'scoped memory for tpu_custom_call.1']
    %13 = vsyncpa [#allocation3], 0
    %s14 = scalar_lea.sflag [#allocation3], 1
    %15 = vsyncpa %s14, 0
    %16 = vsyncpa [#allocation6], 0
    %s17 = scalar_lea.sflag [#allocation6], 1
    %18 = vsyncpa %s17, 0
    %19 = vsyncpa [#allocation4], 0
    %20 = vsyncpa [#allocation9], 0
    %21 = vsyncpa [#allocation12], 0
    %22 = vsyncpa [#allocation15], 0
    loop: start=0, step=1, limit=4
    $region2: #{tpu_custom_call.1} parent=1 // loop_pre_header
      _
    $region3: #{tpu_custom_call.1} parent=1 // loop_header
      %s24 = sphi 0, %s28
      %p25 = scmp.ge.s32.totalorder %s24, 4
      %s34 = sphi 0, %s36
      %s37 = sphi 0, %s34
      %s38 = sphi 0, %s37
      %s54 = sphi 0, %s38
      %s60 = sphi 0, %s62
      %s63 = sphi 0, %s60
      %s64 = sphi 0, %s63
      %s80 = sphi 0, %s64
      %s84 = sphi 0, %s84
      %s86 = sphi 0, %s84
      %s87 = sphi 0, %s86
      %s101 = sphi 0, %s87
      %s105 = sphi 0, %s105
      %s107 = sphi 0, %s105
      %s108 = sphi 0, %s107
      %s122 = sphi 0, %s108
      %s126 = sphi 0, %s126
      %s128 = sphi 0, %s126
      %s129 = sphi 0, %s128
      %s143 = sphi 0, %s129
      %s147 = sphi 0, %s147
      %s149 = sphi 0, %s147
      %s150 = sphi 0, %s149
      %s164 = sphi 0, %s150
      %s168 = sphi 0, %s168
      %s170 = sphi 0, %s168
      %s171 = sphi 0, %s170
      %s185 = sphi 0, %s171
      %s189 = sphi 0, %s189
      %s191 = sphi 0, %s189
      %s192 = sphi 0, %s191
      %s206 = sphi 0, %s192
      %s212 = sphi 0, %s214
      %s215 = sphi 0, %s212
      %s216 = sphi 0, %s215
      %s232 = sphi 0, %s216
    $region4: #{tpu_custom_call.1} parent=1 // loop_header_branch
      %27 = sbr.rel (%p25) target = $region8
    $region5: #{tpu_custom_call.1} parent=1 // loop_body
      %s29 = ssub.s32 %s24, 1
      %s30 = ssub.s32 %s24, 2
      %s31 = sadd.s32 %s24, 1
      %s32 = ssub.s32 %s24, %s31
      %p33 = scmp.eq.s32.totalorder %s32, 0
      %s35 = sadd.s32 %s34, 1
      %s36 = scalar_select %p33, %s34, %s35
      %p39 = pneg %p33
      %p40 = scmp.eq.s32.totalorder %s24, 1
      %p41 = por %p39, %p40
      %p42 = scmp.ne.s32.totalorder %s34, %s37
      %p43 = scmp.eq.s32.totalorder %s24, 0
      %p44 = por %p42, %p43
      %p45 = scmp.ne.s32.totalorder %s34, %s37
      %p46 = scmp.eq.s32.totalorder %s29, 1
      %p47 = por %p45, %p46
      %p48 = scmp.ne.s32.totalorder %s37, %s38
      %p49 = scmp.eq.s32.totalorder %s29, 0
      %p50 = por %p48, %p49
      %p51 = scmp.ne.s32.totalorder %s37, %s38
      %p52 = scmp.eq.s32.totalorder %s30, 1
      %p53 = por %p51, %p52
      %p55 = scmp.ne.s32.totalorder %s38, %s54
      %p56 = scmp.eq.s32.totalorder %s30, 0
      %p57 = por %p55, %p56
      %s58 = ssub.s32 %s24, %s31
      %p59 = scmp.eq.s32.totalorder %s58, 0
      %s61 = sadd.s32 %s60, 1
      %s62 = scalar_select %p59, %s60, %s61
      %p65 = pneg %p59
      %p66 = scmp.eq.s32.totalorder %s24, 1
      %p67 = por %p65, %p66
      %p68 = scmp.ne.s32.totalorder %s60, %s63
      %p69 = scmp.eq.s32.totalorder %s24, 0
      %p70 = por %p68, %p69
      %p71 = scmp.ne.s32.totalorder %s60, %s63
      %p72 = scmp.eq.s32.totalorder %s29, 1
      %p73 = por %p71, %p72
      %p74 = scmp.ne.s32.totalorder %s63, %s64
      %p75 = scmp.eq.s32.totalorder %s29, 0
      %p76 = por %p74, %p75
      %p77 = scmp.ne.s32.totalorder %s63, %s64
      %p78 = scmp.eq.s32.totalorder %s30, 1
      %p79 = por %p77, %p78
      %p81 = scmp.ne.s32.totalorder %s64, %s80
      %p82 = scmp.eq.s32.totalorder %s30, 0
      %p83 = por %p81, %p82
      %s85 = sadd.s32 %s84, 1
      %p88 = scmp.eq.s32.totalorder %s24, 1
      %p89 = scmp.ne.s32.totalorder %s84, %s86
      %p90 = scmp.eq.s32.totalorder %s24, 0
      %p91 = por %p89, %p90
      %p92 = scmp.ne.s32.totalorder %s84, %s86
      %p93 = scmp.eq.s32.totalorder %s29, 1
      %p94 = por %p92, %p93
      %p95 = scmp.ne.s32.totalorder %s86, %s87
      %p96 = scmp.eq.s32.totalorder %s29, 0
      %p97 = por %p95, %p96
      %p98 = scmp.ne.s32.totalorder %s86, %s87
      %p99 = scmp.eq.s32.totalorder %s30, 1
      %p100 = por %p98, %p99
      %p102 = scmp.ne.s32.totalorder %s87, %s101
      %p103 = scmp.eq.s32.totalorder %s30, 0
      %p104 = por %p102, %p103
      %s106 = sadd.s32 %s105, 1
      %p109 = scmp.eq.s32.totalorder %s24, 1
      %p110 = scmp.ne.s32.totalorder %s105, %s107
      %p111 = scmp.eq.s32.totalorder %s24, 0
      %p112 = por %p110, %p111
      %p113 = scmp.ne.s32.totalorder %s105, %s107
      %p114 = scmp.eq.s32.totalorder %s29, 1
      %p115 = por %p113, %p114
      %p116 = scmp.ne.s32.totalorder %s107, %s108
      %p117 = scmp.eq.s32.totalorder %s29, 0
      %p118 = por %p116, %p117
      %p119 = scmp.ne.s32.totalorder %s107, %s108
      %p120 = scmp.eq.s32.totalorder %s30, 1
      %p121 = por %p119, %p120
      %p123 = scmp.ne.s32.totalorder %s108, %s122
      %p124 = scmp.eq.s32.totalorder %s30, 0
      %p125 = por %p123, %p124
      %s127 = sadd.s32 %s126, 1
      %p130 = scmp.eq.s32.totalorder %s24, 1
      %p131 = scmp.ne.s32.totalorder %s126, %s128
      %p132 = scmp.eq.s32.totalorder %s24, 0
      %p133 = por %p131, %p132
      %p134 = scmp.ne.s32.totalorder %s126, %s128
      %p135 = scmp.eq.s32.totalorder %s29, 1
      %p136 = por %p134, %p135
      %p137 = scmp.ne.s32.totalorder %s128, %s129
      %p138 = scmp.eq.s32.totalorder %s29, 0
      %p139 = por %p137, %p138
      %p140 = scmp.ne.s32.totalorder %s128, %s129
      %p141 = scmp.eq.s32.totalorder %s30, 1
      %p142 = por %p140, %p141
      %p144 = scmp.ne.s32.totalorder %s129, %s143
      %p145 = scmp.eq.s32.totalorder %s30, 0
      %p146 = por %p144, %p145
      %s148 = sadd.s32 %s147, 1
      %p151 = scmp.eq.s32.totalorder %s24, 1
      %p152 = scmp.ne.s32.totalorder %s147, %s149
      %p153 = scmp.eq.s32.totalorder %s24, 0
      %p154 = por %p152, %p153
      %p155 = scmp.ne.s32.totalorder %s147, %s149
      %p156 = scmp.eq.s32.totalorder %s29, 1
      %p157 = por %p155, %p156
      %p158 = scmp.ne.s32.totalorder %s149, %s150
      %p159 = scmp.eq.s32.totalorder %s29, 0
      %p160 = por %p158, %p159
      %p161 = scmp.ne.s32.totalorder %s149, %s150
      %p162 = scmp.eq.s32.totalorder %s30, 1
      %p163 = por %p161, %p162
      %p165 = scmp.ne.s32.totalorder %s150, %s164
      %p166 = scmp.eq.s32.totalorder %s30, 0
      %p167 = por %p165, %p166
      %s169 = sadd.s32 %s168, 1
      %p172 = scmp.eq.s32.totalorder %s24, 1
      %p173 = scmp.ne.s32.totalorder %s168, %s170
      %p174 = scmp.eq.s32.totalorder %s24, 0
      %p175 = por %p173, %p174
      %p176 = scmp.ne.s32.totalorder %s168, %s170
      %p177 = scmp.eq.s32.totalorder %s29, 1
      %p178 = por %p176, %p177
      %p179 = scmp.ne.s32.totalorder %s170, %s171
      %p180 = scmp.eq.s32.totalorder %s29, 0
      %p181 = por %p179, %p180
      %p182 = scmp.ne.s32.totalorder %s170, %s171
      %p183 = scmp.eq.s32.totalorder %s30, 1
      %p184 = por %p182, %p183
      %p186 = scmp.ne.s32.totalorder %s171, %s185
      %p187 = scmp.eq.s32.totalorder %s30, 0
      %p188 = por %p186, %p187
      %s190 = sadd.s32 %s189, 1
      %p193 = scmp.eq.s32.totalorder %s24, 1
      %p194 = scmp.ne.s32.totalorder %s189, %s191
      %p195 = scmp.eq.s32.totalorder %s24, 0
      %p196 = por %p194, %p195
      %p197 = scmp.ne.s32.totalorder %s189, %s191
      %p198 = scmp.eq.s32.totalorder %s29, 1
      %p199 = por %p197, %p198
      %p200 = scmp.ne.s32.totalorder %s191, %s192
      %p201 = scmp.eq.s32.totalorder %s29, 0
      %p202 = por %p200, %p201
      %p203 = scmp.ne.s32.totalorder %s191, %s192
      %p204 = scmp.eq.s32.totalorder %s30, 1
      %p205 = por %p203, %p204
      %p207 = scmp.ne.s32.totalorder %s192, %s206
      %p208 = scmp.eq.s32.totalorder %s30, 0
      %p209 = por %p207, %p208
      %s210 = ssub.s32 %s24, %s31
      %p211 = scmp.eq.s32.totalorder %s210, 0
      %s213 = sadd.s32 %s212, 1
      %s214 = scalar_select %p211, %s212, %s213
      %p217 = pneg %p211
      %p218 = scmp.eq.s32.totalorder %s24, 1
      %p219 = por %p217, %p218
      %p220 = scmp.ne.s32.totalorder %s212, %s215
      %p221 = scmp.eq.s32.totalorder %s24, 0
      %p222 = por %p220, %p221
      %p223 = scmp.ne.s32.totalorder %s212, %s215
      %p224 = scmp.eq.s32.totalorder %s29, 1
      %p225 = por %p223, %p224
      %p226 = scmp.ne.s32.totalorder %s215, %s216
      %p227 = scmp.eq.s32.totalorder %s29, 0
      %p228 = por %p226, %p227
      %p229 = scmp.ne.s32.totalorder %s215, %s216
      %p230 = scmp.eq.s32.totalorder %s30, 1
      %p231 = por %p229, %p230
      %p233 = scmp.ne.s32.totalorder %s216, %s232
      %p234 = scmp.eq.s32.totalorder %s30, 0
      %p235 = por %p233, %p234
      %p236 = scmp.le.s32.totalorder 1, %s24
      %p237 = scmp.lt.s32.totalorder %s24, 3
      %p238 = pnand %p236, %p237
      %p239 = pneg %p238
      // Predicated region
      $region9: #{tpu_custom_call.1} parent=5 // pred_check
        _
      $region10: #{tpu_custom_call.1} parent=5 // pred_check_branch
        %241 = sbr.rel (%p238) target = $region12
      $region11: #{tpu_custom_call.1} parent=5 // pred_region
        %s242 = ssub.s32 %s24, 1
        // Predicated region
        $region13: #{tpu_custom_call.1} parent=11 // pred_check
          %p243 = pneg %p97
        $region14: #{tpu_custom_call.1} parent=11 // pred_check_branch
          %245 = sbr.rel (%p243) target = $region16
        $region15: #{tpu_custom_call.1} parent=11 // pred_region
          %s247 = ssub.s32 16, 16
          %248 = vsyncadd [#allocation4], %s247
          %s250 = sshll.u32 %s2, 4
          %s251 = int_to_ptr.vmem [resolvable:$true] %s250
          %253 = dma.vmem_to_smem %s251, 16, [#allocation7], [#allocation4]
        $region16: #{tpu_custom_call.1} parent=11 // pred_fallthru
          _
        // Predicated region
        $region17: #{tpu_custom_call.1} parent=11 // pred_check
          %p254 = pneg %p118
        $region18: #{tpu_custom_call.1} parent=11 // pred_check_branch
          %256 = sbr.rel (%p254) target = $region20
        $region19: #{tpu_custom_call.1} parent=11 // pred_region
          %s258 = ssub.s32 16, 16
          %259 = vsyncadd [#allocation9], %s258
          %s261 = sshll.u32 %s3, 4
          %s262 = int_to_ptr.vmem [resolvable:$true] %s261
          %264 = dma.vmem_to_smem %s262, 16, [#allocation8], [#allocation9]
        $region20: #{tpu_custom_call.1} parent=11 // pred_fallthru
          _
        // Predicated region
        $region21: #{tpu_custom_call.1} parent=11 // pred_check
          %p265 = pneg %p139
        $region22: #{tpu_custom_call.1} parent=11 // pred_check_branch
          %267 = sbr.rel (%p265) target = $region24
        $region23: #{tpu_custom_call.1} parent=11 // pred_region
          %s269 = ssub.s32 16, 16
          %270 = vsyncadd [#allocation9], %s269
          %s272 = sshll.u32 %s4, 4
          %s273 = int_to_ptr.vmem [resolvable:$true] %s272
          %275 = dma.vmem_to_smem %s273, 16, [#allocation10], [#allocation9]
        $region24: #{tpu_custom_call.1} parent=11 // pred_fallthru
          _
        // Predicated region
        $region25: #{tpu_custom_call.1} parent=11 // pred_check
          %p276 = pneg %p160
        $region26: #{tpu_custom_call.1} parent=11 // pred_check_branch
          %278 = sbr.rel (%p276) target = $region28
        $region27: #{tpu_custom_call.1} parent=11 // pred_region
          %s280 = ssub.s32 16, 16
          %281 = vsyncadd [#allocation12], %s280
          %s283 = sshll.u32 %s5, 4
          %s284 = int_to_ptr.vmem [resolvable:$true] %s283
          %286 = dma.vmem_to_smem %s284, 16, [#allocation11], [#allocation12]
        $region28: #{tpu_custom_call.1} parent=11 // pred_fallthru
          _
        // Predicated region
        $region29: #{tpu_custom_call.1} parent=11 // pred_check
          %p287 = pneg %p181
        $region30: #{tpu_custom_call.1} parent=11 // pred_check_branch
          %289 = sbr.rel (%p287) target = $region32
        $region31: #{tpu_custom_call.1} parent=11 // pred_region
          %s291 = ssub.s32 16, 16
          %292 = vsyncadd [#allocation12], %s291
          %s294 = sshll.u32 %s6, 4
          %s295 = int_to_ptr.vmem [resolvable:$true] %s294
          %297 = dma.vmem_to_smem %s295, 16, [#allocation13], [#allocation12]
        $region32: #{tpu_custom_call.1} parent=11 // pred_fallthru
          _
        // Predicated region
        $region33: #{tpu_custom_call.1} parent=11 // pred_check
          %p298 = pneg %p202
        $region34: #{tpu_custom_call.1} parent=11 // pred_check_branch
          %300 = sbr.rel (%p298) target = $region36
        $region35: #{tpu_custom_call.1} parent=11 // pred_region
          %s302 = ssub.s32 16, 16
          %303 = vsyncadd [#allocation15], %s302
          %s305 = sshll.u32 %s7, 4
          %s306 = int_to_ptr.vmem [resolvable:$true] %s305
          %308 = dma.vmem_to_smem %s306, 16, [#allocation14], [#allocation15]
        $region36: #{tpu_custom_call.1} parent=11 // pred_fallthru
          _
      $region12: #{tpu_custom_call.1} parent=5 // pred_fallthru
        _
      %p309 = scmp.lt.s32.totalorder %s24, 2
      // Predicated region
      $region37: #{tpu_custom_call.1} parent=5 // pred_check
        %p310 = pneg %p309
      $region38: #{tpu_custom_call.1} parent=5 // pred_check_branch
        %312 = sbr.rel (%p310) target = $region40
      $region39: #{tpu_custom_call.1} parent=5 // pred_region
        // Predicated region
        $region41: #{tpu_custom_call.1} parent=39 // pred_check
          %p313 = pneg %p44
        $region42: #{tpu_custom_call.1} parent=39 // pred_check_branch
          %315 = sbr.rel (%p313) target = $region44
        $region43: #{tpu_custom_call.1} parent=39 // pred_region
          %s316 = sand.u32 %s34, 1
          %s317 = scalar_lea.sflag [#allocation3], %s316
          %s318 = sand.u32 %s34, 1
          %s319 = smul.addr %s318, 32
          %s320 = scalar_lea.vmem [#allocation2], %s319
          %s322 = ssub.s32 512, 512
          %323 = vsyncadd %s317, %s322
          %s324 = smul.addr %s24, 4
          %s325 = smul.addr %s324, 128
          %s326 = scalar_lea.hbm %s0, %s325
          %s327 = sshll.u32 %s320, 4
          %s328 = int_to_ptr.vmem [resolvable:$true] %s327
          %333 = dma.hbm_to_vmem [thread:$0]  %s326, 512, %s328, %s317, 128, 128, 8
        $region44: #{tpu_custom_call.1} parent=39 // pred_fallthru
          _
        // Predicated region
        $region45: #{tpu_custom_call.1} parent=39 // pred_check
          %p334 = pneg %p70
        $region46: #{tpu_custom_call.1} parent=39 // pred_check_branch
          %336 = sbr.rel (%p334) target = $region48
        $region47: #{tpu_custom_call.1} parent=39 // pred_region
          %s337 = sand.u32 %s60, 1
          %s338 = scalar_lea.sflag [#allocation6], %s337
          %s339 = sand.u32 %s60, 1
          %s340 = smul.addr %s339, 64
          %s341 = scalar_lea.vmem [#allocation5], %s340
          %s343 = ssub.s32 1024, 1024
          %344 = vsyncadd %s338, %s343
          %s345 = smul.addr %s24, 8
          %s346 = smul.addr %s345, 128
          %s347 = scalar_lea.hbm %s1, %s346
          %s348 = sshll.u32 %s341, 4
          %s349 = int_to_ptr.vmem [resolvable:$true] %s348
          %354 = dma.hbm_to_vmem [thread:$0]  %s347, 1024, %s349, %s338, 128, 128, 8
        $region48: #{tpu_custom_call.1} parent=39 // pred_fallthru
          _
      $region40: #{tpu_custom_call.1} parent=5 // pred_fallthru
        _
      %p355 = scmp.le.s32.totalorder 1, %s24
      %p356 = scmp.lt.s32.totalorder %s24, 3
      %p357 = pnand %p355, %p356
      %p358 = pneg %p357
      // Predicated region
      $region49: #{tpu_custom_call.1} parent=5 // pred_check
        _
      $region50: #{tpu_custom_call.1} parent=5 // pred_check_branch
        %360 = sbr.rel (%p357) target = $region52
      $region51: #{tpu_custom_call.1} parent=5 // pred_region
        %s361 = ssub.s32 %s24, 1
        %s362 = sand.u32 %s37, 1
        %s363 = scalar_lea.sflag [#allocation3], %s362
        %s364 = sand.u32 %s37, 1
        %s365 = smul.addr %s364, 32
        %s366 = scalar_lea.vmem [#allocation2], %s365
        // Predicated region
        $region53: #{tpu_custom_call.1} parent=51 // pred_check
          %p367 = pneg %p50
        $region54: #{tpu_custom_call.1} parent=51 // pred_check_branch
          %369 = sbr.rel (%p367) target = $region56
        $region55: #{tpu_custom_call.1} parent=51 // pred_region
          %370 = dma.done %s363, 512
        $region56: #{tpu_custom_call.1} parent=51 // pred_fallthru
          _
        %s371 = sand.u32 %s63, 1
        %s372 = scalar_lea.sflag [#allocation6], %s371
        %s373 = sand.u32 %s63, 1
        %s374 = smul.addr %s373, 64
        %s375 = scalar_lea.vmem [#allocation5], %s374
        // Predicated region
        $region57: #{tpu_custom_call.1} parent=51 // pred_check
          %p376 = pneg %p76
        $region58: #{tpu_custom_call.1} parent=51 // pred_check_branch
          %378 = sbr.rel (%p376) target = $region60
        $region59: #{tpu_custom_call.1} parent=51 // pred_region
          %379 = dma.done %s372, 1024
        $region60: #{tpu_custom_call.1} parent=51 // pred_fallthru
          _
        // Predicated region
        $region61: #{tpu_custom_call.1} parent=51 // pred_check
          %p380 = pneg %p97
        $region62: #{tpu_custom_call.1} parent=51 // pred_check_branch
          %382 = sbr.rel (%p380) target = $region64
        $region63: #{tpu_custom_call.1} parent=51 // pred_region
          %383 = dma.done [#allocation4], 16
        $region64: #{tpu_custom_call.1} parent=51 // pred_fallthru
          _
        // Predicated region
        $region65: #{tpu_custom_call.1} parent=51 // pred_check
          %p384 = pneg %p118
        $region66: #{tpu_custom_call.1} parent=51 // pred_check_branch
          %386 = sbr.rel (%p384) target = $region68
        $region67: #{tpu_custom_call.1} parent=51 // pred_region
          %387 = dma.done [#allocation9], 16
        $region68: #{tpu_custom_call.1} parent=51 // pred_fallthru
          _
        // Predicated region
        $region69: #{tpu_custom_call.1} parent=51 // pred_check
          %p388 = pneg %p139
        $region70: #{tpu_custom_call.1} parent=51 // pred_check_branch
          %390 = sbr.rel (%p388) target = $region72
        $region71: #{tpu_custom_call.1} parent=51 // pred_region
          %391 = dma.done [#allocation9], 16
        $region72: #{tpu_custom_call.1} parent=51 // pred_fallthru
          _
        // Predicated region
        $region73: #{tpu_custom_call.1} parent=51 // pred_check
          %p392 = pneg %p160
        $region74: #{tpu_custom_call.1} parent=51 // pred_check_branch
          %394 = sbr.rel (%p392) target = $region76
        $region75: #{tpu_custom_call.1} parent=51 // pred_region
          %395 = dma.done [#allocation12], 16
        $region76: #{tpu_custom_call.1} parent=51 // pred_fallthru
          _
        // Predicated region
        $region77: #{tpu_custom_call.1} parent=51 // pred_check
          %p396 = pneg %p181
        $region78: #{tpu_custom_call.1} parent=51 // pred_check_branch
          %398 = sbr.rel (%p396) target = $region80
        $region79: #{tpu_custom_call.1} parent=51 // pred_region
          %399 = dma.done [#allocation12], 16
        $region80: #{tpu_custom_call.1} parent=51 // pred_fallthru
          _
        // Predicated region
        $region81: #{tpu_custom_call.1} parent=51 // pred_check
          %p400 = pneg %p202
        $region82: #{tpu_custom_call.1} parent=51 // pred_check_branch
          %402 = sbr.rel (%p400) target = $region84
        $region83: #{tpu_custom_call.1} parent=51 // pred_region
          %403 = dma.done [#allocation15], 16
        $region84: #{tpu_custom_call.1} parent=51 // pred_fallthru
          _
        %404 = sfence
        %s405 = sand.u32 %s37, 1
        %s406 = scalar_lea.sflag [#allocation3], %s405
        %s407 = sand.u32 %s37, 1
        %s408 = smul.addr %s407, 32
        %s409 = scalar_lea.vmem [#allocation2], %s408
        %p410 = pneg %p50
        %p411 = pneg %p47
        %s412 = sand.u32 %s63, 1
        %s413 = scalar_lea.sflag [#allocation6], %s412
        %s414 = sand.u32 %s63, 1
        %s415 = smul.addr %s414, 64
        %s416 = scalar_lea.vmem [#allocation5], %s415
        %p417 = pneg %p76
        %p418 = pneg %p73
        %p419 = pneg %p97
        %p420 = pneg %p94
        %p421 = pneg %p118
        %p422 = pneg %p115
        %p423 = pneg %p139
        %p424 = pneg %p136
        %p425 = pneg %p160
        %p426 = pneg %p157
        %p427 = pneg %p181
        %p428 = pneg %p178
        %p429 = pneg %p202
        %p430 = pneg %p199
        %p431 = pneg %p228
        %p432 = pneg %p225
        %p433 = scmp.lt.s32.totalorder %s29, 1
        %s434 = scalar_select %p433, %s29, 1
        %s435 = smul.addr %s434, 8
        %s436 = smul.addr %s435, 8
        %s437 = scalar_lea.vmem %s8, %s436
        %p438 = scmp.lt.s32.totalorder %s29, 1
        %s439 = scalar_select %p438, %s29, 1
        %s440 = smul.addr %s439, 8
        %s441 = smul.addr %s440, 8
        %s442 = scalar_lea.vmem %s8, %s441
        %v443 = vld [vmem:[%s366] sm:$0xff]
        %s444 = scalar_lea.vmem %s366, 8 [#allocation2]
        %v445 = vld [vmem:[%s444] sm:$0xff]
        %s446 = scalar_lea.vmem %s366, 16 [#allocation2]
        %v447 = vld [vmem:[%s446] sm:$0xff]
        %s448 = scalar_lea.vmem %s366, 24 [#allocation2]
        %v449 = vld [vmem:[%s448] sm:$0xff]
        %s450 = sld [smem:[#allocation8]]
        %v451 = vstv %s450
        %v452 = vadd.f32 %v451, 0.0
        %s453 = sld [smem:[#allocation8 + $0x1]]
        %v454 = vstv %s453
        %v455 = vadd.f32 %v454, 0.0
        %s456 = sld [smem:[#allocation7]]
        %v457 = vstv %s456
        %v458 = vmul.f32 %v457, %v443
        %v459 = vadd.f32 %v452, %v458
        %s460 = sld [smem:[#allocation7 + $0x4]]
        %v461 = vstv %s460
        %v462 = vmul.f32 %v461, %v443
        %v463 = vadd.f32 %v455, %v462
        %s464 = sld [smem:[#allocation7 + $0x8]]
        %v465 = vstv %s464
        %v466 = vmul.f32 %v465, %v443
        %v467 = vadd.f32 %v452, %v466
        %s468 = sld [smem:[#allocation7 + $0xc]]
        %v469 = vstv %s468
        %v470 = vmul.f32 %v469, %v443
        %v471 = vadd.f32 %v455, %v470
        %s472 = sld [smem:[#allocation7 + $0x10]]
        %v473 = vstv %s472
        %v474 = vmul.f32 %v473, %v443
        %v475 = vadd.f32 %v452, %v474
        %s476 = sld [smem:[#allocation7 + $0x14]]
        %v477 = vstv %s476
        %v478 = vmul.f32 %v477, %v443
        %v479 = vadd.f32 %v455, %v478
        %s480 = sld [smem:[#allocation7 + $0x18]]
        %v481 = vstv %s480
        %v482 = vmul.f32 %v481, %v443
        %v483 = vadd.f32 %v452, %v482
        %s484 = sld [smem:[#allocation7 + $0x1c]]
        %v485 = vstv %s484
        %v486 = vmul.f32 %v485, %v443
        %v487 = vadd.f32 %v455, %v486
        %s488 = sld [smem:[#allocation7 + $0x1]]
        %v489 = vstv %s488
        %v490 = vmul.f32 %v489, %v445
        %v491 = vadd.f32 %v459, %v490
        %s492 = sld [smem:[#allocation7 + $0x5]]
        %v493 = vstv %s492
        %v494 = vmul.f32 %v493, %v445
        %v495 = vadd.f32 %v463, %v494
        %s496 = sld [smem:[#allocation7 + $0x9]]
        %v497 = vstv %s496
        %v498 = vmul.f32 %v497, %v445
        %v499 = vadd.f32 %v467, %v498
        %s500 = sld [smem:[#allocation7 + $0xd]]
        %v501 = vstv %s500
        %v502 = vmul.f32 %v501, %v445
        %v503 = vadd.f32 %v471, %v502
        %s504 = sld [smem:[#allocation7 + $0x11]]
        %v505 = vstv %s504
        %v506 = vmul.f32 %v505, %v445
        %v507 = vadd.f32 %v475, %v506
        %s508 = sld [smem:[#allocation7 + $0x15]]
        %v509 = vstv %s508
        %v510 = vmul.f32 %v509, %v445
        %v511 = vadd.f32 %v479, %v510
        %s512 = sld [smem:[#allocation7 + $0x19]]
        %v513 = vstv %s512
        %v514 = vmul.f32 %v513, %v445
        %v515 = vadd.f32 %v483, %v514
        %s516 = sld [smem:[#allocation7 + $0x1d]]
        %v517 = vstv %s516
        %v518 = vmul.f32 %v517, %v445
        %v519 = vadd.f32 %v487, %v518
        %s520 = sld [smem:[#allocation7 + $0x2]]
        %v521 = vstv %s520
        %v522 = vmul.f32 %v521, %v447
        %v523 = vadd.f32 %v491, %v522
        %s524 = sld [smem:[#allocation7 + $0x6]]
        %v525 = vstv %s524
        %v526 = vmul.f32 %v525, %v447
        %v527 = vadd.f32 %v495, %v526
        %s528 = sld [smem:[#allocation7 + $0xa]]
        %v529 = vstv %s528
        %v530 = vmul.f32 %v529, %v447
        %v531 = vadd.f32 %v499, %v530
        %s532 = sld [smem:[#allocation7 + $0xe]]
        %v533 = vstv %s532
        %v534 = vmul.f32 %v533, %v447
        %v535 = vadd.f32 %v503, %v534
        %s536 = sld [smem:[#allocation7 + $0x12]]
        %v537 = vstv %s536
        %v538 = vmul.f32 %v537, %v447
        %v539 = vadd.f32 %v507, %v538
        %s540 = sld [smem:[#allocation7 + $0x16]]
        %v541 = vstv %s540
        %v542 = vmul.f32 %v541, %v447
        %v543 = vadd.f32 %v511, %v542
        %s544 = sld [smem:[#allocation7 + $0x1a]]
        %v545 = vstv %s544
        %v546 = vmul.f32 %v545, %v447
        %v547 = vadd.f32 %v515, %v546
        %s548 = sld [smem:[#allocation7 + $0x1e]]
        %v549 = vstv %s548
        %v550 = vmul.f32 %v549, %v447
        %v551 = vadd.f32 %v519, %v550
        %s552 = sld [smem:[#allocation7 + $0x3]]
        %v553 = vstv %s552
        %v554 = vmul.f32 %v553, %v449
        %v555 = vadd.f32 %v523, %v554
        %s556 = sld [smem:[#allocation7 + $0x7]]
        %v557 = vstv %s556
        %v558 = vmul.f32 %v557, %v449
        %v559 = vadd.f32 %v527, %v558
        %s560 = sld [smem:[#allocation7 + $0xb]]
        %v561 = vstv %s560
        %v562 = vmul.f32 %v561, %v449
        %v563 = vadd.f32 %v531, %v562
        %s564 = sld [smem:[#allocation7 + $0xf]]
        %v565 = vstv %s564
        %v566 = vmul.f32 %v565, %v449
        %v567 = vadd.f32 %v535, %v566
        %s568 = sld [smem:[#allocation7 + $0x13]]
        %v569 = vstv %s568
        %v570 = vmul.f32 %v569, %v449
        %v571 = vadd.f32 %v539, %v570
        %s572 = sld [smem:[#allocation7 + $0x17]]
        %v573 = vstv %s572
        %v574 = vmul.f32 %v573, %v449
        %v575 = vadd.f32 %v543, %v574
        %s576 = sld [smem:[#allocation7 + $0x1b]]
        %v577 = vstv %s576
        %v578 = vmul.f32 %v577, %v449
        %v579 = vadd.f32 %v547, %v578
        %s580 = sld [smem:[#allocation7 + $0x1f]]
        %v581 = vstv %s580
        %v582 = vmul.f32 %v581, %v449
        %v583 = vadd.f32 %v551, %v582
        %v584 = vld [vmem:[%s375] sm:$0xff]
        %s585 = scalar_lea.vmem %s375, 8 [#allocation5]
        %v586 = vld [vmem:[%s585] sm:$0xff]
        %s587 = scalar_lea.vmem %s375, 16 [#allocation5]
        %v588 = vld [vmem:[%s587] sm:$0xff]
        %s589 = scalar_lea.vmem %s375, 24 [#allocation5]
        %v590 = vld [vmem:[%s589] sm:$0xff]
        %s591 = scalar_lea.vmem %s375, 32 [#allocation5]
        %v592 = vld [vmem:[%s591] sm:$0xff]
        %s593 = scalar_lea.vmem %s375, 40 [#allocation5]
        %v594 = vld [vmem:[%s593] sm:$0xff]
        %s595 = scalar_lea.vmem %s375, 48 [#allocation5]
        %v596 = vld [vmem:[%s595] sm:$0xff]
        %s597 = scalar_lea.vmem %s375, 56 [#allocation5]
        %v598 = vld [vmem:[%s597] sm:$0xff]
        %s599 = sld [smem:[#allocation11]]
        %v600 = vstv %s599
        %v601 = vadd.f32 %v600, 0.0
        %s602 = sld [smem:[#allocation11 + $0x1]]
        %v603 = vstv %s602
        %v604 = vadd.f32 %v603, 0.0
        %s605 = sld [smem:[#allocation10]]
        %v606 = vstv %s605
        %v607 = vmul.f32 %v606, %v555
        %v608 = vadd.f32 %v601, %v607
        %s609 = sld [smem:[#allocation10 + $0x24]]
        %v610 = vstv %s609
        %v611 = vmul.f32 %v610, %v555
        %v612 = vadd.f32 %v604, %v611
        %s613 = sld [smem:[#allocation10 + $0x1]]
        %v614 = vstv %s613
        %v615 = vmul.f32 %v614, %v563
        %v616 = vadd.f32 %v608, %v615
        %s617 = sld [smem:[#allocation10 + $0x25]]
        %v618 = vstv %s617
        %v619 = vmul.f32 %v618, %v563
        %v620 = vadd.f32 %v612, %v619
        %s621 = sld [smem:[#allocation10 + $0x2]]
        %v622 = vstv %s621
        %v623 = vmul.f32 %v622, %v555
        %625 = vrot.lane.b32.xlu0 %v623, 127
        %v626 = vpop.permute.xlu0 %625
        %v628 = vadd.f32 %v616, %v626
        %s629 = sld [smem:[#allocation10 + $0x26]]
        %v630 = vstv %s629
        %v631 = vmul.f32 %v630, %v555
        %633 = vrot.lane.b32.xlu0 %v631, 127
        %v634 = vpop.permute.xlu0 %633
        %v636 = vadd.f32 %v620, %v634
        %s637 = sld [smem:[#allocation10 + $0x3]]
        %v638 = vstv %s637
        %v639 = vmul.f32 %v638, %v571
        %v640 = vadd.f32 %v628, %v639
        %s641 = sld [smem:[#allocation10 + $0x27]]
        %v642 = vstv %s641
        %v643 = vmul.f32 %v642, %v571
        %v644 = vadd.f32 %v636, %v643
        %s645 = sld [smem:[#allocation10 + $0x4]]
        %v646 = vstv %s645
        %v647 = vmul.f32 %v646, %v579
        %v648 = vadd.f32 %v640, %v647
        %s649 = sld [smem:[#allocation10 + $0x28]]
        %v650 = vstv %s649
        %v651 = vmul.f32 %v650, %v579
        %v652 = vadd.f32 %v644, %v651
        %s653 = sld [smem:[#allocation10 + $0x5]]
        %v654 = vstv %s653
        %v655 = vmul.f32 %v654, %v571
        %657 = vrot.lane.b32.xlu0 %v655, 127
        %v658 = vpop.permute.xlu0 %657
        %v660 = vadd.f32 %v648, %v658
        %s661 = sld [smem:[#allocation10 + $0x29]]
        %v662 = vstv %s661
        %v663 = vmul.f32 %v662, %v571
        %665 = vrot.lane.b32.xlu0 %v663, 127
        %v666 = vpop.permute.xlu0 %665
        %v668 = vadd.f32 %v652, %v666
        %s669 = sld [smem:[#allocation10 + $0x6]]
        %v670 = vstv %s669
        %v671 = vmul.f32 %v670, %v555
        %v673 = vrot.slane %v671, 1
        %v675 = vadd.f32 %v660, %v673
        %s676 = sld [smem:[#allocation10 + $0x2a]]
        %v677 = vstv %s676
        %v678 = vmul.f32 %v677, %v555
        %v680 = vrot.slane %v678, 1
        %v682 = vadd.f32 %v668, %v680
        %s683 = sld [smem:[#allocation10 + $0x7]]
        %v684 = vstv %s683
        %v685 = vmul.f32 %v684, %v563
        %v687 = vrot.slane %v685, 1
        %v689 = vadd.f32 %v675, %v687
        %s690 = sld [smem:[#allocation10 + $0x2b]]
        %v691 = vstv %s690
        %v692 = vmul.f32 %v691, %v563
        %v694 = vrot.slane %v692, 1
        %v696 = vadd.f32 %v682, %v694
        %s697 = sld [smem:[#allocation10 + $0x8]]
        %v698 = vstv %s697
        %v699 = vmul.f32 %v698, %v555
        %v701 = vrot.slane %v699, 1
        %702 = vrot.lane.b32.xlu0 %v701, 127
        %v703 = vpop.permute.xlu0 %702
        %v705 = vadd.f32 %v689, %v703
        %s706 = sld [smem:[#allocation10 + $0x2c]]
        %v707 = vstv %s706
        %v708 = vmul.f32 %v707, %v555
        %v710 = vrot.slane %v708, 1
        %711 = vrot.lane.b32.xlu0 %v710, 127
        %v712 = vpop.permute.xlu0 %711
        %v714 = vadd.f32 %v696, %v712
        %s715 = sld [smem:[#allocation10 + $0x9]]
        %v716 = vstv %s715
        %v717 = vmul.f32 %v716, %v559
        %v718 = vadd.f32 %v705, %v717
        %s719 = sld [smem:[#allocation10 + $0x2d]]
        %v720 = vstv %s719
        %v721 = vmul.f32 %v720, %v559
        %v722 = vadd.f32 %v714, %v721
        %s723 = sld [smem:[#allocation10 + $0xa]]
        %v724 = vstv %s723
        %v725 = vmul.f32 %v724, %v567
        %v726 = vadd.f32 %v718, %v725
        %s727 = sld [smem:[#allocation10 + $0x2e]]
        %v728 = vstv %s727
        %v729 = vmul.f32 %v728, %v567
        %v730 = vadd.f32 %v722, %v729
        %s731 = sld [smem:[#allocation10 + $0xb]]
        %v732 = vstv %s731
        %v733 = vmul.f32 %v732, %v559
        %735 = vrot.lane.b32.xlu0 %v733, 127
        %v736 = vpop.permute.xlu0 %735
        %v738 = vadd.f32 %v726, %v736
        %s739 = sld [smem:[#allocation10 + $0x2f]]
        %v740 = vstv %s739
        %v741 = vmul.f32 %v740, %v559
        %743 = vrot.lane.b32.xlu0 %v741, 127
        %v744 = vpop.permute.xlu0 %743
        %v746 = vadd.f32 %v730, %v744
        %s747 = sld [smem:[#allocation10 + $0xc]]
        %v748 = vstv %s747
        %v749 = vmul.f32 %v748, %v575
        %v750 = vadd.f32 %v738, %v749
        %s751 = sld [smem:[#allocation10 + $0x30]]
        %v752 = vstv %s751
        %v753 = vmul.f32 %v752, %v575
        %v754 = vadd.f32 %v746, %v753
        %s755 = sld [smem:[#allocation10 + $0xd]]
        %v756 = vstv %s755
        %v757 = vmul.f32 %v756, %v583
        %v758 = vadd.f32 %v750, %v757
        %s759 = sld [smem:[#allocation10 + $0x31]]
        %v760 = vstv %s759
        %v761 = vmul.f32 %v760, %v583
        %v762 = vadd.f32 %v754, %v761
        %s763 = sld [smem:[#allocation10 + $0xe]]
        %v764 = vstv %s763
        %v765 = vmul.f32 %v764, %v575
        %767 = vrot.lane.b32.xlu0 %v765, 127
        %v768 = vpop.permute.xlu0 %767
        %v770 = vadd.f32 %v758, %v768
        %s771 = sld [smem:[#allocation10 + $0x32]]
        %v772 = vstv %s771
        %v773 = vmul.f32 %v772, %v575
        %775 = vrot.lane.b32.xlu0 %v773, 127
        %v776 = vpop.permute.xlu0 %775
        %v778 = vadd.f32 %v762, %v776
        %s779 = sld [smem:[#allocation10 + $0xf]]
        %v780 = vstv %s779
        %v781 = vmul.f32 %v780, %v559
        %v783 = vrot.slane %v781, 1
        %v785 = vadd.f32 %v770, %v783
        %s786 = sld [smem:[#allocation10 + $0x33]]
        %v787 = vstv %s786
        %v788 = vmul.f32 %v787, %v559
        %v790 = vrot.slane %v788, 1
        %v792 = vadd.f32 %v778, %v790
        %s793 = sld [smem:[#allocation10 + $0x10]]
        %v794 = vstv %s793
        %v795 = vmul.f32 %v794, %v567
        %v797 = vrot.slane %v795, 1
        %v799 = vadd.f32 %v785, %v797
        %s800 = sld [smem:[#allocation10 + $0x34]]
        %v801 = vstv %s800
        %v802 = vmul.f32 %v801, %v567
        %v804 = vrot.slane %v802, 1
        %v806 = vadd.f32 %v792, %v804
        %s807 = sld [smem:[#allocation10 + $0x11]]
        %v808 = vstv %s807
        %v809 = vmul.f32 %v808, %v559
        %v811 = vrot.slane %v809, 1
        %812 = vrot.lane.b32.xlu0 %v811, 127
        %v813 = vpop.permute.xlu0 %812
        %v815 = vadd.f32 %v799, %v813
        %s816 = sld [smem:[#allocation10 + $0x35]]
        %v817 = vstv %s816
        %v818 = vmul.f32 %v817, %v559
        %v820 = vrot.slane %v818, 1
        %821 = vrot.lane.b32.xlu0 %v820, 127
        %v822 = vpop.permute.xlu0 %821
        %v824 = vadd.f32 %v806, %v822
        %s825 = sld [smem:[#allocation10 + $0x12]]
        %v826 = vstv %s825
        %v827 = vmul.f32 %v826, %v584
        %v828 = vadd.f32 %v815, %v827
        %s829 = sld [smem:[#allocation10 + $0x36]]
        %v830 = vstv %s829
        %v831 = vmul.f32 %v830, %v584
        %v832 = vadd.f32 %v824, %v831
        %s833 = sld [smem:[#allocation10 + $0x13]]
        %v834 = vstv %s833
        %v835 = vmul.f32 %v834, %v588
        %v836 = vadd.f32 %v828, %v835
        %s837 = sld [smem:[#allocation10 + $0x37]]
        %v838 = vstv %s837
        %v839 = vmul.f32 %v838, %v588
        %v840 = vadd.f32 %v832, %v839
        %s841 = sld [smem:[#allocation10 + $0x14]]
        %v842 = vstv %s841
        %v843 = vmul.f32 %v842, %v584
        %845 = vrot.lane.b32.xlu0 %v843, 127
        %v846 = vpop.permute.xlu0 %845
        %v848 = vadd.f32 %v836, %v846
        %s849 = sld [smem:[#allocation10 + $0x38]]
        %v850 = vstv %s849
        %v851 = vmul.f32 %v850, %v584
        %853 = vrot.lane.b32.xlu0 %v851, 127
        %v854 = vpop.permute.xlu0 %853
        %v856 = vadd.f32 %v840, %v854
        %s857 = sld [smem:[#allocation10 + $0x15]]
        %v858 = vstv %s857
        %v859 = vmul.f32 %v858, %v592
        %v860 = vadd.f32 %v848, %v859
        %s861 = sld [smem:[#allocation10 + $0x39]]
        %v862 = vstv %s861
        %v863 = vmul.f32 %v862, %v592
        %v864 = vadd.f32 %v856, %v863
        %s865 = sld [smem:[#allocation10 + $0x16]]
        %v866 = vstv %s865
        %v867 = vmul.f32 %v866, %v596
        %v868 = vadd.f32 %v860, %v867
        %s869 = sld [smem:[#allocation10 + $0x3a]]
        %v870 = vstv %s869
        %v871 = vmul.f32 %v870, %v596
        %v872 = vadd.f32 %v864, %v871
        %s873 = sld [smem:[#allocation10 + $0x17]]
        %v874 = vstv %s873
        %v875 = vmul.f32 %v874, %v592
        %877 = vrot.lane.b32.xlu0 %v875, 127
        %v878 = vpop.permute.xlu0 %877
        %v880 = vadd.f32 %v868, %v878
        %s881 = sld [smem:[#allocation10 + $0x3b]]
        %v882 = vstv %s881
        %v883 = vmul.f32 %v882, %v592
        %885 = vrot.lane.b32.xlu0 %v883, 127
        %v886 = vpop.permute.xlu0 %885
        %v888 = vadd.f32 %v872, %v886
        %s889 = sld [smem:[#allocation10 + $0x18]]
        %v890 = vstv %s889
        %v891 = vmul.f32 %v890, %v584
        %v893 = vrot.slane %v891, 1
        %v895 = vadd.f32 %v880, %v893
        %s896 = sld [smem:[#allocation10 + $0x3c]]
        %v897 = vstv %s896
        %v898 = vmul.f32 %v897, %v584
        %v900 = vrot.slane %v898, 1
        %v902 = vadd.f32 %v888, %v900
        %s903 = sld [smem:[#allocation10 + $0x19]]
        %v904 = vstv %s903
        %v905 = vmul.f32 %v904, %v588
        %v907 = vrot.slane %v905, 1
        %v909 = vadd.f32 %v895, %v907
        %s910 = sld [smem:[#allocation10 + $0x3d]]
        %v911 = vstv %s910
        %v912 = vmul.f32 %v911, %v588
        %v914 = vrot.slane %v912, 1
        %v916 = vadd.f32 %v902, %v914
        %s917 = sld [smem:[#allocation10 + $0x1a]]
        %v918 = vstv %s917
        %v919 = vmul.f32 %v918, %v584
        %v921 = vrot.slane %v919, 1
        %922 = vrot.lane.b32.xlu0 %v921, 127
        %v923 = vpop.permute.xlu0 %922
        %v925 = vadd.f32 %v909, %v923
        %s926 = sld [smem:[#allocation10 + $0x3e]]
        %v927 = vstv %s926
        %v928 = vmul.f32 %v927, %v584
        %v930 = vrot.slane %v928, 1
        %931 = vrot.lane.b32.xlu0 %v930, 127
        %v932 = vpop.permute.xlu0 %931
        %v934 = vadd.f32 %v916, %v932
        %s935 = sld [smem:[#allocation10 + $0x1b]]
        %v936 = vstv %s935
        %v937 = vmul.f32 %v936, %v586
        %v938 = vadd.f32 %v925, %v937
        %s939 = sld [smem:[#allocation10 + $0x3f]]
        %v940 = vstv %s939
        %v941 = vmul.f32 %v940, %v586
        %v942 = vadd.f32 %v934, %v941
        %s943 = sld [smem:[#allocation10 + $0x1c]]
        %v944 = vstv %s943
        %v945 = vmul.f32 %v944, %v590
        %v946 = vadd.f32 %v938, %v945
        %s947 = sld [smem:[#allocation10 + $0x40]]
        %v948 = vstv %s947
        %v949 = vmul.f32 %v948, %v590
        %v950 = vadd.f32 %v942, %v949
        %s951 = sld [smem:[#allocation10 + $0x1d]]
        %v952 = vstv %s951
        %v953 = vmul.f32 %v952, %v586
        %955 = vrot.lane.b32.xlu0 %v953, 127
        %v956 = vpop.permute.xlu0 %955
        %v958 = vadd.f32 %v946, %v956
        %s959 = sld [smem:[#allocation10 + $0x41]]
        %v960 = vstv %s959
        %v961 = vmul.f32 %v960, %v586
        %963 = vrot.lane.b32.xlu0 %v961, 127
        %v964 = vpop.permute.xlu0 %963
        %v966 = vadd.f32 %v950, %v964
        %s967 = sld [smem:[#allocation10 + $0x1e]]
        %v968 = vstv %s967
        %v969 = vmul.f32 %v968, %v594
        %v970 = vadd.f32 %v958, %v969
        %s971 = sld [smem:[#allocation10 + $0x42]]
        %v972 = vstv %s971
        %v973 = vmul.f32 %v972, %v594
        %v974 = vadd.f32 %v966, %v973
        %s975 = sld [smem:[#allocation10 + $0x1f]]
        %v976 = vstv %s975
        %v977 = vmul.f32 %v976, %v598
        %v978 = vadd.f32 %v970, %v977
        %s979 = sld [smem:[#allocation10 + $0x43]]
        %v980 = vstv %s979
        %v981 = vmul.f32 %v980, %v598
        %v982 = vadd.f32 %v974, %v981
        %s983 = sld [smem:[#allocation10 + $0x20]]
        %v984 = vstv %s983
        %v985 = vmul.f32 %v984, %v594
        %987 = vrot.lane.b32.xlu0 %v985, 127
        %v988 = vpop.permute.xlu0 %987
        %v990 = vadd.f32 %v978, %v988
        %s991 = sld [smem:[#allocation10 + $0x44]]
        %v992 = vstv %s991
        %v993 = vmul.f32 %v992, %v594
        %995 = vrot.lane.b32.xlu0 %v993, 127
        %v996 = vpop.permute.xlu0 %995
        %v998 = vadd.f32 %v982, %v996
        %s999 = sld [smem:[#allocation10 + $0x21]]
        %v1000 = vstv %s999
        %v1001 = vmul.f32 %v1000, %v586
        %v1003 = vrot.slane %v1001, 1
        %v1005 = vadd.f32 %v990, %v1003
        %s1006 = sld [smem:[#allocation10 + $0x45]]
        %v1007 = vstv %s1006
        %v1008 = vmul.f32 %v1007, %v586
        %v1010 = vrot.slane %v1008, 1
        %v1012 = vadd.f32 %v998, %v1010
        %s1013 = sld [smem:[#allocation10 + $0x22]]
        %v1014 = vstv %s1013
        %v1015 = vmul.f32 %v1014, %v590
        %v1017 = vrot.slane %v1015, 1
        %v1019 = vadd.f32 %v1005, %v1017
        %s1020 = sld [smem:[#allocation10 + $0x46]]
        %v1021 = vstv %s1020
        %v1022 = vmul.f32 %v1021, %v590
        %v1024 = vrot.slane %v1022, 1
        %v1026 = vadd.f32 %v1012, %v1024
        %s1027 = sld [smem:[#allocation10 + $0x23]]
        %v1028 = vstv %s1027
        %v1029 = vmul.f32 %v1028, %v586
        %v1031 = vrot.slane %v1029, 1
        %1032 = vrot.lane.b32.xlu0 %v1031, 127
        %v1033 = vpop.permute.xlu0 %1032
        %v1035 = vadd.f32 %v1019, %v1033
        %s1036 = sld [smem:[#allocation10 + $0x47]]
        %v1037 = vstv %s1036
        %v1038 = vmul.f32 %v1037, %v586
        %v1040 = vrot.slane %v1038, 1
        %1041 = vrot.lane.b32.xlu0 %v1040, 127
        %v1042 = vpop.permute.xlu0 %1041
        %v1044 = vadd.f32 %v1026, %v1042
        %v1045 = vmax.f32 %v1035, 0.0
        %v1046 = vmax.f32 %v1044, 0.0
        %v1047 = vmul.f32 %v606, %v563
        %v1048 = vadd.f32 %v601, %v1047
        %v1049 = vmul.f32 %v610, %v563
        %v1050 = vadd.f32 %v604, %v1049
        %v1051 = vmul.f32 %v614, %v555
        %1053 = vrot.lane.b32.xlu0 %v1051, 127
        %v1054 = vpop.permute.xlu0 %1053
        %v1056 = vadd.f32 %v1048, %v1054
        %v1057 = vmul.f32 %v618, %v555
        %1059 = vrot.lane.b32.xlu0 %v1057, 127
        %v1060 = vpop.permute.xlu0 %1059
        %v1062 = vadd.f32 %v1050, %v1060
        %v1063 = vmul.f32 %v622, %v563
        %1065 = vrot.lane.b32.xlu0 %v1063, 127
        %v1066 = vpop.permute.xlu0 %1065
        %v1068 = vadd.f32 %v1056, %v1066
        %v1069 = vmul.f32 %v630, %v563
        %1071 = vrot.lane.b32.xlu0 %v1069, 127
        %v1072 = vpop.permute.xlu0 %1071
        %v1074 = vadd.f32 %v1062, %v1072
        %v1075 = vmul.f32 %v638, %v579
        %v1076 = vadd.f32 %v1068, %v1075
        %v1077 = vmul.f32 %v642, %v579
        %v1078 = vadd.f32 %v1074, %v1077
        %v1079 = vmul.f32 %v646, %v571
        %1081 = vrot.lane.b32.xlu0 %v1079, 127
        %v1082 = vpop.permute.xlu0 %1081
        %v1084 = vadd.f32 %v1076, %v1082
        %v1085 = vmul.f32 %v650, %v571
        %1087 = vrot.lane.b32.xlu0 %v1085, 127
        %v1088 = vpop.permute.xlu0 %1087
        %v1090 = vadd.f32 %v1078, %v1088
        %v1091 = vmul.f32 %v654, %v579
        %1093 = vrot.lane.b32.xlu0 %v1091, 127
        %v1094 = vpop.permute.xlu0 %1093
        %v1096 = vadd.f32 %v1084, %v1094
        %v1097 = vmul.f32 %v662, %v579
        %1099 = vrot.lane.b32.xlu0 %v1097, 127
        %v1100 = vpop.permute.xlu0 %1099
        %v1102 = vadd.f32 %v1090, %v1100
        %v1103 = vmul.f32 %v670, %v563
        %v1105 = vrot.slane %v1103, 1
        %v1107 = vadd.f32 %v1096, %v1105
        %v1108 = vmul.f32 %v677, %v563
        %v1110 = vrot.slane %v1108, 1
        %v1112 = vadd.f32 %v1102, %v1110
        %v1113 = vmul.f32 %v684, %v555
        %v1115 = vrot.slane %v1113, 1
        %1116 = vrot.lane.b32.xlu0 %v1115, 127
        %v1117 = vpop.permute.xlu0 %1116
        %v1119 = vadd.f32 %v1107, %v1117
        %v1120 = vmul.f32 %v691, %v555
        %v1122 = vrot.slane %v1120, 1
        %1123 = vrot.lane.b32.xlu0 %v1122, 127
        %v1124 = vpop.permute.xlu0 %1123
        %v1126 = vadd.f32 %v1112, %v1124
        %v1127 = vmul.f32 %v698, %v563
        %v1129 = vrot.slane %v1127, 1
        %1130 = vrot.lane.b32.xlu0 %v1129, 127
        %v1131 = vpop.permute.xlu0 %1130
        %v1133 = vadd.f32 %v1119, %v1131
        %v1134 = vmul.f32 %v707, %v563
        %v1136 = vrot.slane %v1134, 1
        %1137 = vrot.lane.b32.xlu0 %v1136, 127
        %v1138 = vpop.permute.xlu0 %1137
        %v1140 = vadd.f32 %v1126, %v1138
        %v1141 = vmul.f32 %v716, %v567
        %v1142 = vadd.f32 %v1133, %v1141
        %v1143 = vmul.f32 %v720, %v567
        %v1144 = vadd.f32 %v1140, %v1143
        %v1145 = vmul.f32 %v724, %v559
        %1147 = vrot.lane.b32.xlu0 %v1145, 127
        %v1148 = vpop.permute.xlu0 %1147
        %v1150 = vadd.f32 %v1142, %v1148
        %v1151 = vmul.f32 %v728, %v559
        %1153 = vrot.lane.b32.xlu0 %v1151, 127
        %v1154 = vpop.permute.xlu0 %1153
        %v1156 = vadd.f32 %v1144, %v1154
        %v1157 = vmul.f32 %v732, %v567
        %1159 = vrot.lane.b32.xlu0 %v1157, 127
        %v1160 = vpop.permute.xlu0 %1159
        %v1162 = vadd.f32 %v1150, %v1160
        %v1163 = vmul.f32 %v740, %v567
        %1165 = vrot.lane.b32.xlu0 %v1163, 127
        %v1166 = vpop.permute.xlu0 %1165
        %v1168 = vadd.f32 %v1156, %v1166
        %v1169 = vmul.f32 %v748, %v583
        %v1170 = vadd.f32 %v1162, %v1169
        %v1171 = vmul.f32 %v752, %v583
        %v1172 = vadd.f32 %v1168, %v1171
        %v1173 = vmul.f32 %v756, %v575
        %1175 = vrot.lane.b32.xlu0 %v1173, 127
        %v1176 = vpop.permute.xlu0 %1175
        %v1178 = vadd.f32 %v1170, %v1176
        %v1179 = vmul.f32 %v760, %v575
        %1181 = vrot.lane.b32.xlu0 %v1179, 127
        %v1182 = vpop.permute.xlu0 %1181
        %v1184 = vadd.f32 %v1172, %v1182
        %v1185 = vmul.f32 %v764, %v583
        %1187 = vrot.lane.b32.xlu0 %v1185, 127
        %v1188 = vpop.permute.xlu0 %1187
        %v1190 = vadd.f32 %v1178, %v1188
        %v1191 = vmul.f32 %v772, %v583
        %1193 = vrot.lane.b32.xlu0 %v1191, 127
        %v1194 = vpop.permute.xlu0 %1193
        %v1196 = vadd.f32 %v1184, %v1194
        %v1197 = vmul.f32 %v780, %v567
        %v1199 = vrot.slane %v1197, 1
        %v1201 = vadd.f32 %v1190, %v1199
        %v1202 = vmul.f32 %v787, %v567
        %v1204 = vrot.slane %v1202, 1
        %v1206 = vadd.f32 %v1196, %v1204
        %v1207 = vmul.f32 %v794, %v559
        %v1209 = vrot.slane %v1207, 1
        %1210 = vrot.lane.b32.xlu0 %v1209, 127
        %v1211 = vpop.permute.xlu0 %1210
        %v1213 = vadd.f32 %v1201, %v1211
        %v1214 = vmul.f32 %v801, %v559
        %v1216 = vrot.slane %v1214, 1
        %1217 = vrot.lane.b32.xlu0 %v1216, 127
        %v1218 = vpop.permute.xlu0 %1217
        %v1220 = vadd.f32 %v1206, %v1218
        %v1221 = vmul.f32 %v808, %v567
        %v1223 = vrot.slane %v1221, 1
        %1224 = vrot.lane.b32.xlu0 %v1223, 127
        %v1225 = vpop.permute.xlu0 %1224
        %v1227 = vadd.f32 %v1213, %v1225
        %v1228 = vmul.f32 %v817, %v567
        %v1230 = vrot.slane %v1228, 1
        %1231 = vrot.lane.b32.xlu0 %v1230, 127
        %v1232 = vpop.permute.xlu0 %1231
        %v1234 = vadd.f32 %v1220, %v1232
        %v1235 = vmul.f32 %v826, %v588
        %v1236 = vadd.f32 %v1227, %v1235
        %v1237 = vmul.f32 %v830, %v588
        %v1238 = vadd.f32 %v1234, %v1237
        %v1239 = vmul.f32 %v834, %v584
        %1241 = vrot.lane.b32.xlu0 %v1239, 127
        %v1242 = vpop.permute.xlu0 %1241
        %v1244 = vadd.f32 %v1236, %v1242
        %v1245 = vmul.f32 %v838, %v584
        %1247 = vrot.lane.b32.xlu0 %v1245, 127
        %v1248 = vpop.permute.xlu0 %1247
        %v1250 = vadd.f32 %v1238, %v1248
        %v1251 = vmul.f32 %v842, %v588
        %1253 = vrot.lane.b32.xlu0 %v1251, 127
        %v1254 = vpop.permute.xlu0 %1253
        %v1256 = vadd.f32 %v1244, %v1254
        %v1257 = vmul.f32 %v850, %v588
        %1259 = vrot.lane.b32.xlu0 %v1257, 127
        %v1260 = vpop.permute.xlu0 %1259
        %v1262 = vadd.f32 %v1250, %v1260
        %v1263 = vmul.f32 %v858, %v596
        %v1264 = vadd.f32 %v1256, %v1263
        %v1265 = vmul.f32 %v862, %v596
        %v1266 = vadd.f32 %v1262, %v1265
        %v1267 = vmul.f32 %v866, %v592
        %1269 = vrot.lane.b32.xlu0 %v1267, 127
        %v1270 = vpop.permute.xlu0 %1269
        %v1272 = vadd.f32 %v1264, %v1270
        %v1273 = vmul.f32 %v870, %v592
        %1275 = vrot.lane.b32.xlu0 %v1273, 127
        %v1276 = vpop.permute.xlu0 %1275
        %v1278 = vadd.f32 %v1266, %v1276
        %v1279 = vmul.f32 %v874, %v596
        %1281 = vrot.lane.b32.xlu0 %v1279, 127
        %v1282 = vpop.permute.xlu0 %1281
        %v1284 = vadd.f32 %v1272, %v1282
        %v1285 = vmul.f32 %v882, %v596
        %1287 = vrot.lane.b32.xlu0 %v1285, 127
        %v1288 = vpop.permute.xlu0 %1287
        %v1290 = vadd.f32 %v1278, %v1288
        %v1291 = vmul.f32 %v890, %v588
        %v1293 = vrot.slane %v1291, 1
        %v1295 = vadd.f32 %v1284, %v1293
        %v1296 = vmul.f32 %v897, %v588
        %v1298 = vrot.slane %v1296, 1
        %v1300 = vadd.f32 %v1290, %v1298
        %v1301 = vmul.f32 %v904, %v584
        %v1303 = vrot.slane %v1301, 1
        %1304 = vrot.lane.b32.xlu0 %v1303, 127
        %v1305 = vpop.permute.xlu0 %1304
        %v1307 = vadd.f32 %v1295, %v1305
        %v1308 = vmul.f32 %v911, %v584
        %v1310 = vrot.slane %v1308, 1
        %1311 = vrot.lane.b32.xlu0 %v1310, 127
        %v1312 = vpop.permute.xlu0 %1311
        %v1314 = vadd.f32 %v1300, %v1312
        %v1315 = vmul.f32 %v918, %v588
        %v1317 = vrot.slane %v1315, 1
        %1318 = vrot.lane.b32.xlu0 %v1317, 127
        %v1319 = vpop.permute.xlu0 %1318
        %v1321 = vadd.f32 %v1307, %v1319
        %v1322 = vmul.f32 %v927, %v588
        %v1324 = vrot.slane %v1322, 1
        %1325 = vrot.lane.b32.xlu0 %v1324, 127
        %v1326 = vpop.permute.xlu0 %1325
        %v1328 = vadd.f32 %v1314, %v1326
        %v1329 = vmul.f32 %v936, %v590
        %v1330 = vadd.f32 %v1321, %v1329
        %v1331 = vmul.f32 %v940, %v590
        %v1332 = vadd.f32 %v1328, %v1331
        %v1333 = vmul.f32 %v944, %v586
        %1335 = vrot.lane.b32.xlu0 %v1333, 127
        %v1336 = vpop.permute.xlu0 %1335
        %v1338 = vadd.f32 %v1330, %v1336
        %v1339 = vmul.f32 %v948, %v586
        %1341 = vrot.lane.b32.xlu0 %v1339, 127
        %v1342 = vpop.permute.xlu0 %1341
        %v1344 = vadd.f32 %v1332, %v1342
        %v1345 = vmul.f32 %v952, %v590
        %1347 = vrot.lane.b32.xlu0 %v1345, 127
        %v1348 = vpop.permute.xlu0 %1347
        %v1350 = vadd.f32 %v1338, %v1348
        %v1351 = vmul.f32 %v960, %v590
        %1353 = vrot.lane.b32.xlu0 %v1351, 127
        %v1354 = vpop.permute.xlu0 %1353
        %v1356 = vadd.f32 %v1344, %v1354
        %v1357 = vmul.f32 %v968, %v598
        %v1358 = vadd.f32 %v1350, %v1357
        %v1359 = vmul.f32 %v972, %v598
        %v1360 = vadd.f32 %v1356, %v1359
        %v1361 = vmul.f32 %v976, %v594
        %1363 = vrot.lane.b32.xlu0 %v1361, 127
        %v1364 = vpop.permute.xlu0 %1363
        %v1366 = vadd.f32 %v1358, %v1364
        %v1367 = vmul.f32 %v980, %v594
        %1369 = vrot.lane.b32.xlu0 %v1367, 127
        %v1370 = vpop.permute.xlu0 %1369
        %v1372 = vadd.f32 %v1360, %v1370
        %v1373 = vmul.f32 %v984, %v598
        %1375 = vrot.lane.b32.xlu0 %v1373, 127
        %v1376 = vpop.permute.xlu0 %1375
        %v1378 = vadd.f32 %v1366, %v1376
        %v1379 = vmul.f32 %v992, %v598
        %1381 = vrot.lane.b32.xlu0 %v1379, 127
        %v1382 = vpop.permute.xlu0 %1381
        %v1384 = vadd.f32 %v1372, %v1382
        %v1385 = vmul.f32 %v1000, %v590
        %v1387 = vrot.slane %v1385, 1
        %v1389 = vadd.f32 %v1378, %v1387
        %v1390 = vmul.f32 %v1007, %v590
        %v1392 = vrot.slane %v1390, 1
        %v1394 = vadd.f32 %v1384, %v1392
        %v1395 = vmul.f32 %v1014, %v586
        %v1397 = vrot.slane %v1395, 1
        %1398 = vrot.lane.b32.xlu0 %v1397, 127
        %v1399 = vpop.permute.xlu0 %1398
        %v1401 = vadd.f32 %v1389, %v1399
        %v1402 = vmul.f32 %v1021, %v586
        %v1404 = vrot.slane %v1402, 1
        %1405 = vrot.lane.b32.xlu0 %v1404, 127
        %v1406 = vpop.permute.xlu0 %1405
        %v1408 = vadd.f32 %v1394, %v1406
        %v1409 = vmul.f32 %v1028, %v590
        %v1411 = vrot.slane %v1409, 1
        %1412 = vrot.lane.b32.xlu0 %v1411, 127
        %v1413 = vpop.permute.xlu0 %1412
        %v1415 = vadd.f32 %v1401, %v1413
        %v1416 = vmul.f32 %v1037, %v590
        %v1418 = vrot.slane %v1416, 1
        %1419 = vrot.lane.b32.xlu0 %v1418, 127
        %v1420 = vpop.permute.xlu0 %1419
        %v1422 = vadd.f32 %v1408, %v1420
        %v1423 = vmax.f32 %v1415, 0.0
        %v1424 = vmax.f32 %v1422, 0.0
        %v1425 = vmul.f32 %v606, %v571
        %v1426 = vadd.f32 %v601, %v1425
        %v1427 = vmul.f32 %v610, %v571
        %v1428 = vadd.f32 %v604, %v1427
        %v1429 = vmul.f32 %v614, %v579
        %v1430 = vadd.f32 %v1426, %v1429
        %v1431 = vmul.f32 %v618, %v579
        %v1432 = vadd.f32 %v1428, %v1431
        %v1433 = vmul.f32 %v622, %v571
        %1435 = vrot.lane.b32.xlu0 %v1433, 127
        %v1436 = vpop.permute.xlu0 %1435
        %v1438 = vadd.f32 %v1430, %v1436
        %v1439 = vmul.f32 %v630, %v571
        %1441 = vrot.lane.b32.xlu0 %v1439, 127
        %v1442 = vpop.permute.xlu0 %1441
        %v1444 = vadd.f32 %v1432, %v1442
        %v1445 = vmul.f32 %v638, %v555
        %v1447 = vrot.slane %v1445, 1
        %v1449 = vadd.f32 %v1438, %v1447
        %v1450 = vmul.f32 %v642, %v555
        %v1452 = vrot.slane %v1450, 1
        %v1454 = vadd.f32 %v1444, %v1452
        %v1455 = vmul.f32 %v646, %v563
        %v1457 = vrot.slane %v1455, 1
        %v1459 = vadd.f32 %v1449, %v1457
        %v1460 = vmul.f32 %v650, %v563
        %v1462 = vrot.slane %v1460, 1
        %v1464 = vadd.f32 %v1454, %v1462
        %v1465 = vmul.f32 %v654, %v555
        %v1467 = vrot.slane %v1465, 1
        %1468 = vrot.lane.b32.xlu0 %v1467, 127
        %v1469 = vpop.permute.xlu0 %1468
        %v1471 = vadd.f32 %v1459, %v1469
        %v1472 = vmul.f32 %v662, %v555
        %v1474 = vrot.slane %v1472, 1
        %1475 = vrot.lane.b32.xlu0 %v1474, 127
        %v1476 = vpop.permute.xlu0 %1475
        %v1478 = vadd.f32 %v1464, %v1476
        %v1479 = vmul.f32 %v670, %v571
        %v1481 = vrot.slane %v1479, 1
        %v1483 = vadd.f32 %v1471, %v1481
        %v1484 = vmul.f32 %v677, %v571
        %v1486 = vrot.slane %v1484, 1
        %v1488 = vadd.f32 %v1478, %v1486
        %v1489 = vmul.f32 %v684, %v579
        %v1491 = vrot.slane %v1489, 1
        %v1493 = vadd.f32 %v1483, %v1491
        %v1494 = vmul.f32 %v691, %v579
        %v1496 = vrot.slane %v1494, 1
        %v1498 = vadd.f32 %v1488, %v1496
        %v1499 = vmul.f32 %v698, %v571
        %v1501 = vrot.slane %v1499, 1
        %1502 = vrot.lane.b32.xlu0 %v1501, 127
        %v1503 = vpop.permute.xlu0 %1502
        %v1505 = vadd.f32 %v1493, %v1503
        %v1506 = vmul.f32 %v707, %v571
        %v1508 = vrot.slane %v1506, 1
        %1509 = vrot.lane.b32.xlu0 %v1508, 127
        %v1510 = vpop.permute.xlu0 %1509
        %v1512 = vadd.f32 %v1498, %v1510
        %v1513 = vmul.f32 %v716, %v575
        %v1514 = vadd.f32 %v1505, %v1513
        %v1515 = vmul.f32 %v720, %v575
        %v1516 = vadd.f32 %v1512, %v1515
        %v1517 = vmul.f32 %v724, %v583
        %v1518 = vadd.f32 %v1514, %v1517
        %v1519 = vmul.f32 %v728, %v583
        %v1520 = vadd.f32 %v1516, %v1519
        %v1521 = vmul.f32 %v732, %v575
        %1523 = vrot.lane.b32.xlu0 %v1521, 127
        %v1524 = vpop.permute.xlu0 %1523
        %v1526 = vadd.f32 %v1518, %v1524
        %v1527 = vmul.f32 %v740, %v575
        %1529 = vrot.lane.b32.xlu0 %v1527, 127
        %v1530 = vpop.permute.xlu0 %1529
        %v1532 = vadd.f32 %v1520, %v1530
        %v1533 = vmul.f32 %v748, %v559
        %v1535 = vrot.slane %v1533, 1
        %v1537 = vadd.f32 %v1526, %v1535
        %v1538 = vmul.f32 %v752, %v559
        %v1540 = vrot.slane %v1538, 1
        %v1542 = vadd.f32 %v1532, %v1540
        %v1543 = vmul.f32 %v756, %v567
        %v1545 = vrot.slane %v1543, 1
        %v1547 = vadd.f32 %v1537, %v1545
        %v1548 = vmul.f32 %v760, %v567
        %v1550 = vrot.slane %v1548, 1
        %v1552 = vadd.f32 %v1542, %v1550
        %v1553 = vmul.f32 %v764, %v559
        %v1555 = vrot.slane %v1553, 1
        %1556 = vrot.lane.b32.xlu0 %v1555, 127
        %v1557 = vpop.permute.xlu0 %1556
        %v1559 = vadd.f32 %v1547, %v1557
        %v1560 = vmul.f32 %v772, %v559
        %v1562 = vrot.slane %v1560, 1
        %1563 = vrot.lane.b32.xlu0 %v1562, 127
        %v1564 = vpop.permute.xlu0 %1563
        %v1566 = vadd.f32 %v1552, %v1564
        %v1567 = vmul.f32 %v780, %v575
        %v1569 = vrot.slane %v1567, 1
        %v1571 = vadd.f32 %v1559, %v1569
        %v1572 = vmul.f32 %v787, %v575
        %v1574 = vrot.slane %v1572, 1
        %v1576 = vadd.f32 %v1566, %v1574
        %v1577 = vmul.f32 %v794, %v583
        %v1579 = vrot.slane %v1577, 1
        %v1581 = vadd.f32 %v1571, %v1579
        %v1582 = vmul.f32 %v801, %v583
        %v1584 = vrot.slane %v1582, 1
        %v1586 = vadd.f32 %v1576, %v1584
        %v1587 = vmul.f32 %v808, %v575
        %v1589 = vrot.slane %v1587, 1
        %1590 = vrot.lane.b32.xlu0 %v1589, 127
        %v1591 = vpop.permute.xlu0 %1590
        %v1593 = vadd.f32 %v1581, %v1591
        %v1594 = vmul.f32 %v817, %v575
        %v1596 = vrot.slane %v1594, 1
        %1597 = vrot.lane.b32.xlu0 %v1596, 127
        %v1598 = vpop.permute.xlu0 %1597
        %v1600 = vadd.f32 %v1586, %v1598
        %v1601 = vmul.f32 %v826, %v592
        %v1602 = vadd.f32 %v1593, %v1601
        %v1603 = vmul.f32 %v830, %v592
        %v1604 = vadd.f32 %v1600, %v1603
        %v1605 = vmul.f32 %v834, %v596
        %v1606 = vadd.f32 %v1602, %v1605
        %v1607 = vmul.f32 %v838, %v596
        %v1608 = vadd.f32 %v1604, %v1607
        %v1609 = vmul.f32 %v842, %v592
        %1611 = vrot.lane.b32.xlu0 %v1609, 127
        %v1612 = vpop.permute.xlu0 %1611
        %v1614 = vadd.f32 %v1606, %v1612
        %v1615 = vmul.f32 %v850, %v592
        %1617 = vrot.lane.b32.xlu0 %v1615, 127
        %v1618 = vpop.permute.xlu0 %1617
        %v1620 = vadd.f32 %v1608, %v1618
        %v1621 = vmul.f32 %v858, %v584
        %v1623 = vrot.slane %v1621, 1
        %v1625 = vadd.f32 %v1614, %v1623
        %v1626 = vmul.f32 %v862, %v584
        %v1628 = vrot.slane %v1626, 1
        %v1630 = vadd.f32 %v1620, %v1628
        %v1631 = vmul.f32 %v866, %v588
        %v1633 = vrot.slane %v1631, 1
        %v1635 = vadd.f32 %v1625, %v1633
        %v1636 = vmul.f32 %v870, %v588
        %v1638 = vrot.slane %v1636, 1
        %v1640 = vadd.f32 %v1630, %v1638
        %v1641 = vmul.f32 %v874, %v584
        %v1643 = vrot.slane %v1641, 1
        %1644 = vrot.lane.b32.xlu0 %v1643, 127
        %v1645 = vpop.permute.xlu0 %1644
        %v1647 = vadd.f32 %v1635, %v1645
        %v1648 = vmul.f32 %v882, %v584
        %v1650 = vrot.slane %v1648, 1
        %1651 = vrot.lane.b32.xlu0 %v1650, 127
        %v1652 = vpop.permute.xlu0 %1651
        %v1654 = vadd.f32 %v1640, %v1652
        %v1655 = vmul.f32 %v890, %v592
        %v1657 = vrot.slane %v1655, 1
        %v1659 = vadd.f32 %v1647, %v1657
        %v1660 = vmul.f32 %v897, %v592
        %v1662 = vrot.slane %v1660, 1
        %v1664 = vadd.f32 %v1654, %v1662
        %v1665 = vmul.f32 %v904, %v596
        %v1667 = vrot.slane %v1665, 1
        %v1669 = vadd.f32 %v1659, %v1667
        %v1670 = vmul.f32 %v911, %v596
        %v1672 = vrot.slane %v1670, 1
        %v1674 = vadd.f32 %v1664, %v1672
        %v1675 = vmul.f32 %v918, %v592
        %v1677 = vrot.slane %v1675, 1
        %1678 = vrot.lane.b32.xlu0 %v1677, 127
        %v1679 = vpop.permute.xlu0 %1678
        %v1681 = vadd.f32 %v1669, %v1679
        %v1682 = vmul.f32 %v927, %v592
        %v1684 = vrot.slane %v1682, 1
        %1685 = vrot.lane.b32.xlu0 %v1684, 127
        %v1686 = vpop.permute.xlu0 %1685
        %v1688 = vadd.f32 %v1674, %v1686
        %v1689 = vmul.f32 %v936, %v594
        %v1690 = vadd.f32 %v1681, %v1689
        %v1691 = vmul.f32 %v940, %v594
        %v1692 = vadd.f32 %v1688, %v1691
        %v1693 = vmul.f32 %v944, %v598
        %v1694 = vadd.f32 %v1690, %v1693
        %v1695 = vmul.f32 %v948, %v598
        %v1696 = vadd.f32 %v1692, %v1695
        %v1697 = vmul.f32 %v952, %v594
        %1699 = vrot.lane.b32.xlu0 %v1697, 127
        %v1700 = vpop.permute.xlu0 %1699
        %v1702 = vadd.f32 %v1694, %v1700
        %v1703 = vmul.f32 %v960, %v594
        %1705 = vrot.lane.b32.xlu0 %v1703, 127
        %v1706 = vpop.permute.xlu0 %1705
        %v1708 = vadd.f32 %v1696, %v1706
        %v1709 = vmul.f32 %v968, %v586
        %v1711 = vrot.slane %v1709, 1
        %v1713 = vadd.f32 %v1702, %v1711
        %v1714 = vmul.f32 %v972, %v586
        %v1716 = vrot.slane %v1714, 1
        %v1718 = vadd.f32 %v1708, %v1716
        %v1719 = vmul.f32 %v976, %v590
        %v1721 = vrot.slane %v1719, 1
        %v1723 = vadd.f32 %v1713, %v1721
        %v1724 = vmul.f32 %v980, %v590
        %v1726 = vrot.slane %v1724, 1
        %v1728 = vadd.f32 %v1718, %v1726
        %v1729 = vmul.f32 %v984, %v586
        %v1731 = vrot.slane %v1729, 1
        %1732 = vrot.lane.b32.xlu0 %v1731, 127
        %v1733 = vpop.permute.xlu0 %1732
        %v1735 = vadd.f32 %v1723, %v1733
        %v1736 = vmul.f32 %v992, %v586
        %v1738 = vrot.slane %v1736, 1
        %1739 = vrot.lane.b32.xlu0 %v1738, 127
        %v1740 = vpop.permute.xlu0 %1739
        %v1742 = vadd.f32 %v1728, %v1740
        %v1743 = vmul.f32 %v1000, %v594
        %v1745 = vrot.slane %v1743, 1
        %v1747 = vadd.f32 %v1735, %v1745
        %v1748 = vmul.f32 %v1007, %v594
        %v1750 = vrot.slane %v1748, 1
        %v1752 = vadd.f32 %v1742, %v1750
        %v1753 = vmul.f32 %v1014, %v598
        %v1755 = vrot.slane %v1753, 1
        %v1757 = vadd.f32 %v1747, %v1755
        %v1758 = vmul.f32 %v1021, %v598
        %v1760 = vrot.slane %v1758, 1
        %v1762 = vadd.f32 %v1752, %v1760
        %v1763 = vmul.f32 %v1028, %v594
        %v1765 = vrot.slane %v1763, 1
        %1766 = vrot.lane.b32.xlu0 %v1765, 127
        %v1767 = vpop.permute.xlu0 %1766
        %v1769 = vadd.f32 %v1757, %v1767
        %v1770 = vmul.f32 %v1037, %v594
        %v1772 = vrot.slane %v1770, 1
        %1773 = vrot.lane.b32.xlu0 %v1772, 127
        %v1774 = vpop.permute.xlu0 %1773
        %v1776 = vadd.f32 %v1762, %v1774
        %v1777 = vmax.f32 %v1769, 0.0
        %v1778 = vmax.f32 %v1776, 0.0
        %v1779 = vmul.f32 %v606, %v579
        %v1780 = vadd.f32 %v601, %v1779
        %v1781 = vmul.f32 %v610, %v579
        %v1782 = vadd.f32 %v604, %v1781
        %v1783 = vmul.f32 %v614, %v571
        %1785 = vrot.lane.b32.xlu0 %v1783, 127
        %v1786 = vpop.permute.xlu0 %1785
        %v1788 = vadd.f32 %v1780, %v1786
        %v1789 = vmul.f32 %v618, %v571
        %1791 = vrot.lane.b32.xlu0 %v1789, 127
        %v1792 = vpop.permute.xlu0 %1791
        %v1794 = vadd.f32 %v1782, %v1792
        %v1795 = vmul.f32 %v622, %v579
        %1797 = vrot.lane.b32.xlu0 %v1795, 127
        %v1798 = vpop.permute.xlu0 %1797
        %v1800 = vadd.f32 %v1788, %v1798
        %v1801 = vmul.f32 %v630, %v579
        %1803 = vrot.lane.b32.xlu0 %v1801, 127
        %v1804 = vpop.permute.xlu0 %1803
        %v1806 = vadd.f32 %v1794, %v1804
        %v1807 = vmul.f32 %v638, %v563
        %v1809 = vrot.slane %v1807, 1
        %v1811 = vadd.f32 %v1800, %v1809
        %v1812 = vmul.f32 %v642, %v563
        %v1814 = vrot.slane %v1812, 1
        %v1816 = vadd.f32 %v1806, %v1814
        %v1817 = vmul.f32 %v646, %v555
        %v1819 = vrot.slane %v1817, 1
        %1820 = vrot.lane.b32.xlu0 %v1819, 127
        %v1821 = vpop.permute.xlu0 %1820
        %v1823 = vadd.f32 %v1811, %v1821
        %v1824 = vmul.f32 %v650, %v555
        %v1826 = vrot.slane %v1824, 1
        %1827 = vrot.lane.b32.xlu0 %v1826, 127
        %v1828 = vpop.permute.xlu0 %1827
        %v1830 = vadd.f32 %v1816, %v1828
        %v1831 = vmul.f32 %v654, %v563
        %v1833 = vrot.slane %v1831, 1
        %1834 = vrot.lane.b32.xlu0 %v1833, 127
        %v1835 = vpop.permute.xlu0 %1834
        %v1837 = vadd.f32 %v1823, %v1835
        %v1838 = vmul.f32 %v662, %v563
        %v1840 = vrot.slane %v1838, 1
        %1841 = vrot.lane.b32.xlu0 %v1840, 127
        %v1842 = vpop.permute.xlu0 %1841
        %v1844 = vadd.f32 %v1830, %v1842
        %v1845 = vmul.f32 %v670, %v579
        %v1847 = vrot.slane %v1845, 1
        %v1849 = vadd.f32 %v1837, %v1847
        %v1850 = vmul.f32 %v677, %v579
        %v1852 = vrot.slane %v1850, 1
        %v1854 = vadd.f32 %v1844, %v1852
        %v1855 = vmul.f32 %v684, %v571
        %v1857 = vrot.slane %v1855, 1
        %1858 = vrot.lane.b32.xlu0 %v1857, 127
        %v1859 = vpop.permute.xlu0 %1858
        %v1861 = vadd.f32 %v1849, %v1859
        %v1862 = vmul.f32 %v691, %v571
        %v1864 = vrot.slane %v1862, 1
        %1865 = vrot.lane.b32.xlu0 %v1864, 127
        %v1866 = vpop.permute.xlu0 %1865
        %v1868 = vadd.f32 %v1854, %v1866
        %v1869 = vmul.f32 %v698, %v579
        %v1871 = vrot.slane %v1869, 1
        %1872 = vrot.lane.b32.xlu0 %v1871, 127
        %v1873 = vpop.permute.xlu0 %1872
        %v1875 = vadd.f32 %v1861, %v1873
        %v1876 = vmul.f32 %v707, %v579
        %v1878 = vrot.slane %v1876, 1
        %1879 = vrot.lane.b32.xlu0 %v1878, 127
        %v1880 = vpop.permute.xlu0 %1879
        %v1882 = vadd.f32 %v1868, %v1880
        %v1883 = vmul.f32 %v716, %v583
        %v1884 = vadd.f32 %v1875, %v1883
        %v1885 = vmul.f32 %v720, %v583
        %v1886 = vadd.f32 %v1882, %v1885
        %v1887 = vmul.f32 %v724, %v575
        %1889 = vrot.lane.b32.xlu0 %v1887, 127
        %v1890 = vpop.permute.xlu0 %1889
        %v1892 = vadd.f32 %v1884, %v1890
        %v1893 = vmul.f32 %v728, %v575
        %1895 = vrot.lane.b32.xlu0 %v1893, 127
        %v1896 = vpop.permute.xlu0 %1895
        %v1898 = vadd.f32 %v1886, %v1896
        %v1899 = vmul.f32 %v732, %v583
        %1901 = vrot.lane.b32.xlu0 %v1899, 127
        %v1902 = vpop.permute.xlu0 %1901
        %v1904 = vadd.f32 %v1892, %v1902
        %v1905 = vmul.f32 %v740, %v583
        %1907 = vrot.lane.b32.xlu0 %v1905, 127
        %v1908 = vpop.permute.xlu0 %1907
        %v1910 = vadd.f32 %v1898, %v1908
        %v1911 = vmul.f32 %v748, %v567
        %v1913 = vrot.slane %v1911, 1
        %v1915 = vadd.f32 %v1904, %v1913
        %v1916 = vmul.f32 %v752, %v567
        %v1918 = vrot.slane %v1916, 1
        %v1920 = vadd.f32 %v1910, %v1918
        %v1921 = vmul.f32 %v756, %v559
        %v1923 = vrot.slane %v1921, 1
        %1924 = vrot.lane.b32.xlu0 %v1923, 127
        %v1925 = vpop.permute.xlu0 %1924
        %v1927 = vadd.f32 %v1915, %v1925
        %v1928 = vmul.f32 %v760, %v559
        %v1930 = vrot.slane %v1928, 1
        %1931 = vrot.lane.b32.xlu0 %v1930, 127
        %v1932 = vpop.permute.xlu0 %1931
        %v1934 = vadd.f32 %v1920, %v1932
        %v1935 = vmul.f32 %v764, %v567
        %v1937 = vrot.slane %v1935, 1
        %1938 = vrot.lane.b32.xlu0 %v1937, 127
        %v1939 = vpop.permute.xlu0 %1938
        %v1941 = vadd.f32 %v1927, %v1939
        %v1942 = vmul.f32 %v772, %v567
        %v1944 = vrot.slane %v1942, 1
        %1945 = vrot.lane.b32.xlu0 %v1944, 127
        %v1946 = vpop.permute.xlu0 %1945
        %v1948 = vadd.f32 %v1934, %v1946
        %v1949 = vmul.f32 %v780, %v583
        %v1951 = vrot.slane %v1949, 1
        %v1953 = vadd.f32 %v1941, %v1951
        %v1954 = vmul.f32 %v787, %v583
        %v1956 = vrot.slane %v1954, 1
        %v1958 = vadd.f32 %v1948, %v1956
        %v1959 = vmul.f32 %v794, %v575
        %v1961 = vrot.slane %v1959, 1
        %1962 = vrot.lane.b32.xlu0 %v1961, 127
        %v1963 = vpop.permute.xlu0 %1962
        %v1965 = vadd.f32 %v1953, %v1963
        %v1966 = vmul.f32 %v801, %v575
        %v1968 = vrot.slane %v1966, 1
        %1969 = vrot.lane.b32.xlu0 %v1968, 127
        %v1970 = vpop.permute.xlu0 %1969
        %v1972 = vadd.f32 %v1958, %v1970
        %v1973 = vmul.f32 %v808, %v583
        %v1975 = vrot.slane %v1973, 1
        %1976 = vrot.lane.b32.xlu0 %v1975, 127
        %v1977 = vpop.permute.xlu0 %1976
        %v1979 = vadd.f32 %v1965, %v1977
        %v1980 = vmul.f32 %v817, %v583
        %v1982 = vrot.slane %v1980, 1
        %1983 = vrot.lane.b32.xlu0 %v1982, 127
        %v1984 = vpop.permute.xlu0 %1983
        %v1986 = vadd.f32 %v1972, %v1984
        %v1987 = vmul.f32 %v826, %v596
        %v1988 = vadd.f32 %v1979, %v1987
        %v1989 = vmul.f32 %v830, %v596
        %v1990 = vadd.f32 %v1986, %v1989
        %v1991 = vmul.f32 %v834, %v592
        %1993 = vrot.lane.b32.xlu0 %v1991, 127
        %v1994 = vpop.permute.xlu0 %1993
        %v1996 = vadd.f32 %v1988, %v1994
        %v1997 = vmul.f32 %v838, %v592
        %1999 = vrot.lane.b32.xlu0 %v1997, 127
        %v2000 = vpop.permute.xlu0 %1999
        %v2002 = vadd.f32 %v1990, %v2000
        %v2003 = vmul.f32 %v842, %v596
        %2005 = vrot.lane.b32.xlu0 %v2003, 127
        %v2006 = vpop.permute.xlu0 %2005
        %v2008 = vadd.f32 %v1996, %v2006
        %v2009 = vmul.f32 %v850, %v596
        %2011 = vrot.lane.b32.xlu0 %v2009, 127
        %v2012 = vpop.permute.xlu0 %2011
        %v2014 = vadd.f32 %v2002, %v2012
        %v2015 = vmul.f32 %v858, %v588
        %v2017 = vrot.slane %v2015, 1
        %v2019 = vadd.f32 %v2008, %v2017
        %v2020 = vmul.f32 %v862, %v588
        %v2022 = vrot.slane %v2020, 1
        %v2024 = vadd.f32 %v2014, %v2022
        %v2025 = vmul.f32 %v866, %v584
        %v2027 = vrot.slane %v2025, 1
        %2028 = vrot.lane.b32.xlu0 %v2027, 127
        %v2029 = vpop.permute.xlu0 %2028
        %v2031 = vadd.f32 %v2019, %v2029
        %v2032 = vmul.f32 %v870, %v584
        %v2034 = vrot.slane %v2032, 1
        %2035 = vrot.lane.b32.xlu0 %v2034, 127
        %v2036 = vpop.permute.xlu0 %2035
        %v2038 = vadd.f32 %v2024, %v2036
        %v2039 = vmul.f32 %v874, %v588
        %v2041 = vrot.slane %v2039, 1
        %2042 = vrot.lane.b32.xlu0 %v2041, 127
        %v2043 = vpop.permute.xlu0 %2042
        %v2045 = vadd.f32 %v2031, %v2043
        %v2046 = vmul.f32 %v882, %v588
        %v2048 = vrot.slane %v2046, 1
        %2049 = vrot.lane.b32.xlu0 %v2048, 127
        %v2050 = vpop.permute.xlu0 %2049
        %v2052 = vadd.f32 %v2038, %v2050
        %v2053 = vmul.f32 %v890, %v596
        %v2055 = vrot.slane %v2053, 1
        %v2057 = vadd.f32 %v2045, %v2055
        %v2058 = vmul.f32 %v897, %v596
        %v2060 = vrot.slane %v2058, 1
        %v2062 = vadd.f32 %v2052, %v2060
        %v2063 = vmul.f32 %v904, %v592
        %v2065 = vrot.slane %v2063, 1
        %2066 = vrot.lane.b32.xlu0 %v2065, 127
        %v2067 = vpop.permute.xlu0 %2066
        %v2069 = vadd.f32 %v2057, %v2067
        %v2070 = vmul.f32 %v911, %v592
        %v2072 = vrot.slane %v2070, 1
        %2073 = vrot.lane.b32.xlu0 %v2072, 127
        %v2074 = vpop.permute.xlu0 %2073
        %v2076 = vadd.f32 %v2062, %v2074
        %v2077 = vmul.f32 %v918, %v596
        %v2079 = vrot.slane %v2077, 1
        %2080 = vrot.lane.b32.xlu0 %v2079, 127
        %v2081 = vpop.permute.xlu0 %2080
        %v2083 = vadd.f32 %v2069, %v2081
        %v2084 = vmul.f32 %v927, %v596
        %v2086 = vrot.slane %v2084, 1
        %2087 = vrot.lane.b32.xlu0 %v2086, 127
        %v2088 = vpop.permute.xlu0 %2087
        %v2090 = vadd.f32 %v2076, %v2088
        %v2091 = vmul.f32 %v936, %v598
        %v2092 = vadd.f32 %v2083, %v2091
        %v2093 = vmul.f32 %v940, %v598
        %v2094 = vadd.f32 %v2090, %v2093
        %v2095 = vmul.f32 %v944, %v594
        %2097 = vrot.lane.b32.xlu0 %v2095, 127
        %v2098 = vpop.permute.xlu0 %2097
        %v2100 = vadd.f32 %v2092, %v2098
        %v2101 = vmul.f32 %v948, %v594
        %2103 = vrot.lane.b32.xlu0 %v2101, 127
        %v2104 = vpop.permute.xlu0 %2103
        %v2106 = vadd.f32 %v2094, %v2104
        %v2107 = vmul.f32 %v952, %v598
        %2109 = vrot.lane.b32.xlu0 %v2107, 127
        %v2110 = vpop.permute.xlu0 %2109
        %v2112 = vadd.f32 %v2100, %v2110
        %v2113 = vmul.f32 %v960, %v598
        %2115 = vrot.lane.b32.xlu0 %v2113, 127
        %v2116 = vpop.permute.xlu0 %2115
        %v2118 = vadd.f32 %v2106, %v2116
        %v2119 = vmul.f32 %v968, %v590
        %v2121 = vrot.slane %v2119, 1
        %v2123 = vadd.f32 %v2112, %v2121
        %v2124 = vmul.f32 %v972, %v590
        %v2126 = vrot.slane %v2124, 1
        %v2128 = vadd.f32 %v2118, %v2126
        %v2129 = vmul.f32 %v976, %v586
        %v2131 = vrot.slane %v2129, 1
        %2132 = vrot.lane.b32.xlu0 %v2131, 127
        %v2133 = vpop.permute.xlu0 %2132
        %v2135 = vadd.f32 %v2123, %v2133
        %v2136 = vmul.f32 %v980, %v586
        %v2138 = vrot.slane %v2136, 1
        %2139 = vrot.lane.b32.xlu0 %v2138, 127
        %v2140 = vpop.permute.xlu0 %2139
        %v2142 = vadd.f32 %v2128, %v2140
        %v2143 = vmul.f32 %v984, %v590
        %v2145 = vrot.slane %v2143, 1
        %2146 = vrot.lane.b32.xlu0 %v2145, 127
        %v2147 = vpop.permute.xlu0 %2146
        %v2149 = vadd.f32 %v2135, %v2147
        %v2150 = vmul.f32 %v992, %v590
        %v2152 = vrot.slane %v2150, 1
        %2153 = vrot.lane.b32.xlu0 %v2152, 127
        %v2154 = vpop.permute.xlu0 %2153
        %v2156 = vadd.f32 %v2142, %v2154
        %v2157 = vmul.f32 %v1000, %v598
        %v2159 = vrot.slane %v2157, 1
        %v2161 = vadd.f32 %v2149, %v2159
        %v2162 = vmul.f32 %v1007, %v598
        %v2164 = vrot.slane %v2162, 1
        %v2166 = vadd.f32 %v2156, %v2164
        %v2167 = vmul.f32 %v1014, %v594
        %v2169 = vrot.slane %v2167, 1
        %2170 = vrot.lane.b32.xlu0 %v2169, 127
        %v2171 = vpop.permute.xlu0 %2170
        %v2173 = vadd.f32 %v2161, %v2171
        %v2174 = vmul.f32 %v1021, %v594
        %v2176 = vrot.slane %v2174, 1
        %2177 = vrot.lane.b32.xlu0 %v2176, 127
        %v2178 = vpop.permute.xlu0 %2177
        %v2180 = vadd.f32 %v2166, %v2178
        %v2181 = vmul.f32 %v1028, %v598
        %v2183 = vrot.slane %v2181, 1
        %2184 = vrot.lane.b32.xlu0 %v2183, 127
        %v2185 = vpop.permute.xlu0 %2184
        %v2187 = vadd.f32 %v2173, %v2185
        %v2188 = vmul.f32 %v1037, %v598
        %v2190 = vrot.slane %v2188, 1
        %2191 = vrot.lane.b32.xlu0 %v2190, 127
        %v2192 = vpop.permute.xlu0 %2191
        %v2194 = vadd.f32 %v2180, %v2192
        %v2195 = vmax.f32 %v2187, 0.0
        %v2196 = vmax.f32 %v2194, 0.0
        %s2197 = sld [smem:[#allocation14]]
        %v2198 = vstv %s2197
        %v2199 = vadd.f32 %v2198, 0.0
        %s2200 = sld [smem:[#allocation14 + $0x1]]
        %v2201 = vstv %s2200
        %v2202 = vadd.f32 %v2201, 0.0
        %s2203 = sld [smem:[#allocation13]]
        %v2204 = vstv %s2203
        %v2205 = vmul.f32 %v2204, %v1045
        %v2206 = vadd.f32 %v2199, %v2205
        %s2207 = sld [smem:[#allocation13 + $0x12]]
        %v2208 = vstv %s2207
        %v2209 = vmul.f32 %v2208, %v1045
        %v2210 = vadd.f32 %v2202, %v2209
        %s2211 = sld [smem:[#allocation13 + $0x1]]
        %v2212 = vstv %s2211
        %v2213 = vmul.f32 %v2212, %v1423
        %v2214 = vadd.f32 %v2206, %v2213
        %s2215 = sld [smem:[#allocation13 + $0x13]]
        %v2216 = vstv %s2215
        %v2217 = vmul.f32 %v2216, %v1423
        %v2218 = vadd.f32 %v2210, %v2217
        %s2219 = sld [smem:[#allocation13 + $0x2]]
        %v2220 = vstv %s2219
        %v2221 = vmul.f32 %v2220, %v1045
        %2223 = vrot.lane.b32.xlu0 %v2221, 127
        %v2224 = vpop.permute.xlu0 %2223
        %v2226 = vadd.f32 %v2214, %v2224
        %s2227 = sld [smem:[#allocation13 + $0x14]]
        %v2228 = vstv %s2227
        %v2229 = vmul.f32 %v2228, %v1045
        %2231 = vrot.lane.b32.xlu0 %v2229, 127
        %v2232 = vpop.permute.xlu0 %2231
        %v2234 = vadd.f32 %v2218, %v2232
        %s2235 = sld [smem:[#allocation13 + $0x3]]
        %v2236 = vstv %s2235
        %v2237 = vmul.f32 %v2236, %v1777
        %v2238 = vadd.f32 %v2226, %v2237
        %s2239 = sld [smem:[#allocation13 + $0x15]]
        %v2240 = vstv %s2239
        %v2241 = vmul.f32 %v2240, %v1777
        %v2242 = vadd.f32 %v2234, %v2241
        %s2243 = sld [smem:[#allocation13 + $0x4]]
        %v2244 = vstv %s2243
        %v2245 = vmul.f32 %v2244, %v2195
        %v2246 = vadd.f32 %v2238, %v2245
        %s2247 = sld [smem:[#allocation13 + $0x16]]
        %v2248 = vstv %s2247
        %v2249 = vmul.f32 %v2248, %v2195
        %v2250 = vadd.f32 %v2242, %v2249
        %s2251 = sld [smem:[#allocation13 + $0x5]]
        %v2252 = vstv %s2251
        %v2253 = vmul.f32 %v2252, %v1777
        %2255 = vrot.lane.b32.xlu0 %v2253, 127
        %v2256 = vpop.permute.xlu0 %2255
        %v2258 = vadd.f32 %v2246, %v2256
        %s2259 = sld [smem:[#allocation13 + $0x17]]
        %v2260 = vstv %s2259
        %v2261 = vmul.f32 %v2260, %v1777
        %2263 = vrot.lane.b32.xlu0 %v2261, 127
        %v2264 = vpop.permute.xlu0 %2263
        %v2266 = vadd.f32 %v2250, %v2264
        %s2267 = sld [smem:[#allocation13 + $0x6]]
        %v2268 = vstv %s2267
        %v2269 = vmul.f32 %v2268, %v1045
        %v2271 = vrot.slane %v2269, 1
        %v2273 = vadd.f32 %v2258, %v2271
        %s2274 = sld [smem:[#allocation13 + $0x18]]
        %v2275 = vstv %s2274
        %v2276 = vmul.f32 %v2275, %v1045
        %v2278 = vrot.slane %v2276, 1
        %v2280 = vadd.f32 %v2266, %v2278
        %s2281 = sld [smem:[#allocation13 + $0x7]]
        %v2282 = vstv %s2281
        %v2283 = vmul.f32 %v2282, %v1423
        %v2285 = vrot.slane %v2283, 1
        %v2287 = vadd.f32 %v2273, %v2285
        %s2288 = sld [smem:[#allocation13 + $0x19]]
        %v2289 = vstv %s2288
        %v2290 = vmul.f32 %v2289, %v1423
        %v2292 = vrot.slane %v2290, 1
        %v2294 = vadd.f32 %v2280, %v2292
        %s2295 = sld [smem:[#allocation13 + $0x8]]
        %v2296 = vstv %s2295
        %v2297 = vmul.f32 %v2296, %v1045
        %v2299 = vrot.slane %v2297, 1
        %2300 = vrot.lane.b32.xlu0 %v2299, 127
        %v2301 = vpop.permute.xlu0 %2300
        %v2303 = vadd.f32 %v2287, %v2301
        %s2304 = sld [smem:[#allocation13 + $0x1a]]
        %v2305 = vstv %s2304
        %v2306 = vmul.f32 %v2305, %v1045
        %v2308 = vrot.slane %v2306, 1
        %2309 = vrot.lane.b32.xlu0 %v2308, 127
        %v2310 = vpop.permute.xlu0 %2309
        %v2312 = vadd.f32 %v2294, %v2310
        %s2313 = sld [smem:[#allocation13 + $0x9]]
        %v2314 = vstv %s2313
        %v2315 = vmul.f32 %v2314, %v1046
        %v2316 = vadd.f32 %v2303, %v2315
        %s2317 = sld [smem:[#allocation13 + $0x1b]]
        %v2318 = vstv %s2317
        %v2319 = vmul.f32 %v2318, %v1046
        %v2320 = vadd.f32 %v2312, %v2319
        %s2321 = sld [smem:[#allocation13 + $0xa]]
        %v2322 = vstv %s2321
        %v2323 = vmul.f32 %v2322, %v1424
        %v2324 = vadd.f32 %v2316, %v2323
        %s2325 = sld [smem:[#allocation13 + $0x1c]]
        %v2326 = vstv %s2325
        %v2327 = vmul.f32 %v2326, %v1424
        %v2328 = vadd.f32 %v2320, %v2327
        %s2329 = sld [smem:[#allocation13 + $0xb]]
        %v2330 = vstv %s2329
        %v2331 = vmul.f32 %v2330, %v1046
        %2333 = vrot.lane.b32.xlu0 %v2331, 127
        %v2334 = vpop.permute.xlu0 %2333
        %v2336 = vadd.f32 %v2324, %v2334
        %s2337 = sld [smem:[#allocation13 + $0x1d]]
        %v2338 = vstv %s2337
        %v2339 = vmul.f32 %v2338, %v1046
        %2341 = vrot.lane.b32.xlu0 %v2339, 127
        %v2342 = vpop.permute.xlu0 %2341
        %v2344 = vadd.f32 %v2328, %v2342
        %s2345 = sld [smem:[#allocation13 + $0xc]]
        %v2346 = vstv %s2345
        %v2347 = vmul.f32 %v2346, %v1778
        %v2348 = vadd.f32 %v2336, %v2347
        %s2349 = sld [smem:[#allocation13 + $0x1e]]
        %v2350 = vstv %s2349
        %v2351 = vmul.f32 %v2350, %v1778
        %v2352 = vadd.f32 %v2344, %v2351
        %s2353 = sld [smem:[#allocation13 + $0xd]]
        %v2354 = vstv %s2353
        %v2355 = vmul.f32 %v2354, %v2196
        %v2356 = vadd.f32 %v2348, %v2355
        %s2357 = sld [smem:[#allocation13 + $0x1f]]
        %v2358 = vstv %s2357
        %v2359 = vmul.f32 %v2358, %v2196
        %v2360 = vadd.f32 %v2352, %v2359
        %s2361 = sld [smem:[#allocation13 + $0xe]]
        %v2362 = vstv %s2361
        %v2363 = vmul.f32 %v2362, %v1778
        %2365 = vrot.lane.b32.xlu0 %v2363, 127
        %v2366 = vpop.permute.xlu0 %2365
        %v2368 = vadd.f32 %v2356, %v2366
        %s2369 = sld [smem:[#allocation13 + $0x20]]
        %v2370 = vstv %s2369
        %v2371 = vmul.f32 %v2370, %v1778
        %2373 = vrot.lane.b32.xlu0 %v2371, 127
        %v2374 = vpop.permute.xlu0 %2373
        %v2376 = vadd.f32 %v2360, %v2374
        %s2377 = sld [smem:[#allocation13 + $0xf]]
        %v2378 = vstv %s2377
        %v2379 = vmul.f32 %v2378, %v1046
        %v2381 = vrot.slane %v2379, 1
        %v2383 = vadd.f32 %v2368, %v2381
        %s2384 = sld [smem:[#allocation13 + $0x21]]
        %v2385 = vstv %s2384
        %v2386 = vmul.f32 %v2385, %v1046
        %v2388 = vrot.slane %v2386, 1
        %v2390 = vadd.f32 %v2376, %v2388
        %s2391 = sld [smem:[#allocation13 + $0x10]]
        %v2392 = vstv %s2391
        %v2393 = vmul.f32 %v2392, %v1424
        %v2395 = vrot.slane %v2393, 1
        %v2397 = vadd.f32 %v2383, %v2395
        %s2398 = sld [smem:[#allocation13 + $0x22]]
        %v2399 = vstv %s2398
        %v2400 = vmul.f32 %v2399, %v1424
        %v2402 = vrot.slane %v2400, 1
        %v2404 = vadd.f32 %v2390, %v2402
        %s2405 = sld [smem:[#allocation13 + $0x11]]
        %v2406 = vstv %s2405
        %v2407 = vmul.f32 %v2406, %v1046
        %v2409 = vrot.slane %v2407, 1
        %2410 = vrot.lane.b32.xlu0 %v2409, 127
        %v2411 = vpop.permute.xlu0 %2410
        %v2413 = vadd.f32 %v2397, %v2411
        %s2414 = sld [smem:[#allocation13 + $0x23]]
        %v2415 = vstv %s2414
        %v2416 = vmul.f32 %v2415, %v1046
        %v2418 = vrot.slane %v2416, 1
        %2419 = vrot.lane.b32.xlu0 %v2418, 127
        %v2420 = vpop.permute.xlu0 %2419
        %v2422 = vadd.f32 %v2404, %v2420
        %v2423 = vmax.f32 %v2413, 0.0
        %vm2424 = vcmask 46080
        %2425 = vst.msk [vmem:[%s442] sm:$0x3f] %vm2424, %v2423
        %v2426 = vmax.f32 %v2422, 0.0
        %s2427 = scalar_lea.vmem %s442, 8
        %2428 = vst.msk [vmem:[%s2427] sm:$0x3f] %vm2424, %v2426
        %s2429 = sld [smem:[#allocation14]]
        %v2430 = vstv %s2429
        %v2431 = vadd.f32 %v2430, 0.0
        %s2432 = sld [smem:[#allocation14 + $0x1]]
        %v2433 = vstv %s2432
        %v2434 = vadd.f32 %v2433, 0.0
        %s2435 = sld [smem:[#allocation13]]
        %v2436 = vstv %s2435
        %v2437 = vmul.f32 %v2436, %v1423
        %v2438 = vadd.f32 %v2431, %v2437
        %s2439 = sld [smem:[#allocation13 + $0x12]]
        %v2440 = vstv %s2439
        %v2441 = vmul.f32 %v2440, %v1423
        %v2442 = vadd.f32 %v2434, %v2441
        %s2443 = sld [smem:[#allocation13 + $0x1]]
        %v2444 = vstv %s2443
        %v2445 = vmul.f32 %v2444, %v1045
        %2447 = vrot.lane.b32.xlu0 %v2445, 127
        %v2448 = vpop.permute.xlu0 %2447
        %v2450 = vadd.f32 %v2438, %v2448
        %s2451 = sld [smem:[#allocation13 + $0x13]]
        %v2452 = vstv %s2451
        %v2453 = vmul.f32 %v2452, %v1045
        %2455 = vrot.lane.b32.xlu0 %v2453, 127
        %v2456 = vpop.permute.xlu0 %2455
        %v2458 = vadd.f32 %v2442, %v2456
        %s2459 = sld [smem:[#allocation13 + $0x2]]
        %v2460 = vstv %s2459
        %v2461 = vmul.f32 %v2460, %v1423
        %2463 = vrot.lane.b32.xlu0 %v2461, 127
        %v2464 = vpop.permute.xlu0 %2463
        %v2466 = vadd.f32 %v2450, %v2464
        %s2467 = sld [smem:[#allocation13 + $0x14]]
        %v2468 = vstv %s2467
        %v2469 = vmul.f32 %v2468, %v1423
        %2471 = vrot.lane.b32.xlu0 %v2469, 127
        %v2472 = vpop.permute.xlu0 %2471
        %v2474 = vadd.f32 %v2458, %v2472
        %s2475 = sld [smem:[#allocation13 + $0x3]]
        %v2476 = vstv %s2475
        %v2477 = vmul.f32 %v2476, %v2195
        %v2478 = vadd.f32 %v2466, %v2477
        %s2479 = sld [smem:[#allocation13 + $0x15]]
        %v2480 = vstv %s2479
        %v2481 = vmul.f32 %v2480, %v2195
        %v2482 = vadd.f32 %v2474, %v2481
        %s2483 = sld [smem:[#allocation13 + $0x4]]
        %v2484 = vstv %s2483
        %v2485 = vmul.f32 %v2484, %v1777
        %2487 = vrot.lane.b32.xlu0 %v2485, 127
        %v2488 = vpop.permute.xlu0 %2487
        %v2490 = vadd.f32 %v2478, %v2488
        %s2491 = sld [smem:[#allocation13 + $0x16]]
        %v2492 = vstv %s2491
        %v2493 = vmul.f32 %v2492, %v1777
        %2495 = vrot.lane.b32.xlu0 %v2493, 127
        %v2496 = vpop.permute.xlu0 %2495
        %v2498 = vadd.f32 %v2482, %v2496
        %s2499 = sld [smem:[#allocation13 + $0x5]]
        %v2500 = vstv %s2499
        %v2501 = vmul.f32 %v2500, %v2195
        %2503 = vrot.lane.b32.xlu0 %v2501, 127
        %v2504 = vpop.permute.xlu0 %2503
        %v2506 = vadd.f32 %v2490, %v2504
        %s2507 = sld [smem:[#allocation13 + $0x17]]
        %v2508 = vstv %s2507
        %v2509 = vmul.f32 %v2508, %v2195
        %2511 = vrot.lane.b32.xlu0 %v2509, 127
        %v2512 = vpop.permute.xlu0 %2511
        %v2514 = vadd.f32 %v2498, %v2512
        %s2515 = sld [smem:[#allocation13 + $0x6]]
        %v2516 = vstv %s2515
        %v2517 = vmul.f32 %v2516, %v1423
        %v2519 = vrot.slane %v2517, 1
        %v2521 = vadd.f32 %v2506, %v2519
        %s2522 = sld [smem:[#allocation13 + $0x18]]
        %v2523 = vstv %s2522
        %v2524 = vmul.f32 %v2523, %v1423
        %v2526 = vrot.slane %v2524, 1
        %v2528 = vadd.f32 %v2514, %v2526
        %s2529 = sld [smem:[#allocation13 + $0x7]]
        %v2530 = vstv %s2529
        %v2531 = vmul.f32 %v2530, %v1045
        %v2533 = vrot.slane %v2531, 1
        %2534 = vrot.lane.b32.xlu0 %v2533, 127
        %v2535 = vpop.permute.xlu0 %2534
        %v2537 = vadd.f32 %v2521, %v2535
        %s2538 = sld [smem:[#allocation13 + $0x19]]
        %v2539 = vstv %s2538
        %v2540 = vmul.f32 %v2539, %v1045
        %v2542 = vrot.slane %v2540, 1
        %2543 = vrot.lane.b32.xlu0 %v2542, 127
        %v2544 = vpop.permute.xlu0 %2543
        %v2546 = vadd.f32 %v2528, %v2544
        %s2547 = sld [smem:[#allocation13 + $0x8]]
        %v2548 = vstv %s2547
        %v2549 = vmul.f32 %v2548, %v1423
        %v2551 = vrot.slane %v2549, 1
        %2552 = vrot.lane.b32.xlu0 %v2551, 127
        %v2553 = vpop.permute.xlu0 %2552
        %v2555 = vadd.f32 %v2537, %v2553
        %s2556 = sld [smem:[#allocation13 + $0x1a]]
        %v2557 = vstv %s2556
        %v2558 = vmul.f32 %v2557, %v1423
        %v2560 = vrot.slane %v2558, 1
        %2561 = vrot.lane.b32.xlu0 %v2560, 127
        %v2562 = vpop.permute.xlu0 %2561
        %v2564 = vadd.f32 %v2546, %v2562
        %s2565 = sld [smem:[#allocation13 + $0x9]]
        %v2566 = vstv %s2565
        %v2567 = vmul.f32 %v2566, %v1424
        %v2568 = vadd.f32 %v2555, %v2567
        %s2569 = sld [smem:[#allocation13 + $0x1b]]
        %v2570 = vstv %s2569
        %v2571 = vmul.f32 %v2570, %v1424
        %v2572 = vadd.f32 %v2564, %v2571
        %s2573 = sld [smem:[#allocation13 + $0xa]]
        %v2574 = vstv %s2573
        %v2575 = vmul.f32 %v2574, %v1046
        %2577 = vrot.lane.b32.xlu0 %v2575, 127
        %v2578 = vpop.permute.xlu0 %2577
        %v2580 = vadd.f32 %v2568, %v2578
        %s2581 = sld [smem:[#allocation13 + $0x1c]]
        %v2582 = vstv %s2581
        %v2583 = vmul.f32 %v2582, %v1046
        %2585 = vrot.lane.b32.xlu0 %v2583, 127
        %v2586 = vpop.permute.xlu0 %2585
        %v2588 = vadd.f32 %v2572, %v2586
        %s2589 = sld [smem:[#allocation13 + $0xb]]
        %v2590 = vstv %s2589
        %v2591 = vmul.f32 %v2590, %v1424
        %2593 = vrot.lane.b32.xlu0 %v2591, 127
        %v2594 = vpop.permute.xlu0 %2593
        %v2596 = vadd.f32 %v2580, %v2594
        %s2597 = sld [smem:[#allocation13 + $0x1d]]
        %v2598 = vstv %s2597
        %v2599 = vmul.f32 %v2598, %v1424
        %2601 = vrot.lane.b32.xlu0 %v2599, 127
        %v2602 = vpop.permute.xlu0 %2601
        %v2604 = vadd.f32 %v2588, %v2602
        %s2605 = sld [smem:[#allocation13 + $0xc]]
        %v2606 = vstv %s2605
        %v2607 = vmul.f32 %v2606, %v2196
        %v2608 = vadd.f32 %v2596, %v2607
        %s2609 = sld [smem:[#allocation13 + $0x1e]]
        %v2610 = vstv %s2609
        %v2611 = vmul.f32 %v2610, %v2196
        %v2612 = vadd.f32 %v2604, %v2611
        %s2613 = sld [smem:[#allocation13 + $0xd]]
        %v2614 = vstv %s2613
        %v2615 = vmul.f32 %v2614, %v1778
        %2617 = vrot.lane.b32.xlu0 %v2615, 127
        %v2618 = vpop.permute.xlu0 %2617
        %v2620 = vadd.f32 %v2608, %v2618
        %s2621 = sld [smem:[#allocation13 + $0x1f]]
        %v2622 = vstv %s2621
        %v2623 = vmul.f32 %v2622, %v1778
        %2625 = vrot.lane.b32.xlu0 %v2623, 127
        %v2626 = vpop.permute.xlu0 %2625
        %v2628 = vadd.f32 %v2612, %v2626
        %s2629 = sld [smem:[#allocation13 + $0xe]]
        %v2630 = vstv %s2629
        %v2631 = vmul.f32 %v2630, %v2196
        %2633 = vrot.lane.b32.xlu0 %v2631, 127
        %v2634 = vpop.permute.xlu0 %2633
        %v2636 = vadd.f32 %v2620, %v2634
        %s2637 = sld [smem:[#allocation13 + $0x20]]
        %v2638 = vstv %s2637
        %v2639 = vmul.f32 %v2638, %v2196
        %2641 = vrot.lane.b32.xlu0 %v2639, 127
        %v2642 = vpop.permute.xlu0 %2641
        %v2644 = vadd.f32 %v2628, %v2642
        %s2645 = sld [smem:[#allocation13 + $0xf]]
        %v2646 = vstv %s2645
        %v2647 = vmul.f32 %v2646, %v1424
        %v2649 = vrot.slane %v2647, 1
        %v2651 = vadd.f32 %v2636, %v2649
        %s2652 = sld [smem:[#allocation13 + $0x21]]
        %v2653 = vstv %s2652
        %v2654 = vmul.f32 %v2653, %v1424
        %v2656 = vrot.slane %v2654, 1
        %v2658 = vadd.f32 %v2644, %v2656
        %s2659 = sld [smem:[#allocation13 + $0x10]]
        %v2660 = vstv %s2659
        %v2661 = vmul.f32 %v2660, %v1046
        %v2663 = vrot.slane %v2661, 1
        %2664 = vrot.lane.b32.xlu0 %v2663, 127
        %v2665 = vpop.permute.xlu0 %2664
        %v2667 = vadd.f32 %v2651, %v2665
        %s2668 = sld [smem:[#allocation13 + $0x22]]
        %v2669 = vstv %s2668
        %v2670 = vmul.f32 %v2669, %v1046
        %v2672 = vrot.slane %v2670, 1
        %2673 = vrot.lane.b32.xlu0 %v2672, 127
        %v2674 = vpop.permute.xlu0 %2673
        %v2676 = vadd.f32 %v2658, %v2674
        %s2677 = sld [smem:[#allocation13 + $0x11]]
        %v2678 = vstv %s2677
        %v2679 = vmul.f32 %v2678, %v1424
        %v2681 = vrot.slane %v2679, 1
        %2682 = vrot.lane.b32.xlu0 %v2681, 127
        %v2683 = vpop.permute.xlu0 %2682
        %v2685 = vadd.f32 %v2667, %v2683
        %s2686 = sld [smem:[#allocation13 + $0x23]]
        %v2687 = vstv %s2686
        %v2688 = vmul.f32 %v2687, %v1424
        %v2690 = vrot.slane %v2688, 1
        %2691 = vrot.lane.b32.xlu0 %v2690, 127
        %v2692 = vpop.permute.xlu0 %2691
        %v2694 = vadd.f32 %v2676, %v2692
        %v2695 = vmax.f32 %v2685, 0.0
        %s2696 = scalar_lea.vmem %s442, 16
        %2697 = vst.msk [vmem:[%s2696] sm:$0x3f] %vm2424, %v2695
        %v2698 = vmax.f32 %v2694, 0.0
        %s2699 = scalar_lea.vmem %s442, 24
        %2700 = vst.msk [vmem:[%s2699] sm:$0x3f] %vm2424, %v2698
        %s2701 = sld [smem:[#allocation14]]
        %v2702 = vstv %s2701
        %v2703 = vadd.f32 %v2702, 0.0
        %s2704 = sld [smem:[#allocation14 + $0x1]]
        %v2705 = vstv %s2704
        %v2706 = vadd.f32 %v2705, 0.0
        %s2707 = sld [smem:[#allocation13]]
        %v2708 = vstv %s2707
        %v2709 = vmul.f32 %v2708, %v1777
        %v2710 = vadd.f32 %v2703, %v2709
        %s2711 = sld [smem:[#allocation13 + $0x12]]
        %v2712 = vstv %s2711
        %v2713 = vmul.f32 %v2712, %v1777
        %v2714 = vadd.f32 %v2706, %v2713
        %s2715 = sld [smem:[#allocation13 + $0x1]]
        %v2716 = vstv %s2715
        %v2717 = vmul.f32 %v2716, %v2195
        %v2718 = vadd.f32 %v2710, %v2717
        %s2719 = sld [smem:[#allocation13 + $0x13]]
        %v2720 = vstv %s2719
        %v2721 = vmul.f32 %v2720, %v2195
        %v2722 = vadd.f32 %v2714, %v2721
        %s2723 = sld [smem:[#allocation13 + $0x2]]
        %v2724 = vstv %s2723
        %v2725 = vmul.f32 %v2724, %v1777
        %2727 = vrot.lane.b32.xlu0 %v2725, 127
        %v2728 = vpop.permute.xlu0 %2727
        %v2730 = vadd.f32 %v2718, %v2728
        %s2731 = sld [smem:[#allocation13 + $0x14]]
        %v2732 = vstv %s2731
        %v2733 = vmul.f32 %v2732, %v1777
        %2735 = vrot.lane.b32.xlu0 %v2733, 127
        %v2736 = vpop.permute.xlu0 %2735
        %v2738 = vadd.f32 %v2722, %v2736
        %s2739 = sld [smem:[#allocation13 + $0x3]]
        %v2740 = vstv %s2739
        %v2741 = vmul.f32 %v2740, %v1045
        %v2743 = vrot.slane %v2741, 1
        %v2745 = vadd.f32 %v2730, %v2743
        %s2746 = sld [smem:[#allocation13 + $0x15]]
        %v2747 = vstv %s2746
        %v2748 = vmul.f32 %v2747, %v1045
        %v2750 = vrot.slane %v2748, 1
        %v2752 = vadd.f32 %v2738, %v2750
        %s2753 = sld [smem:[#allocation13 + $0x4]]
        %v2754 = vstv %s2753
        %v2755 = vmul.f32 %v2754, %v1423
        %v2757 = vrot.slane %v2755, 1
        %v2759 = vadd.f32 %v2745, %v2757
        %s2760 = sld [smem:[#allocation13 + $0x16]]
        %v2761 = vstv %s2760
        %v2762 = vmul.f32 %v2761, %v1423
        %v2764 = vrot.slane %v2762, 1
        %v2766 = vadd.f32 %v2752, %v2764
        %s2767 = sld [smem:[#allocation13 + $0x5]]
        %v2768 = vstv %s2767
        %v2769 = vmul.f32 %v2768, %v1045
        %v2771 = vrot.slane %v2769, 1
        %2772 = vrot.lane.b32.xlu0 %v2771, 127
        %v2773 = vpop.permute.xlu0 %2772
        %v2775 = vadd.f32 %v2759, %v2773
        %s2776 = sld [smem:[#allocation13 + $0x17]]
        %v2777 = vstv %s2776
        %v2778 = vmul.f32 %v2777, %v1045
        %v2780 = vrot.slane %v2778, 1
        %2781 = vrot.lane.b32.xlu0 %v2780, 127
        %v2782 = vpop.permute.xlu0 %2781
        %v2784 = vadd.f32 %v2766, %v2782
        %s2785 = sld [smem:[#allocation13 + $0x6]]
        %v2786 = vstv %s2785
        %v2787 = vmul.f32 %v2786, %v1777
        %v2789 = vrot.slane %v2787, 1
        %v2791 = vadd.f32 %v2775, %v2789
        %s2792 = sld [smem:[#allocation13 + $0x18]]
        %v2793 = vstv %s2792
        %v2794 = vmul.f32 %v2793, %v1777
        %v2796 = vrot.slane %v2794, 1
        %v2798 = vadd.f32 %v2784, %v2796
        %s2799 = sld [smem:[#allocation13 + $0x7]]
        %v2800 = vstv %s2799
        %v2801 = vmul.f32 %v2800, %v2195
        %v2803 = vrot.slane %v2801, 1
        %v2805 = vadd.f32 %v2791, %v2803
        %s2806 = sld [smem:[#allocation13 + $0x19]]
        %v2807 = vstv %s2806
        %v2808 = vmul.f32 %v2807, %v2195
        %v2810 = vrot.slane %v2808, 1
        %v2812 = vadd.f32 %v2798, %v2810
        %s2813 = sld [smem:[#allocation13 + $0x8]]
        %v2814 = vstv %s2813
        %v2815 = vmul.f32 %v2814, %v1777
        %v2817 = vrot.slane %v2815, 1
        %2818 = vrot.lane.b32.xlu0 %v2817, 127
        %v2819 = vpop.permute.xlu0 %2818
        %v2821 = vadd.f32 %v2805, %v2819
        %s2822 = sld [smem:[#allocation13 + $0x1a]]
        %v2823 = vstv %s2822
        %v2824 = vmul.f32 %v2823, %v1777
        %v2826 = vrot.slane %v2824, 1
        %2827 = vrot.lane.b32.xlu0 %v2826, 127
        %v2828 = vpop.permute.xlu0 %2827
        %v2830 = vadd.f32 %v2812, %v2828
        %s2831 = sld [smem:[#allocation13 + $0x9]]
        %v2832 = vstv %s2831
        %v2833 = vmul.f32 %v2832, %v1778
        %v2834 = vadd.f32 %v2821, %v2833
        %s2835 = sld [smem:[#allocation13 + $0x1b]]
        %v2836 = vstv %s2835
        %v2837 = vmul.f32 %v2836, %v1778
        %v2838 = vadd.f32 %v2830, %v2837
        %s2839 = sld [smem:[#allocation13 + $0xa]]
        %v2840 = vstv %s2839
        %v2841 = vmul.f32 %v2840, %v2196
        %v2842 = vadd.f32 %v2834, %v2841
        %s2843 = sld [smem:[#allocation13 + $0x1c]]
        %v2844 = vstv %s2843
        %v2845 = vmul.f32 %v2844, %v2196
        %v2846 = vadd.f32 %v2838, %v2845
        %s2847 = sld [smem:[#allocation13 + $0xb]]
        %v2848 = vstv %s2847
        %v2849 = vmul.f32 %v2848, %v1778
        %2851 = vrot.lane.b32.xlu0 %v2849, 127
        %v2852 = vpop.permute.xlu0 %2851
        %v2854 = vadd.f32 %v2842, %v2852
        %s2855 = sld [smem:[#allocation13 + $0x1d]]
        %v2856 = vstv %s2855
        %v2857 = vmul.f32 %v2856, %v1778
        %2859 = vrot.lane.b32.xlu0 %v2857, 127
        %v2860 = vpop.permute.xlu0 %2859
        %v2862 = vadd.f32 %v2846, %v2860
        %s2863 = sld [smem:[#allocation13 + $0xc]]
        %v2864 = vstv %s2863
        %v2865 = vmul.f32 %v2864, %v1046
        %v2867 = vrot.slane %v2865, 1
        %v2869 = vadd.f32 %v2854, %v2867
        %s2870 = sld [smem:[#allocation13 + $0x1e]]
        %v2871 = vstv %s2870
        %v2872 = vmul.f32 %v2871, %v1046
        %v2874 = vrot.slane %v2872, 1
        %v2876 = vadd.f32 %v2862, %v2874
        %s2877 = sld [smem:[#allocation13 + $0xd]]
        %v2878 = vstv %s2877
        %v2879 = vmul.f32 %v2878, %v1424
        %v2881 = vrot.slane %v2879, 1
        %v2883 = vadd.f32 %v2869, %v2881
        %s2884 = sld [smem:[#allocation13 + $0x1f]]
        %v2885 = vstv %s2884
        %v2886 = vmul.f32 %v2885, %v1424
        %v2888 = vrot.slane %v2886, 1
        %v2890 = vadd.f32 %v2876, %v2888
        %s2891 = sld [smem:[#allocation13 + $0xe]]
        %v2892 = vstv %s2891
        %v2893 = vmul.f32 %v2892, %v1046
        %v2895 = vrot.slane %v2893, 1
        %2896 = vrot.lane.b32.xlu0 %v2895, 127
        %v2897 = vpop.permute.xlu0 %2896
        %v2899 = vadd.f32 %v2883, %v2897
        %s2900 = sld [smem:[#allocation13 + $0x20]]
        %v2901 = vstv %s2900
        %v2902 = vmul.f32 %v2901, %v1046
        %v2904 = vrot.slane %v2902, 1
        %2905 = vrot.lane.b32.xlu0 %v2904, 127
        %v2906 = vpop.permute.xlu0 %2905
        %v2908 = vadd.f32 %v2890, %v2906
        %s2909 = sld [smem:[#allocation13 + $0xf]]
        %v2910 = vstv %s2909
        %v2911 = vmul.f32 %v2910, %v1778
        %v2913 = vrot.slane %v2911, 1
        %v2915 = vadd.f32 %v2899, %v2913
        %s2916 = sld [smem:[#allocation13 + $0x21]]
        %v2917 = vstv %s2916
        %v2918 = vmul.f32 %v2917, %v1778
        %v2920 = vrot.slane %v2918, 1
        %v2922 = vadd.f32 %v2908, %v2920
        %s2923 = sld [smem:[#allocation13 + $0x10]]
        %v2924 = vstv %s2923
        %v2925 = vmul.f32 %v2924, %v2196
        %v2927 = vrot.slane %v2925, 1
        %v2929 = vadd.f32 %v2915, %v2927
        %s2930 = sld [smem:[#allocation13 + $0x22]]
        %v2931 = vstv %s2930
        %v2932 = vmul.f32 %v2931, %v2196
        %v2934 = vrot.slane %v2932, 1
        %v2936 = vadd.f32 %v2922, %v2934
        %s2937 = sld [smem:[#allocation13 + $0x11]]
        %v2938 = vstv %s2937
        %v2939 = vmul.f32 %v2938, %v1778
        %v2941 = vrot.slane %v2939, 1
        %2942 = vrot.lane.b32.xlu0 %v2941, 127
        %v2943 = vpop.permute.xlu0 %2942
        %v2945 = vadd.f32 %v2929, %v2943
        %s2946 = sld [smem:[#allocation13 + $0x23]]
        %v2947 = vstv %s2946
        %v2948 = vmul.f32 %v2947, %v1778
        %v2950 = vrot.slane %v2948, 1
        %2951 = vrot.lane.b32.xlu0 %v2950, 127
        %v2952 = vpop.permute.xlu0 %2951
        %v2954 = vadd.f32 %v2936, %v2952
        %v2955 = vmax.f32 %v2945, 0.0
        %s2956 = scalar_lea.vmem %s442, 32
        %2957 = vst.msk [vmem:[%s2956] sm:$0x3f] %vm2424, %v2955
        %v2958 = vmax.f32 %v2954, 0.0
        %s2959 = scalar_lea.vmem %s442, 40
        %2960 = vst.msk [vmem:[%s2959] sm:$0x3f] %vm2424, %v2958
        %s2961 = sld [smem:[#allocation14]]
        %v2962 = vstv %s2961
        %v2963 = vadd.f32 %v2962, 0.0
        %s2964 = sld [smem:[#allocation14 + $0x1]]
        %v2965 = vstv %s2964
        %v2966 = vadd.f32 %v2965, 0.0
        %s2967 = sld [smem:[#allocation13]]
        %v2968 = vstv %s2967
        %v2969 = vmul.f32 %v2968, %v2195
        %v2970 = vadd.f32 %v2963, %v2969
        %s2971 = sld [smem:[#allocation13 + $0x12]]
        %v2972 = vstv %s2971
        %v2973 = vmul.f32 %v2972, %v2195
        %v2974 = vadd.f32 %v2966, %v2973
        %s2975 = sld [smem:[#allocation13 + $0x1]]
        %v2976 = vstv %s2975
        %v2977 = vmul.f32 %v2976, %v1777
        %2979 = vrot.lane.b32.xlu0 %v2977, 127
        %v2980 = vpop.permute.xlu0 %2979
        %v2982 = vadd.f32 %v2970, %v2980
        %s2983 = sld [smem:[#allocation13 + $0x13]]
        %v2984 = vstv %s2983
        %v2985 = vmul.f32 %v2984, %v1777
        %2987 = vrot.lane.b32.xlu0 %v2985, 127
        %v2988 = vpop.permute.xlu0 %2987
        %v2990 = vadd.f32 %v2974, %v2988
        %s2991 = sld [smem:[#allocation13 + $0x2]]
        %v2992 = vstv %s2991
        %v2993 = vmul.f32 %v2992, %v2195
        %2995 = vrot.lane.b32.xlu0 %v2993, 127
        %v2996 = vpop.permute.xlu0 %2995
        %v2998 = vadd.f32 %v2982, %v2996
        %s2999 = sld [smem:[#allocation13 + $0x14]]
        %v3000 = vstv %s2999
        %v3001 = vmul.f32 %v3000, %v2195
        %3003 = vrot.lane.b32.xlu0 %v3001, 127
        %v3004 = vpop.permute.xlu0 %3003
        %v3006 = vadd.f32 %v2990, %v3004
        %s3007 = sld [smem:[#allocation13 + $0x3]]
        %v3008 = vstv %s3007
        %v3009 = vmul.f32 %v3008, %v1423
        %v3011 = vrot.slane %v3009, 1
        %v3013 = vadd.f32 %v2998, %v3011
        %s3014 = sld [smem:[#allocation13 + $0x15]]
        %v3015 = vstv %s3014
        %v3016 = vmul.f32 %v3015, %v1423
        %v3018 = vrot.slane %v3016, 1
        %v3020 = vadd.f32 %v3006, %v3018
        %s3021 = sld [smem:[#allocation13 + $0x4]]
        %v3022 = vstv %s3021
        %v3023 = vmul.f32 %v3022, %v1045
        %v3025 = vrot.slane %v3023, 1
        %3026 = vrot.lane.b32.xlu0 %v3025, 127
        %v3027 = vpop.permute.xlu0 %3026
        %v3029 = vadd.f32 %v3013, %v3027
        %s3030 = sld [smem:[#allocation13 + $0x16]]
        %v3031 = vstv %s3030
        %v3032 = vmul.f32 %v3031, %v1045
        %v3034 = vrot.slane %v3032, 1
        %3035 = vrot.lane.b32.xlu0 %v3034, 127
        %v3036 = vpop.permute.xlu0 %3035
        %v3038 = vadd.f32 %v3020, %v3036
        %s3039 = sld [smem:[#allocation13 + $0x5]]
        %v3040 = vstv %s3039
        %v3041 = vmul.f32 %v3040, %v1423
        %v3043 = vrot.slane %v3041, 1
        %3044 = vrot.lane.b32.xlu0 %v3043, 127
        %v3045 = vpop.permute.xlu0 %3044
        %v3047 = vadd.f32 %v3029, %v3045
        %s3048 = sld [smem:[#allocation13 + $0x17]]
        %v3049 = vstv %s3048
        %v3050 = vmul.f32 %v3049, %v1423
        %v3052 = vrot.slane %v3050, 1
        %3053 = vrot.lane.b32.xlu0 %v3052, 127
        %v3054 = vpop.permute.xlu0 %3053
        %v3056 = vadd.f32 %v3038, %v3054
        %s3057 = sld [smem:[#allocation13 + $0x6]]
        %v3058 = vstv %s3057
        %v3059 = vmul.f32 %v3058, %v2195
        %v3061 = vrot.slane %v3059, 1
        %v3063 = vadd.f32 %v3047, %v3061
        %s3064 = sld [smem:[#allocation13 + $0x18]]
        %v3065 = vstv %s3064
        %v3066 = vmul.f32 %v3065, %v2195
        %v3068 = vrot.slane %v3066, 1
        %v3070 = vadd.f32 %v3056, %v3068
        %s3071 = sld [smem:[#allocation13 + $0x7]]
        %v3072 = vstv %s3071
        %v3073 = vmul.f32 %v3072, %v1777
        %v3075 = vrot.slane %v3073, 1
        %3076 = vrot.lane.b32.xlu0 %v3075, 127
        %v3077 = vpop.permute.xlu0 %3076
        %v3079 = vadd.f32 %v3063, %v3077
        %s3080 = sld [smem:[#allocation13 + $0x19]]
        %v3081 = vstv %s3080
        %v3082 = vmul.f32 %v3081, %v1777
        %v3084 = vrot.slane %v3082, 1
        %3085 = vrot.lane.b32.xlu0 %v3084, 127
        %v3086 = vpop.permute.xlu0 %3085
        %v3088 = vadd.f32 %v3070, %v3086
        %s3089 = sld [smem:[#allocation13 + $0x8]]
        %v3090 = vstv %s3089
        %v3091 = vmul.f32 %v3090, %v2195
        %v3093 = vrot.slane %v3091, 1
        %3094 = vrot.lane.b32.xlu0 %v3093, 127
        %v3095 = vpop.permute.xlu0 %3094
        %v3097 = vadd.f32 %v3079, %v3095
        %s3098 = sld [smem:[#allocation13 + $0x1a]]
        %v3099 = vstv %s3098
        %v3100 = vmul.f32 %v3099, %v2195
        %v3102 = vrot.slane %v3100, 1
        %3103 = vrot.lane.b32.xlu0 %v3102, 127
        %v3104 = vpop.permute.xlu0 %3103
        %v3106 = vadd.f32 %v3088, %v3104
        %s3107 = sld [smem:[#allocation13 + $0x9]]
        %v3108 = vstv %s3107
        %v3109 = vmul.f32 %v3108, %v2196
        %v3110 = vadd.f32 %v3097, %v3109
        %s3111 = sld [smem:[#allocation13 + $0x1b]]
        %v3112 = vstv %s3111
        %v3113 = vmul.f32 %v3112, %v2196
        %v3114 = vadd.f32 %v3106, %v3113
        %s3115 = sld [smem:[#allocation13 + $0xa]]
        %v3116 = vstv %s3115
        %v3117 = vmul.f32 %v3116, %v1778
        %3119 = vrot.lane.b32.xlu0 %v3117, 127
        %v3120 = vpop.permute.xlu0 %3119
        %v3122 = vadd.f32 %v3110, %v3120
        %s3123 = sld [smem:[#allocation13 + $0x1c]]
        %v3124 = vstv %s3123
        %v3125 = vmul.f32 %v3124, %v1778
        %3127 = vrot.lane.b32.xlu0 %v3125, 127
        %v3128 = vpop.permute.xlu0 %3127
        %v3130 = vadd.f32 %v3114, %v3128
        %s3131 = sld [smem:[#allocation13 + $0xb]]
        %v3132 = vstv %s3131
        %v3133 = vmul.f32 %v3132, %v2196
        %3135 = vrot.lane.b32.xlu0 %v3133, 127
        %v3136 = vpop.permute.xlu0 %3135
        %v3138 = vadd.f32 %v3122, %v3136
        %s3139 = sld [smem:[#allocation13 + $0x1d]]
        %v3140 = vstv %s3139
        %v3141 = vmul.f32 %v3140, %v2196
        %3143 = vrot.lane.b32.xlu0 %v3141, 127
        %v3144 = vpop.permute.xlu0 %3143
        %v3146 = vadd.f32 %v3130, %v3144
        %s3147 = sld [smem:[#allocation13 + $0xc]]
        %v3148 = vstv %s3147
        %v3149 = vmul.f32 %v3148, %v1424
        %v3151 = vrot.slane %v3149, 1
        %v3153 = vadd.f32 %v3138, %v3151
        %s3154 = sld [smem:[#allocation13 + $0x1e]]
        %v3155 = vstv %s3154
        %v3156 = vmul.f32 %v3155, %v1424
        %v3158 = vrot.slane %v3156, 1
        %v3160 = vadd.f32 %v3146, %v3158
        %s3161 = sld [smem:[#allocation13 + $0xd]]
        %v3162 = vstv %s3161
        %v3163 = vmul.f32 %v3162, %v1046
        %v3165 = vrot.slane %v3163, 1
        %3166 = vrot.lane.b32.xlu0 %v3165, 127
        %v3167 = vpop.permute.xlu0 %3166
        %v3169 = vadd.f32 %v3153, %v3167
        %s3170 = sld [smem:[#allocation13 + $0x1f]]
        %v3171 = vstv %s3170
        %v3172 = vmul.f32 %v3171, %v1046
        %v3174 = vrot.slane %v3172, 1
        %3175 = vrot.lane.b32.xlu0 %v3174, 127
        %v3176 = vpop.permute.xlu0 %3175
        %v3178 = vadd.f32 %v3160, %v3176
        %s3179 = sld [smem:[#allocation13 + $0xe]]
        %v3180 = vstv %s3179
        %v3181 = vmul.f32 %v3180, %v1424
        %v3183 = vrot.slane %v3181, 1
        %3184 = vrot.lane.b32.xlu0 %v3183, 127
        %v3185 = vpop.permute.xlu0 %3184
        %v3187 = vadd.f32 %v3169, %v3185
        %s3188 = sld [smem:[#allocation13 + $0x20]]
        %v3189 = vstv %s3188
        %v3190 = vmul.f32 %v3189, %v1424
        %v3192 = vrot.slane %v3190, 1
        %3193 = vrot.lane.b32.xlu0 %v3192, 127
        %v3194 = vpop.permute.xlu0 %3193
        %v3196 = vadd.f32 %v3178, %v3194
        %s3197 = sld [smem:[#allocation13 + $0xf]]
        %v3198 = vstv %s3197
        %v3199 = vmul.f32 %v3198, %v2196
        %v3201 = vrot.slane %v3199, 1
        %v3203 = vadd.f32 %v3187, %v3201
        %s3204 = sld [smem:[#allocation13 + $0x21]]
        %v3205 = vstv %s3204
        %v3206 = vmul.f32 %v3205, %v2196
        %v3208 = vrot.slane %v3206, 1
        %v3210 = vadd.f32 %v3196, %v3208
        %s3211 = sld [smem:[#allocation13 + $0x10]]
        %v3212 = vstv %s3211
        %v3213 = vmul.f32 %v3212, %v1778
        %v3215 = vrot.slane %v3213, 1
        %3216 = vrot.lane.b32.xlu0 %v3215, 127
        %v3217 = vpop.permute.xlu0 %3216
        %v3219 = vadd.f32 %v3203, %v3217
        %s3220 = sld [smem:[#allocation13 + $0x22]]
        %v3221 = vstv %s3220
        %v3222 = vmul.f32 %v3221, %v1778
        %v3224 = vrot.slane %v3222, 1
        %3225 = vrot.lane.b32.xlu0 %v3224, 127
        %v3226 = vpop.permute.xlu0 %3225
        %v3228 = vadd.f32 %v3210, %v3226
        %s3229 = sld [smem:[#allocation13 + $0x11]]
        %v3230 = vstv %s3229
        %v3231 = vmul.f32 %v3230, %v2196
        %v3233 = vrot.slane %v3231, 1
        %3234 = vrot.lane.b32.xlu0 %v3233, 127
        %v3235 = vpop.permute.xlu0 %3234
        %v3237 = vadd.f32 %v3219, %v3235
        %s3238 = sld [smem:[#allocation13 + $0x23]]
        %v3239 = vstv %s3238
        %v3240 = vmul.f32 %v3239, %v2196
        %v3242 = vrot.slane %v3240, 1
        %3243 = vrot.lane.b32.xlu0 %v3242, 127
        %v3244 = vpop.permute.xlu0 %3243
        %v3246 = vadd.f32 %v3228, %v3244
        %v3247 = vmax.f32 %v3237, 0.0
        %s3248 = scalar_lea.vmem %s442, 48
        %3249 = vst.msk [vmem:[%s3248] sm:$0x3f] %vm2424, %v3247
        %v3250 = vmax.f32 %v3246, 0.0
        %s3251 = scalar_lea.vmem %s442, 56
        %3252 = vst.msk [vmem:[%s3251] sm:$0x3f] %vm2424, %v3250
        %p3253 = scmp.lt.s32.totalorder %s29, 1
        %s3254 = scalar_select %p3253, %s29, 1
        %s3255 = smul.addr %s3254, 8
        %s3256 = smul.addr %s3255, 8
        %s3257 = scalar_lea.vmem %s8, %s3256
        // Predicated region
        $region85: #{tpu_custom_call.1} parent=51 // pred_check
          %p3258 = pneg %p225
        $region86: #{tpu_custom_call.1} parent=51 // pred_check_branch
          %3260 = sbr.rel (%p3258) target = $region88
        $region87: #{tpu_custom_call.1} parent=51 // pred_region
          _
        $region88: #{tpu_custom_call.1} parent=51 // pred_fallthru
          _
      $region52: #{tpu_custom_call.1} parent=5 // pred_fallthru
        _
      %p3261 = scmp.le.s32.totalorder 2, %s24
      // Predicated region
      $region89: #{tpu_custom_call.1} parent=5 // pred_check
        %p3262 = pneg %p3261
      $region90: #{tpu_custom_call.1} parent=5 // pred_check_branch
        %3264 = sbr.rel (%p3262) target = $region92
      $region91: #{tpu_custom_call.1} parent=5 // pred_region
        %s3265 = ssub.s32 %s24, 2
        // Predicated region
        $region93: #{tpu_custom_call.1} parent=91 // pred_check
          %p3266 = pneg %p231
        $region94: #{tpu_custom_call.1} parent=91 // pred_check_branch
          %3268 = sbr.rel (%p3266) target = $region96
        $region95: #{tpu_custom_call.1} parent=91 // pred_region
          %p3269 = scmp.lt.s32.totalorder %s30, 1
          %s3270 = scalar_select %p3269, %s30, 1
          %s3271 = smul.addr %s3270, 8
          %s3272 = smul.addr %s3271, 8
          %s3273 = scalar_lea.vmem %s8, %s3272
        $region96: #{tpu_custom_call.1} parent=91 // pred_fallthru
          _
      $region92: #{tpu_custom_call.1} parent=5 // pred_fallthru
        _
    $region6: #{tpu_custom_call.1} parent=1 // loop_footer
      %s28 = sadd.s32 1, %s24
    $region7: #{tpu_custom_call.1} parent=1 // loop_footer_branch
      %23 = sbr.rel target = $region3
    $region8: #{tpu_custom_call.1} parent=1 // loop_exit
      _
    %3274 = vsyncpa [#allocation3], 1
    %s3275 = scalar_lea.sflag [#allocation3], 1
    %3276 = vsyncpa %s3275, 1
    %3277 = vsyncpa [#allocation6], 1
    %s3278 = scalar_lea.sflag [#allocation6], 1
    %3279 = vsyncpa %s3278, 1
    %3280 = vsyncpa [#allocation4], 1
    %s3281 = scalar_lea.sflag [#allocation4], 1
    %3282 = vsyncpa %s3281, 1
    %3283 = vsyncpa [#allocation9], 1
    %3284 = vsyncpa [#allocation12], 1
    %3285 = vsyncpa [#allocation15], 1

</llo_original>
